<compile_context>
chip_gen: v7x
topology: tpu7x:2x2x1
jax: 0.10.0
libtpu: 0.0.40
codegen_flags: <defaults>
</compile_context>

<pallas_src>
import functools

import jax
import jax.numpy as jnp
from jax.experimental import pallas as pl
from jax.experimental.pallas import tpu as pltpu


# ----------------------------------------------------------------------------
# tile-size helper: largest multiple of `unit` <= target dividing dim, else dim
# ----------------------------------------------------------------------------
def _pick_tile(dim, target, unit):
    if dim <= target:
        return dim
    t = (target // unit) * unit
    while t >= unit:
        if dim % t == 0:
            return t
        t -= unit
    return dim


_MATMUL_VMEM = 64 * 1024 * 1024


# ----------------------------------------------------------------------------
# Tiled matmul kernels (bf16 operands, f32 accumulator, optional fused residual)
# ----------------------------------------------------------------------------
def _matmul_kernel(x_ref, w_ref, o_ref, acc_ref):
    @pl.when(pl.program_id(2) == 0)
    def _init():
        acc_ref[...] = jnp.zeros_like(acc_ref)

    acc_ref[...] += jnp.dot(x_ref[...], w_ref[...],
                            preferred_element_type=jnp.float32)

    @pl.when(pl.program_id(2) == pl.num_programs(2) - 1)
    def _fin():
        o_ref[...] = acc_ref[...].astype(o_ref.dtype)


def _matmul_res_kernel(x_ref, w_ref, r_ref, o_ref, acc_ref):
    @pl.when(pl.program_id(2) == 0)
    def _init():
        acc_ref[...] = jnp.zeros_like(acc_ref)

    acc_ref[...] += jnp.dot(x_ref[...], w_ref[...],
                            preferred_element_type=jnp.float32)

    @pl.when(pl.program_id(2) == pl.num_programs(2) - 1)
    def _fin():
        o_ref[...] = (acc_ref[...] + r_ref[...].astype(jnp.float32)).astype(o_ref.dtype)


def pallas_matmul(x, w, residual=None, out_dtype=None, tm=512, tn=512, tk=512):
    """x: (M, K), w: (K, N) -> (M, N).  Optional fused residual add (M, N)."""
    M, K = x.shape
    K2, N = w.shape
    assert K == K2
    tm = _pick_tile(M, tm, 16)      # bf16-native sublane packing (16 rows)
    tn = _pick_tile(N, tn, 128)
    tk = _pick_tile(K, tk, 128)
    grid = (M // tm, N // tn, K // tk)
    out_dtype = out_dtype or x.dtype

    in_specs = [
        pl.BlockSpec((tm, tk), lambda i, j, k: (i, k)),
        pl.BlockSpec((tk, tn), lambda i, j, k: (k, j)),
    ]
    args = [x, w]
    kernel = _matmul_kernel
    if residual is not None:
        in_specs.append(pl.BlockSpec((tm, tn), lambda i, j, k: (i, j)))
        args.append(residual)
        kernel = _matmul_res_kernel

    return pl.pallas_call(
        kernel,
        out_shape=jax.ShapeDtypeStruct((M, N), out_dtype),
        grid=grid,
        in_specs=in_specs,
        out_specs=pl.BlockSpec((tm, tn), lambda i, j, k: (i, j)),
        scratch_shapes=[pltpu.VMEM((tm, tn), jnp.float32)],
        compiler_params=pltpu.CompilerParams(
            dimension_semantics=("parallel", "parallel", "arbitrary"),
            vmem_limit_bytes=_MATMUL_VMEM),
    )(*args)


# ----------------------------------------------------------------------------
# Fused FFN gate: silu(x @ w1) * (x @ w3), dual f32 accumulators
# ----------------------------------------------------------------------------
def _ffn_gate_kernel(x_ref, w1_ref, w3_ref, o_ref, acc1_ref, acc3_ref):
    @pl.when(pl.program_id(2) == 0)
    def _init():
        acc1_ref[...] = jnp.zeros_like(acc1_ref)
        acc3_ref[...] = jnp.zeros_like(acc3_ref)

    x = x_ref[...]
    acc1_ref[...] += jnp.dot(x, w1_ref[...], preferred_element_type=jnp.float32)
    acc3_ref[...] += jnp.dot(x, w3_ref[...], preferred_element_type=jnp.float32)

    @pl.when(pl.program_id(2) == pl.num_programs(2) - 1)
    def _fin():
        a = acc1_ref[...]
        o_ref[...] = (a * jax.nn.sigmoid(a) * acc3_ref[...]).astype(o_ref.dtype)


def pallas_ffn_gate(x, w1, w3, tm=512, tn=512, tk=512):
    M, K = x.shape
    _, F = w1.shape
    tm = _pick_tile(M, tm, 16)
    tn = _pick_tile(F, tn, 128)
    tk = _pick_tile(K, tk, 128)
    grid = (M // tm, F // tn, K // tk)
    return pl.pallas_call(
        _ffn_gate_kernel,
        out_shape=jax.ShapeDtypeStruct((M, F), jnp.bfloat16),
        grid=grid,
        in_specs=[
            pl.BlockSpec((tm, tk), lambda i, j, k: (i, k)),
            pl.BlockSpec((tk, tn), lambda i, j, k: (k, j)),
            pl.BlockSpec((tk, tn), lambda i, j, k: (k, j)),
        ],
        out_specs=pl.BlockSpec((tm, tn), lambda i, j, k: (i, j)),
        scratch_shapes=[pltpu.VMEM((tm, tn), jnp.float32),
                        pltpu.VMEM((tm, tn), jnp.float32)],
        compiler_params=pltpu.CompilerParams(
            dimension_semantics=("parallel", "parallel", "arbitrary"),
            vmem_limit_bytes=_MATMUL_VMEM),
    )(x, w1, w3)


# ----------------------------------------------------------------------------
# Row-tiled RMSNorm (f32 math, bf16 output for downstream matmuls)
# ----------------------------------------------------------------------------
def _rmsnorm_kernel(x_ref, w_ref, o_ref, *, eps):
    x = x_ref[...].astype(jnp.float32)
    var = jnp.mean(x * x, axis=-1, keepdims=True)
    xn = x * jax.lax.rsqrt(var + eps)
    o_ref[...] = (xn * w_ref[...].astype(jnp.float32)).astype(o_ref.dtype)


def pallas_rmsnorm(x, w, eps=1e-5, out_dtype=jnp.bfloat16, tm=128):
    M, D = x.shape
    tm = _pick_tile(M, tm, 8)
    return pl.pallas_call(
        functools.partial(_rmsnorm_kernel, eps=eps),
        out_shape=jax.ShapeDtypeStruct((M, D), out_dtype),
        grid=(M // tm,),
        in_specs=[
            pl.BlockSpec((tm, D), lambda i: (i, 0)),
            pl.BlockSpec((1, D), lambda i: (0, 0)),
        ],
        out_specs=pl.BlockSpec((tm, D), lambda i: (i, 0)),
        compiler_params=pltpu.CompilerParams(dimension_semantics=("parallel",)),
    )(x, w.reshape(1, D))


# ----------------------------------------------------------------------------
# RoPE as a Pallas kernel: interleaved (real, imag) pairs rotated with an
# XLU roll-based even/odd pair swizzle; cos / signed-sin tables precomputed.
# ----------------------------------------------------------------------------
def _rope_kernel(x_ref, cos_ref, sin_ref, o_ref):
    x = x_ref[0].astype(jnp.float32)                  # (ts, D)
    d = x.shape[-1]
    nxt = pltpu.roll(x, shift=d - 1, axis=1)          # x[:, i+1] at column i
    prv = pltpu.roll(x, shift=1, axis=1)              # x[:, i-1] at column i
    col = jax.lax.broadcasted_iota(jnp.int32, x.shape, 1)
    swapped = jnp.where(col % 2 == 0, nxt, prv)       # pair partner
    o_ref[0] = (x * cos_ref[...] + swapped * sin_ref[...]).astype(o_ref.dtype)


def pallas_rope(x, cos_t, sin_t, ts=256):
    """x: (B, S, H*hd) bf16; cos_t/sin_t: (S, H*hd) f32 (sin already signed)."""
    B, S, D = x.shape
    ts = _pick_tile(S, ts, 8)
    return pl.pallas_call(
        _rope_kernel,
        out_shape=jax.ShapeDtypeStruct((B, S, D), x.dtype),
        grid=(B, S // ts),
        in_specs=[
            pl.BlockSpec((1, ts, D), lambda b, i: (b, i, 0)),
            pl.BlockSpec((ts, D), lambda b, i: (i, 0)),
            pl.BlockSpec((ts, D), lambda b, i: (i, 0)),
        ],
        out_specs=pl.BlockSpec((1, ts, D), lambda b, i: (b, i, 0)),
        compiler_params=pltpu.CompilerParams(
            dimension_semantics=("parallel", "parallel")),
    )(x, cos_t, sin_t)


def rope_tables(start_pos, seqlen, head_dim, n_heads, n_kv_heads, theta=10000.0):
    freqs = 1.0 / (theta ** (jnp.arange(0, head_dim, 2, dtype=jnp.float32) / head_dim))
    t = jnp.arange(start_pos, start_pos + seqlen, dtype=jnp.float32)
    angles = jnp.outer(t, freqs)                           # (S, hd/2)
    cos2 = jnp.repeat(jnp.cos(angles), 2, axis=-1)         # (S, hd)
    sin2 = jnp.repeat(jnp.sin(angles), 2, axis=-1)
    sign = jnp.tile(jnp.array([-1.0, 1.0], jnp.float32), head_dim // 2)
    sin_signed = sin2 * sign                               # -sin on even cols, +sin on odd
    cos_q = jnp.tile(cos2, (1, n_heads))
    sin_q = jnp.tile(sin_signed, (1, n_heads))
    cos_k = jnp.tile(cos2, (1, n_kv_heads))
    sin_k = jnp.tile(sin_signed, (1, n_kv_heads))
    return cos_q, sin_q, cos_k, sin_k


# ----------------------------------------------------------------------------
# Flash-style GQA attention: grid (B, q_tiles, kv_tiles), online softmax,
# shared KV head sliced once per group, in-kernel causal mask, scratch sized
# to the query tile, per-head lane-aligned output stores.
# ----------------------------------------------------------------------------
def _attn_kernel(q_ref, k_ref, v_ref, o_ref, m_ref, l_ref, acc_ref, *,
                 n_kv_heads, n_rep, head_dim, tq, tkv, start_pos):
    qi = pl.program_id(1)
    kv = pl.program_id(2)

    @pl.when(kv == 0)
    def _init():
        m_ref[...] = jnp.full_like(m_ref, -1e30)
        l_ref[...] = jnp.zeros_like(l_ref)
        acc_ref[...] = jnp.zeros_like(acc_ref)

    q_start = start_pos + qi * tq
    kv_start = kv * tkv

    # Skip kv tiles that are entirely in the causal future of this q tile.
    @pl.when(kv_start <= q_start + (tq - 1))
    def _compute():
        q_pos = q_start + jax.lax.broadcasted_iota(jnp.int32, (tq, tkv), 0)
        kv_pos = kv_start + jax.lax.broadcasted_iota(jnp.int32, (tq, tkv), 1)
        causal_ok = kv_pos <= q_pos
        neg = jnp.float32(-1e30)

        for g in range(n_kv_heads):                       # slice shared K/V once
            k = k_ref[0, :, g * head_dim:(g + 1) * head_dim]     # (tkv, hd)
            v = v_ref[0, :, g * head_dim:(g + 1) * head_dim]     # (tkv, hd)
            for r in range(n_rep):                         # reuse for the group's q heads
                h = g * n_rep + r
                q = q_ref[0, :, h * head_dim:(h + 1) * head_dim]  # (tq, hd), pre-scaled
                s = jax.lax.dot_general(q, k, (((1,), (1,)), ((), ())),
                                        preferred_element_type=jnp.float32)
                s = jnp.where(causal_ok, s, neg)           # (tq, tkv)

                m_prev = m_ref[h]                          # (tq, 1)
                m_new = jnp.maximum(m_prev, jnp.max(s, axis=-1, keepdims=True))
                alpha = jnp.exp(m_prev - m_new)
                p = jnp.exp(s - m_new)
                l_ref[h] = alpha * l_ref[h] + jnp.sum(p, axis=-1, keepdims=True)
                acc_ref[h] = alpha * acc_ref[h] + jnp.dot(
                    p.astype(v.dtype), v, preferred_element_type=jnp.float32)
                m_ref[h] = m_new

    @pl.when(kv == pl.num_programs(2) - 1)
    def _fin():
        for h in range(n_kv_heads * n_rep):
            inv = pl.reciprocal(l_ref[h], approx=True)
            o_ref[0, :, h * head_dim:(h + 1) * head_dim] = (
                acc_ref[h] * inv).astype(o_ref.dtype)


def pallas_attention(q, k_cache, v_cache, *, start_pos, seq_kv, n_heads,
                     n_kv_heads, head_dim, tq=256, tkv=512):
    """q: (B, S, n_heads*hd) bf16 (already scaled); k/v_cache: (B, Smax, n_kv_heads*hd)."""
    B, S, QD = q.shape
    _, Smax, KD = k_cache.shape
    n_rep = n_heads // n_kv_heads
    tq = _pick_tile(S, tq, 8)
    tkv = _pick_tile(Smax, tkv, 8)
    n_kv_tiles = pl.cdiv(seq_kv, tkv)
    grid = (B, S // tq, n_kv_tiles)

    kernel = functools.partial(
        _attn_kernel, n_kv_heads=n_kv_heads, n_rep=n_rep, head_dim=head_dim,
        tq=tq, tkv=tkv, start_pos=start_pos)

    return pl.pallas_call(
        kernel,
        out_shape=jax.ShapeDtypeStruct((B, S, QD), q.dtype),
        grid=grid,
        in_specs=[
            pl.BlockSpec((1, tq, QD), lambda b, qi, kv: (b, qi, 0)),
            pl.BlockSpec((1, tkv, KD), lambda b, qi, kv: (b, kv, 0)),
            pl.BlockSpec((1, tkv, KD), lambda b, qi, kv: (b, kv, 0)),
        ],
        out_specs=pl.BlockSpec((1, tq, QD), lambda b, qi, kv: (b, qi, 0)),
        scratch_shapes=[
            pltpu.VMEM((n_heads, tq, 1), jnp.float32),          # running max
            pltpu.VMEM((n_heads, tq, 1), jnp.float32),          # running denom
            pltpu.VMEM((n_heads, tq, head_dim), jnp.float32),   # output acc
        ],
        compiler_params=pltpu.CompilerParams(
            dimension_semantics=("parallel", "parallel", "arbitrary"),
            vmem_limit_bytes=_MATMUL_VMEM),
    )(q, k_cache, v_cache)


# ----------------------------------------------------------------------------
# Model glue: tokens (B, S) int32 -> logits (B, S, vocab) f32 + updated caches
# ----------------------------------------------------------------------------
def llama_forward(params, tokens, cache_k, cache_v, *, cfg, start_pos):
    """cache_k/v: (n_layers, B, max_seq_len, KVH*hd) bf16 (donated under jit)."""
    B, S = tokens.shape
    D, H, KVH, hd = cfg["dim"], cfg["n_heads"], cfg["n_kv_heads"], cfg["head_dim"]
    eps = cfg["norm_eps"]
    Skv = start_pos + S

    h = params["tok_embeddings"][tokens].astype(jnp.float32)       # (B, S, D)
    cos_q, sin_q, cos_k, sin_k = rope_tables(start_pos, S, hd, H, KVH)

    for li in range(cfg["n_layers"]):
        layer = params["layers"][li]
        x2d = h.reshape(B * S, D)                                  # f32 residual

        # ---- attention block ----
        xn = pallas_rmsnorm(x2d, layer["attention_norm"], eps)
        qkv = pallas_matmul(xn, layer["wqkv"], out_dtype=jnp.bfloat16)
        q, kk, vv = jnp.split(qkv, [H * hd, (H + KVH) * hd], axis=-1)

        q = pallas_rope(q.reshape(B, S, H * hd), cos_q, sin_q)
        kk = pallas_rope(kk.reshape(B, S, KVH * hd), cos_k, sin_k)
        vv = vv.reshape(B, S, KVH * hd)

        # KV cache update on the stacked cache (in-place with donated buffers)
        cache_k = jax.lax.dynamic_update_slice(
            cache_k, kk[None].astype(cache_k.dtype), (li, 0, start_pos, 0))
        cache_v = jax.lax.dynamic_update_slice(
            cache_v, vv[None].astype(cache_v.dtype), (li, 0, start_pos, 0))

        attn = pallas_attention(q, cache_k[li], cache_v[li],
                                start_pos=start_pos, seq_kv=Skv,
                                n_heads=H, n_kv_heads=KVH, head_dim=hd)
        # wo projection with fused residual add -> new f32 residual stream
        h2d = pallas_matmul(attn.reshape(B * S, H * hd), layer["wo"],
                            residual=x2d, out_dtype=jnp.float32)

        # ---- feed-forward block (fused w1/w3 + SwiGLU, fused residual on w2) ----
        fn = pallas_rmsnorm(h2d, layer["ffn_norm"], eps)
        gate = pallas_ffn_gate(fn, layer["w1"], layer["w3"])
        h2d = pallas_matmul(gate, layer["w2"], residual=h2d, out_dtype=jnp.float32)
        h = h2d.reshape(B, S, D)

    hn = pallas_rmsnorm(h.reshape(B * S, D), params["norm"], eps)
    logits = pallas_matmul(hn, params["output"], out_dtype=jnp.float32)
    return logits.reshape(B, S, cfg["vocab_size"]), cache_k, cache_v


# ----------------------------------------------------------------------------
# Deterministic synthetic parameters (bf16 matmul weights, f32 norms/embeddings)
# 1/sqrt(head_dim) is baked into wq so the attention kernel never rescales.
# ----------------------------------------------------------------------------
def init_params(key, cfg):
    D, H, KVH, hd = cfg["dim"], cfg["n_heads"], cfg["n_kv_heads"], cfg["head_dim"]
    F, V = cfg["ffn_dim"], cfg["vocab_size"]

    def nrm(k, shape, dtype=jnp.bfloat16):
        return (jax.random.normal(k, shape, dtype=jnp.float32) * 0.02).astype(dtype)

    keys = jax.random.split(key, 2 + 7 * cfg["n_layers"])
    params = {
        "tok_embeddings": nrm(keys[0], (V, D), jnp.float32),
        "output": nrm(keys[1], (D, V)),
        "norm": jnp.ones((D,), jnp.float32),
        "layers": [],
    }
    ki = 2
    inv_sqrt_hd = 1.0 / (hd ** 0.5)
    for _ in range(cfg["n_layers"]):
        wq = nrm(keys[ki + 0], (D, H * hd))
        wq = (wq.astype(jnp.float32) * inv_sqrt_hd).astype(jnp.bfloat16)
        wk = nrm(keys[ki + 1], (D, KVH * hd))
        wv = nrm(keys[ki + 2], (D, KVH * hd))
        layer = {
            "wqkv": jnp.concatenate([wq, wk, wv], axis=1),     # fused QKV weight
            "wo": nrm(keys[ki + 3], (H * hd, D)),
            "w1": nrm(keys[ki + 4], (D, F)),
            "w2": nrm(keys[ki + 5], (F, D)),
            "w3": nrm(keys[ki + 6], (D, F)),
            "attention_norm": jnp.ones((D,), jnp.float32),
            "ffn_norm": jnp.ones((D,), jnp.float32),
        }
        ki += 7
        params["layers"].append(layer)
    return params


if __name__ == "__main__":
    # small Llama config (dim // n_heads = head_dim, as in the module __init__)
    dim, n_heads = 128, 4
    ffn_hidden = int(2 * (4 * dim) / 3)
    multiple_of = 128
    ffn_hidden = multiple_of * ((ffn_hidden + multiple_of - 1) // multiple_of)
    cfg = {
        "vocab_size": 256,
        "dim": dim,
        "n_layers": 2,
        "n_heads": n_heads,
        "n_kv_heads": 2,                  # GQA like llama2-70b
        "head_dim": dim // n_heads,
        "ffn_dim": ffn_hidden,
        "max_seq_len": 16,
        "norm_eps": 1e-5,
    }

    key = jax.random.PRNGKey(0)
    pkey, tkey = jax.random.split(key)
    params = init_params(pkey, cfg)

    batch, seq, start_pos = 2, 8, 0
    tokens = jax.random.randint(tkey, (batch, seq), 0, cfg["vocab_size"],
                                dtype=jnp.int32)
    kv_dim = cfg["n_kv_heads"] * cfg["head_dim"]
    cache_k = jnp.zeros((cfg["n_layers"], batch, cfg["max_seq_len"], kv_dim),
                        jnp.bfloat16)
    cache_v = jnp.zeros_like(cache_k)

    forward = jax.jit(
        functools.partial(llama_forward, cfg=cfg, start_pos=start_pos),
        donate_argnums=(2, 3))

    logits, cache_k, cache_v = forward(params, tokens, cache_k, cache_v)
    logits = jax.block_until_ready(logits)
    assert logits.shape == (batch, seq, cfg["vocab_size"])
    assert bool(jnp.all(jnp.isfinite(logits)))
    print("KERNEL_OK")
</pallas_src>

<mosaic_0001>
module attributes {stable_mosaic.version = 11 : i64} {
  func.func @_matmul_kernel(%arg0: i32, %arg1: i32, %arg2: i32, %arg3: memref<16x128xbf16, #tpu.memory_space<vmem>>, %arg4: memref<128x256xbf16, #tpu.memory_space<vmem>>, %arg5: memref<16x256xbf16, #tpu.memory_space<vmem>>, %arg6: memref<16x256xf32, #tpu.memory_space<vmem>>) attributes {dimension_semantics = [#tpu.dimension_semantics<parallel>, #tpu.dimension_semantics<parallel>, #tpu.dimension_semantics<arbitrary>], iteration_bounds = array<i64: 1, 1, 1>, scalar_prefetch = 0 : i64, scratch_operands = 1 : i64, tpu.core_type = #tpu.core_type<tc>, window_params = [{transform_indices = @transform_0, window_bounds = array<i64: 16, 128>}, {transform_indices = @transform_1, window_bounds = array<i64: 128, 256>}, {transform_indices = @transform_2, window_bounds = array<i64: 16, 256>}]} {
    %c0_i32 = arith.constant 0 : i32
    %0 = arith.cmpi eq, %arg2, %c0_i32 : i32
    %1 = arith.extui %0 : i1 to i32
    %c0_i32_0 = arith.constant 0 : i32
    %2 = arith.cmpi ne, %1, %c0_i32_0 : i32
    scf.if %2 {
      %cst_10 = arith.constant 0.000000e+00 : f32
      %12 = vector.broadcast %cst_10 : f32 to vector<16x256xf32>
      %c0_11 = arith.constant 0 : index
      %c0_12 = arith.constant 0 : index
      %13 = vector.load %arg6[%c0_11, %c0_12] : memref<16x256xf32, #tpu.memory_space<vmem>>, vector<16x256xf32>
      tpu.vector_store %arg6[%c0_11, %c0_12], %12 {strides = array<i32>} : memref<16x256xf32, #tpu.memory_space<vmem>>, vector<16x256xf32>,
    } else {
    }
    %c0 = arith.constant 0 : index
    %c0_1 = arith.constant 0 : index
    %3 = vector.load %arg6[%c0, %c0_1] : memref<16x256xf32, #tpu.memory_space<vmem>>, vector<16x256xf32>
    %c0_2 = arith.constant 0 : index
    %c0_3 = arith.constant 0 : index
    %4 = vector.load %arg3[%c0_2, %c0_3] : memref<16x128xbf16, #tpu.memory_space<vmem>>, vector<16x128xbf16>
    %c0_4 = arith.constant 0 : index
    %c0_5 = arith.constant 0 : index
    %5 = vector.load %arg4[%c0_4, %c0_5] : memref<128x256xbf16, #tpu.memory_space<vmem>>, vector<128x256xbf16>
    %cst = arith.constant dense<0.000000e+00> : vector<16x256xf32>
    %6 = tpu.matmul %4, %5, %cst {dimension_numbers = #tpu.dot_dimension_numbers<[1], [0], [0], [1], [0, 0, 1, 1], [], []>} : vector<16x128xbf16>, vector<128x256xbf16>, vector<16x256xf32> -> vector<16x256xf32>
    %7 = arith.addf %3, %6 : vector<16x256xf32>
    %c0_6 = arith.constant 0 : index
    %c0_7 = arith.constant 0 : index
    %8 = vector.load %arg6[%c0_6, %c0_7] : memref<16x256xf32, #tpu.memory_space<vmem>>, vector<16x256xf32>
    tpu.vector_store %arg6[%c0_6, %c0_7], %7 {strides = array<i32>} : memref<16x256xf32, #tpu.memory_space<vmem>>, vector<16x256xf32>,
    %c0_i32_8 = arith.constant 0 : i32
    %9 = arith.cmpi eq, %arg2, %c0_i32_8 : i32
    %10 = arith.extui %9 : i1 to i32
    %c0_i32_9 = arith.constant 0 : i32
    %11 = arith.cmpi ne, %10, %c0_i32_9 : i32
    scf.if %11 {
      %c0_10 = arith.constant 0 : index
      %c0_11 = arith.constant 0 : index
      %12 = vector.load %arg6[%c0_10, %c0_11] : memref<16x256xf32, #tpu.memory_space<vmem>>, vector<16x256xf32>
      %13 = arith.truncf %12 : vector<16x256xf32> to vector<16x256xbf16>
      %c0_12 = arith.constant 0 : index
      %c0_13 = arith.constant 0 : index
      %14 = vector.load %arg5[%c0_12, %c0_13] : memref<16x256xbf16, #tpu.memory_space<vmem>>, vector<16x256xbf16>
      tpu.vector_store %arg5[%c0_12, %c0_13], %13 {strides = array<i32>} : memref<16x256xbf16, #tpu.memory_space<vmem>>, vector<16x256xbf16>,
    } else {
    }
    return
  }
  func.func @transform_0(%arg0: i32, %arg1: i32, %arg2: i32) -> (i32, i32) {
    %c0_i32 = arith.constant 0 : i32
    return %arg0, %arg2 : i32, i32
  }
  func.func @transform_1(%arg0: i32, %arg1: i32, %arg2: i32) -> (i32, i32) {
    %c0_i32 = arith.constant 0 : i32
    return %arg2, %arg1 : i32, i32
  }
  func.func @transform_2(%arg0: i32, %arg1: i32, %arg2: i32) -> (i32, i32) {
    %c0_i32 = arith.constant 0 : i32
    return %arg0, %arg1 : i32, i32
  }
}

module attributes {stable_mosaic.version = 11 : i64} {
  func.func @_rmsnorm_kernel(%arg0: i32, %arg1: memref<16x128xf32, #tpu.memory_space<vmem>>, %arg2: memref<1x128xf32, #tpu.memory_space<vmem>>, %arg3: memref<16x128xbf16, #tpu.memory_space<vmem>>) attributes {dimension_semantics = [#tpu.dimension_semantics<parallel>], iteration_bounds = array<i64: 1>, scalar_prefetch = 0 : i64, scratch_operands = 0 : i64, tpu.core_type = #tpu.core_type<tc>, window_params = [{transform_indices = @transform_0, window_bounds = array<i64: 16, 128>}, {pipeline_mode = #tpu.pipeline_mode<synchronous>, transform_indices = @transform_1, window_bounds = array<i64: 1, 128>}, {transform_indices = @transform_2, window_bounds = array<i64: 16, 128>}]} {
    %c0 = arith.constant 0 : index
    %c0_0 = arith.constant 0 : index
    %0 = vector.load %arg1[%c0, %c0_0] : memref<16x128xf32, #tpu.memory_space<vmem>>, vector<16x128xf32>
    %1 = arith.mulf %0, %0 : vector<16x128xf32>
    %cst = arith.constant dense<0.000000e+00> : vector<16xf32>
    %2 = vector.multi_reduction <add>, %1, %cst [1] : vector<16x128xf32> to vector<16xf32>
    %3 = vector.shape_cast %2 : vector<16xf32> to vector<16x1xf32>
    %cst_1 = arith.constant 1.280000e+02 : f32
    %4 = vector.broadcast %cst_1 : f32 to vector<16x1xf32>
    %5 = arith.divf %3, %4 : vector<16x1xf32>
    %cst_2 = arith.constant 9.99999974E-6 : f32
    %6 = vector.broadcast %cst_2 : f32 to vector<16x1xf32>
    %7 = arith.addf %5, %6 : vector<16x1xf32>
    %8 = math.rsqrt %7 : vector<16x1xf32>
    %9 = vector.broadcast %8 : vector<16x1xf32> to vector<16x128xf32>
    %10 = arith.mulf %0, %9 : vector<16x128xf32>
    %c0_3 = arith.constant 0 : index
    %c0_4 = arith.constant 0 : index
    %11 = vector.load %arg2[%c0_3, %c0_4] : memref<1x128xf32, #tpu.memory_space<vmem>>, vector<1x128xf32>
    %12 = vector.broadcast %11 : vector<1x128xf32> to vector<16x128xf32>
    %13 = arith.mulf %10, %12 : vector<16x128xf32>
    %14 = arith.truncf %13 : vector<16x128xf32> to vector<16x128xbf16>
    %c0_5 = arith.constant 0 : index
    %c0_6 = arith.constant 0 : index
    %15 = vector.load %arg3[%c0_5, %c0_6] : memref<16x128xbf16, #tpu.memory_space<vmem>>, vector<16x128xbf16>
    tpu.vector_store %arg3[%c0_5, %c0_6], %14 {strides = array<i32>} : memref<16x128xbf16, #tpu.memory_space<vmem>>, vector<16x128xbf16>,
    return
  }
  func.func @transform_0(%arg0: i32) -> (i32, i32) {
    %c0_i32 = arith.constant 0 : i32
    %c0_i32_0 = arith.constant 0 : i32
    return %arg0, %c0_i32 : i32, i32
  }
  func.func @transform_1(%arg0: i32) -> (i32, i32) {
    %c0_i32 = arith.constant 0 : i32
    %c0_i32_0 = arith.constant 0 : i32
    %c0_i32_1 = arith.constant 0 : i32
    return %c0_i32, %c0_i32_0 : i32, i32
  }
  func.func @transform_2(%arg0: i32) -> (i32, i32) {
    %c0_i32 = arith.constant 0 : i32
    %c0_i32_0 = arith.constant 0 : i32
    return %arg0, %c0_i32 : i32, i32
  }
}

module attributes {stable_mosaic.version = 11 : i64} {
  func.func @_rope_kernel(%arg0: i32, %arg1: i32, %arg2: memref<1x8x128xbf16, #tpu.memory_space<vmem>>, %arg3: memref<8x128xf32, #tpu.memory_space<vmem>>, %arg4: memref<8x128xf32, #tpu.memory_space<vmem>>, %arg5: memref<1x8x128xbf16, #tpu.memory_space<vmem>>) attributes {dimension_semantics = [#tpu.dimension_semantics<parallel>, #tpu.dimension_semantics<parallel>], iteration_bounds = array<i64: 2, 1>, scalar_prefetch = 0 : i64, scratch_operands = 0 : i64, tpu.core_type = #tpu.core_type<tc>, window_params = [{transform_indices = @transform_0, window_bounds = array<i64: 1, 8, 128>}, {transform_indices = @transform_1, window_bounds = array<i64: 8, 128>}, {transform_indices = @transform_2, window_bounds = array<i64: 8, 128>}, {transform_indices = @transform_3, window_bounds = array<i64: 1, 8, 128>}]} {
    %c0 = arith.constant 0 : index
    %c0_0 = arith.constant 0 : index
    %c0_1 = arith.constant 0 : index
    %0 = vector.load %arg2[%c0, %c0_0, %c0_1] : memref<1x8x128xbf16, #tpu.memory_space<vmem>>, vector<1x8x128xbf16>
    %1 = vector.shape_cast %0 : vector<1x8x128xbf16> to vector<8x128xbf16>
    %2 = arith.extf %1 : vector<8x128xbf16> to vector<8x128xf32>
    %c127_i32 = arith.constant 127 : i32
    %3 = tpu.dynamic_rotate %2 by %c127_i32 dim 1 : vector<8x128xf32>, i32 -> vector<8x128xf32>
    %c1_i32 = arith.constant 1 : i32
    %4 = tpu.dynamic_rotate %2 by %c1_i32 dim 1 : vector<8x128xf32>, i32 -> vector<8x128xf32>
    %5 = tpu.iota {dimensions = array<i32: 1>} : vector<8x128xi32>
    %c2_i32 = arith.constant 2 : i32
    %c0_i32 = arith.constant 0 : i32
    %6 = arith.cmpi eq, %c2_i32, %c0_i32 : i32
    %c1_i32_2 = arith.constant 1 : i32
    %7 = arith.select %6, %c1_i32_2, %c2_i32 : i32
    %8 = vector.broadcast %7 : i32 to vector<8x128xi32>
    %9 = arith.remsi %5, %8 : vector<8x128xi32>
    %c0_i32_3 = arith.constant 0 : i32
    %10 = vector.broadcast %c0_i32_3 : i32 to vector<8x128xi32>
    %11 = arith.cmpi ne, %9, %10 : vector<8x128xi32>
    %c0_i32_4 = arith.constant 0 : i32
    %12 = vector.broadcast %c0_i32_4 : i32 to vector<8x128xi32>
    %13 = arith.cmpi slt, %9, %12 : vector<8x128xi32>
    %c0_i32_5 = arith.constant 0 : i32
    %14 = arith.cmpi slt, %7, %c0_i32_5 : i32
    %15 = vector.broadcast %14 : i1 to vector<8x128xi1>
    %16 = vector.broadcast %15 : vector<8x128xi1> to vector<8x128xi1>
    %17 = arith.xori %13, %16 : vector<8x128xi1>
    %18 = arith.andi %17, %11 : vector<8x128xi1>
    %19 = vector.broadcast %7 : i32 to vector<8x128xi32>
    %20 = arith.addi %9, %19 : vector<8x128xi32>
    %21 = arith.select %18, %20, %9 : vector<8x128xi1>, vector<8x128xi32>
    %c0_i32_6 = arith.constant 0 : i32
    %22 = vector.broadcast %c0_i32_6 : i32 to vector<8x128xi32>
    %23 = arith.cmpi eq, %21, %22 : vector<8x128xi32>
    %24 = arith.select %23, %3, %4 : vector<8x128xi1>, vector<8x128xf32>
    %c0_7 = arith.constant 0 : index
    %c0_8 = arith.constant 0 : index
    %25 = vector.load %arg3[%c0_7, %c0_8] : memref<8x128xf32, #tpu.memory_space<vmem>>, vector<8x128xf32>
    %26 = arith.mulf %2, %25 : vector<8x128xf32>
    %c0_9 = arith.constant 0 : index
    %c0_10 = arith.constant 0 : index
    %27 = vector.load %arg4[%c0_9, %c0_10] : memref<8x128xf32, #tpu.memory_space<vmem>>, vector<8x128xf32>
    %28 = arith.mulf %24, %27 : vector<8x128xf32>
    %29 = arith.addf %26, %28 : vector<8x128xf32>
    %30 = arith.truncf %29 : vector<8x128xf32> to vector<8x128xbf16>
    %c0_11 = arith.constant 0 : index
    %c0_12 = arith.constant 0 : index
    %c0_13 = arith.constant 0 : index
    %31 = vector.load %arg5[%c0_11, %c0_12, %c0_13] : memref<1x8x128xbf16, #tpu.memory_space<vmem>>, vector<1x8x128xbf16>
    %32 = vector.shape_cast %31 : vector<1x8x128xbf16> to vector<8x128xbf16>
    %33 = vector.shape_cast %30 : vector<8x128xbf16> to vector<1x8x128xbf16>
    tpu.vector_store %arg5[%c0_11, %c0_12, %c0_13], %33 {strides = array<i32>} : memref<1x8x128xbf16, #tpu.memory_space<vmem>>, vector<1x8x128xbf16>,
    return
  }
  func.func @transform_0(%arg0: i32, %arg1: i32) -> (i32, i32, i32) {
    %c0_i32 = arith.constant 0 : i32
    %c0_i32_0 = arith.constant 0 : i32
    return %arg0, %arg1, %c0_i32 : i32, i32, i32
  }
  func.func @transform_1(%arg0: i32, %arg1: i32) -> (i32, i32) {
    %c0_i32 = arith.constant 0 : i32
    %c0_i32_0 = arith.constant 0 : i32
    return %arg1, %c0_i32 : i32, i32
  }
  func.func @transform_2(%arg0: i32, %arg1: i32) -> (i32, i32) {
    %c0_i32 = arith.constant 0 : i32
    %c0_i32_0 = arith.constant 0 : i32
    return %arg1, %c0_i32 : i32, i32
  }
  func.func @transform_3(%arg0: i32, %arg1: i32) -> (i32, i32, i32) {
    %c0_i32 = arith.constant 0 : i32
    %c0_i32_0 = arith.constant 0 : i32
    return %arg0, %arg1, %c0_i32 : i32, i32, i32
  }
}

module attributes {stable_mosaic.version = 11 : i64} {
  func.func @_rope_kernel(%arg0: i32, %arg1: i32, %arg2: memref<1x8x64xbf16, #tpu.memory_space<vmem>>, %arg3: memref<8x64xf32, #tpu.memory_space<vmem>>, %arg4: memref<8x64xf32, #tpu.memory_space<vmem>>, %arg5: memref<1x8x64xbf16, #tpu.memory_space<vmem>>) attributes {dimension_semantics = [#tpu.dimension_semantics<parallel>, #tpu.dimension_semantics<parallel>], iteration_bounds = array<i64: 2, 1>, scalar_prefetch = 0 : i64, scratch_operands = 0 : i64, tpu.core_type = #tpu.core_type<tc>, window_params = [{transform_indices = @transform_0, window_bounds = array<i64: 1, 8, 64>}, {transform_indices = @transform_1, window_bounds = array<i64: 8, 64>}, {transform_indices = @transform_2, window_bounds = array<i64: 8, 64>}, {transform_indices = @transform_3, window_bounds = array<i64: 1, 8, 64>}]} {
    %c0 = arith.constant 0 : index
    %c0_0 = arith.constant 0 : index
    %c0_1 = arith.constant 0 : index
    %0 = vector.load %arg2[%c0, %c0_0, %c0_1] : memref<1x8x64xbf16, #tpu.memory_space<vmem>>, vector<1x8x64xbf16>
    %1 = vector.shape_cast %0 : vector<1x8x64xbf16> to vector<8x64xbf16>
    %2 = arith.extf %1 : vector<8x64xbf16> to vector<8x64xf32>
    %c63_i32 = arith.constant 63 : i32
    %3 = tpu.dynamic_rotate %2 by %c63_i32 dim 1 : vector<8x64xf32>, i32 -> vector<8x64xf32>
    %c1_i32 = arith.constant 1 : i32
    %4 = tpu.dynamic_rotate %2 by %c1_i32 dim 1 : vector<8x64xf32>, i32 -> vector<8x64xf32>
    %5 = tpu.iota {dimensions = array<i32: 1>} : vector<8x64xi32>
    %c2_i32 = arith.constant 2 : i32
    %c0_i32 = arith.constant 0 : i32
    %6 = arith.cmpi eq, %c2_i32, %c0_i32 : i32
    %c1_i32_2 = arith.constant 1 : i32
    %7 = arith.select %6, %c1_i32_2, %c2_i32 : i32
    %8 = vector.broadcast %7 : i32 to vector<8x64xi32>
    %9 = arith.remsi %5, %8 : vector<8x64xi32>
    %c0_i32_3 = arith.constant 0 : i32
    %10 = vector.broadcast %c0_i32_3 : i32 to vector<8x64xi32>
    %11 = arith.cmpi ne, %9, %10 : vector<8x64xi32>
    %c0_i32_4 = arith.constant 0 : i32
    %12 = vector.broadcast %c0_i32_4 : i32 to vector<8x64xi32>
    %13 = arith.cmpi slt, %9, %12 : vector<8x64xi32>
    %c0_i32_5 = arith.constant 0 : i32
    %14 = arith.cmpi slt, %7, %c0_i32_5 : i32
    %15 = vector.broadcast %14 : i1 to vector<8x64xi1>
    %16 = vector.broadcast %15 : vector<8x64xi1> to vector<8x64xi1>
    %17 = arith.xori %13, %16 : vector<8x64xi1>
    %18 = arith.andi %17, %11 : vector<8x64xi1>
    %19 = vector.broadcast %7 : i32 to vector<8x64xi32>
    %20 = arith.addi %9, %19 : vector<8x64xi32>
    %21 = arith.select %18, %20, %9 : vector<8x64xi1>, vector<8x64xi32>
    %c0_i32_6 = arith.constant 0 : i32
    %22 = vector.broadcast %c0_i32_6 : i32 to vector<8x64xi32>
    %23 = arith.cmpi eq, %21, %22 : vector<8x64xi32>
    %24 = arith.select %23, %3, %4 : vector<8x64xi1>, vector<8x64xf32>
    %c0_7 = arith.constant 0 : index
    %c0_8 = arith.constant 0 : index
    %25 = vector.load %arg3[%c0_7, %c0_8] : memref<8x64xf32, #tpu.memory_space<vmem>>, vector<8x64xf32>
    %26 = arith.mulf %2, %25 : vector<8x64xf32>
    %c0_9 = arith.constant 0 : index
    %c0_10 = arith.constant 0 : index
    %27 = vector.load %arg4[%c0_9, %c0_10] : memref<8x64xf32, #tpu.memory_space<vmem>>, vector<8x64xf32>
    %28 = arith.mulf %24, %27 : vector<8x64xf32>
    %29 = arith.addf %26, %28 : vector<8x64xf32>
    %30 = arith.truncf %29 : vector<8x64xf32> to vector<8x64xbf16>
    %c0_11 = arith.constant 0 : index
    %c0_12 = arith.constant 0 : index
    %c0_13 = arith.constant 0 : index
    %31 = vector.load %arg5[%c0_11, %c0_12, %c0_13] : memref<1x8x64xbf16, #tpu.memory_space<vmem>>, vector<1x8x64xbf16>
    %32 = vector.shape_cast %31 : vector<1x8x64xbf16> to vector<8x64xbf16>
    %33 = vector.shape_cast %30 : vector<8x64xbf16> to vector<1x8x64xbf16>
    tpu.vector_store %arg5[%c0_11, %c0_12, %c0_13], %33 {strides = array<i32>} : memref<1x8x64xbf16, #tpu.memory_space<vmem>>, vector<1x8x64xbf16>,
    return
  }
  func.func @transform_0(%arg0: i32, %arg1: i32) -> (i32, i32, i32) {
    %c0_i32 = arith.constant 0 : i32
    %c0_i32_0 = arith.constant 0 : i32
    return %arg0, %arg1, %c0_i32 : i32, i32, i32
  }
  func.func @transform_1(%arg0: i32, %arg1: i32) -> (i32, i32) {
    %c0_i32 = arith.constant 0 : i32
    %c0_i32_0 = arith.constant 0 : i32
    return %arg1, %c0_i32 : i32, i32
  }
  func.func @transform_2(%arg0: i32, %arg1: i32) -> (i32, i32) {
    %c0_i32 = arith.constant 0 : i32
    %c0_i32_0 = arith.constant 0 : i32
    return %arg1, %c0_i32 : i32, i32
  }
  func.func @transform_3(%arg0: i32, %arg1: i32) -> (i32, i32, i32) {
    %c0_i32 = arith.constant 0 : i32
    %c0_i32_0 = arith.constant 0 : i32
    return %arg0, %arg1, %c0_i32 : i32, i32, i32
  }
}

module attributes {stable_mosaic.version = 11 : i64} {
  func.func @_matmul_res_kernel(%arg0: i32, %arg1: i32, %arg2: i32, %arg3: memref<16x128xbf16, #tpu.memory_space<vmem>>, %arg4: memref<128x128xbf16, #tpu.memory_space<vmem>>, %arg5: memref<16x128xf32, #tpu.memory_space<vmem>>, %arg6: memref<16x128xf32, #tpu.memory_space<vmem>>, %arg7: memref<16x128xf32, #tpu.memory_space<vmem>>) attributes {dimension_semantics = [#tpu.dimension_semantics<parallel>, #tpu.dimension_semantics<parallel>, #tpu.dimension_semantics<arbitrary>], iteration_bounds = array<i64: 1, 1, 1>, scalar_prefetch = 0 : i64, scratch_operands = 1 : i64, tpu.core_type = #tpu.core_type<tc>, window_params = [{transform_indices = @transform_0, window_bounds = array<i64: 16, 128>}, {transform_indices = @transform_1, window_bounds = array<i64: 128, 128>}, {transform_indices = @transform_2, window_bounds = array<i64: 16, 128>}, {transform_indices = @transform_3, window_bounds = array<i64: 16, 128>}]} {
    %c0_i32 = arith.constant 0 : i32
    %0 = arith.cmpi eq, %arg2, %c0_i32 : i32
    %1 = arith.extui %0 : i1 to i32
    %c0_i32_0 = arith.constant 0 : i32
    %2 = arith.cmpi ne, %1, %c0_i32_0 : i32
    scf.if %2 {
      %cst_10 = arith.constant 0.000000e+00 : f32
      %12 = vector.broadcast %cst_10 : f32 to vector<16x128xf32>
      %c0_11 = arith.constant 0 : index
      %c0_12 = arith.constant 0 : index
      %13 = vector.load %arg7[%c0_11, %c0_12] : memref<16x128xf32, #tpu.memory_space<vmem>>, vector<16x128xf32>
      tpu.vector_store %arg7[%c0_11, %c0_12], %12 {strides = array<i32>} : memref<16x128xf32, #tpu.memory_space<vmem>>, vector<16x128xf32>,
    } else {
    }
    %c0 = arith.constant 0 : index
    %c0_1 = arith.constant 0 : index
    %3 = vector.load %arg7[%c0, %c0_1] : memref<16x128xf32, #tpu.memory_space<vmem>>, vector<16x128xf32>
    %c0_2 = arith.constant 0 : index
    %c0_3 = arith.constant 0 : index
    %4 = vector.load %arg3[%c0_2, %c0_3] : memref<16x128xbf16, #tpu.memory_space<vmem>>, vector<16x128xbf16>
    %c0_4 = arith.constant 0 : index
    %c0_5 = arith.constant 0 : index
    %5 = vector.load %arg4[%c0_4, %c0_5] : memref<128x128xbf16, #tpu.memory_space<vmem>>, vector<128x128xbf16>
    %cst = arith.constant dense<0.000000e+00> : vector<16x128xf32>
    %6 = tpu.matmul %4, %5, %cst {dimension_numbers = #tpu.dot_dimension_numbers<[1], [0], [0], [1], [0, 0, 1, 1], [], []>} : vector<16x128xbf16>, vector<128x128xbf16>, vector<16x128xf32> -> vector<16x128xf32>
    %7 = arith.addf %3, %6 : vector<16x128xf32>
    %c0_6 = arith.constant 0 : index
    %c0_7 = arith.constant 0 : index
    %8 = vector.load %arg7[%c0_6, %c0_7] : memref<16x128xf32, #tpu.memory_space<vmem>>, vector<16x128xf32>
    tpu.vector_store %arg7[%c0_6, %c0_7], %7 {strides = array<i32>} : memref<16x128xf32, #tpu.memory_space<vmem>>, vector<16x128xf32>,
    %c0_i32_8 = arith.constant 0 : i32
    %9 = arith.cmpi eq, %arg2, %c0_i32_8 : i32
    %10 = arith.extui %9 : i1 to i32
    %c0_i32_9 = arith.constant 0 : i32
    %11 = arith.cmpi ne, %10, %c0_i32_9 : i32
    scf.if %11 {
      %c0_10 = arith.constant 0 : index
      %c0_11 = arith.constant 0 : index
      %12 = vector.load %arg7[%c0_10, %c0_11] : memref<16x128xf32, #tpu.memory_space<vmem>>, vector<16x128xf32>
      %c0_12 = arith.constant 0 : index
      %c0_13 = arith.constant 0 : index
      %13 = vector.load %arg5[%c0_12, %c0_13] : memref<16x128xf32, #tpu.memory_space<vmem>>, vector<16x128xf32>
      %14 = arith.addf %12, %13 : vector<16x128xf32>
      %c0_14 = arith.constant 0 : index
      %c0_15 = arith.constant 0 : index
      %15 = vector.load %arg6[%c0_14, %c0_15] : memref<16x128xf32, #tpu.memory_space<vmem>>, vector<16x128xf32>
      tpu.vector_store %arg6[%c0_14, %c0_15], %14 {strides = array<i32>} : memref<16x128xf32, #tpu.memory_space<vmem>>, vector<16x128xf32>,
    } else {
    }
    return
  }
  func.func @transform_0(%arg0: i32, %arg1: i32, %arg2: i32) -> (i32, i32) {
    %c0_i32 = arith.constant 0 : i32
    return %arg0, %arg2 : i32, i32
  }
  func.func @transform_1(%arg0: i32, %arg1: i32, %arg2: i32) -> (i32, i32) {
    %c0_i32 = arith.constant 0 : i32
    return %arg2, %arg1 : i32, i32
  }
  func.func @transform_2(%arg0: i32, %arg1: i32, %arg2: i32) -> (i32, i32) {
    %c0_i32 = arith.constant 0 : i32
    return %arg0, %arg1 : i32, i32
  }
  func.func @transform_3(%arg0: i32, %arg1: i32, %arg2: i32) -> (i32, i32) {
    %c0_i32 = arith.constant 0 : i32
    return %arg0, %arg1 : i32, i32
  }
}

module attributes {stable_mosaic.version = 11 : i64} {
  func.func @_attn_kernel(%arg0: i32, %arg1: i32, %arg2: i32, %arg3: memref<1x8x128xbf16, #tpu.memory_space<vmem>>, %arg4: memref<1x16x64xbf16, #tpu.memory_space<vmem>>, %arg5: memref<1x16x64xbf16, #tpu.memory_space<vmem>>, %arg6: memref<1x8x128xbf16, #tpu.memory_space<vmem>>, %arg7: memref<4x8x1xf32, #tpu.memory_space<vmem>>, %arg8: memref<4x8x1xf32, #tpu.memory_space<vmem>>, %arg9: memref<4x8x32xf32, #tpu.memory_space<vmem>>) attributes {dimension_semantics = [#tpu.dimension_semantics<parallel>, #tpu.dimension_semantics<parallel>, #tpu.dimension_semantics<arbitrary>], iteration_bounds = array<i64: 2, 1, 1>, scalar_prefetch = 0 : i64, scratch_operands = 3 : i64, tpu.core_type = #tpu.core_type<tc>, window_params = [{transform_indices = @transform_0, window_bounds = array<i64: 1, 8, 128>}, {transform_indices = @transform_1, window_bounds = array<i64: 1, 16, 64>}, {transform_indices = @transform_2, window_bounds = array<i64: 1, 16, 64>}, {transform_indices = @transform_3, window_bounds = array<i64: 1, 8, 128>}]} {
    %c0_i32 = arith.constant 0 : i32
    %0 = arith.cmpi eq, %arg2, %c0_i32 : i32
    %1 = arith.extui %0 : i1 to i32
    %c0_i32_0 = arith.constant 0 : i32
    %2 = arith.cmpi ne, %1, %c0_i32_0 : i32
    scf.if %2 {
      %cst = arith.constant -1.000000e+30 : f32
      %13 = vector.broadcast %cst : f32 to vector<4x8x1xf32>
      %c0 = arith.constant 0 : index
      %c0_5 = arith.constant 0 : index
      %c0_6 = arith.constant 0 : index
      %14 = vector.load %arg7[%c0, %c0_5, %c0_6] : memref<4x8x1xf32, #tpu.memory_space<vmem>>, vector<4x8x1xf32>
      tpu.vector_store %arg7[%c0, %c0_5, %c0_6], %13 {strides = array<i32>} : memref<4x8x1xf32, #tpu.memory_space<vmem>>, vector<4x8x1xf32>,
      %cst_7 = arith.constant 0.000000e+00 : f32
      %15 = vector.broadcast %cst_7 : f32 to vector<4x8x1xf32>
      %c0_8 = arith.constant 0 : index
      %c0_9 = arith.constant 0 : index
      %c0_10 = arith.constant 0 : index
      %16 = vector.load %arg8[%c0_8, %c0_9, %c0_10] : memref<4x8x1xf32, #tpu.memory_space<vmem>>, vector<4x8x1xf32>
      tpu.vector_store %arg8[%c0_8, %c0_9, %c0_10], %15 {strides = array<i32>} : memref<4x8x1xf32, #tpu.memory_space<vmem>>, vector<4x8x1xf32>,
      %cst_11 = arith.constant 0.000000e+00 : f32
      %17 = vector.broadcast %cst_11 : f32 to vector<4x8x32xf32>
      %c0_12 = arith.constant 0 : index
      %c0_13 = arith.constant 0 : index
      %c0_14 = arith.constant 0 : index
      %18 = vector.load %arg9[%c0_12, %c0_13, %c0_14] : memref<4x8x32xf32, #tpu.memory_space<vmem>>, vector<4x8x32xf32>
      tpu.vector_store %arg9[%c0_12, %c0_13, %c0_14], %17 {strides = array<i32>} : memref<4x8x32xf32, #tpu.memory_space<vmem>>, vector<4x8x32xf32>,
    } else {
    }
    %c8_i32 = arith.constant 8 : i32
    %3 = arith.muli %arg1, %c8_i32 : i32
    %c0_i32_1 = arith.constant 0 : i32
    %4 = arith.addi %c0_i32_1, %3 : i32
    %c16_i32 = arith.constant 16 : i32
    %5 = arith.muli %arg2, %c16_i32 : i32
    %c7_i32 = arith.constant 7 : i32
    %6 = arith.addi %4, %c7_i32 : i32
    %7 = arith.cmpi sle, %5, %6 : i32
    %8 = arith.extui %7 : i1 to i32
    %c0_i32_2 = arith.constant 0 : i32
    %9 = arith.cmpi ne, %8, %c0_i32_2 : i32
    scf.if %9 {
      %13 = tpu.iota {dimensions = array<i32: 0>} : vector<8x16xi32>
      %14 = vector.broadcast %4 : i32 to vector<8x16xi32>
      %15 = arith.addi %14, %13 : vector<8x16xi32>
      %16 = tpu.iota {dimensions = array<i32: 1>} : vector<8x16xi32>
      %17 = vector.broadcast %5 : i32 to vector<8x16xi32>
      %18 = arith.addi %17, %16 : vector<8x16xi32>
      %19 = arith.cmpi sle, %18, %15 : vector<8x16xi32>
      %c0 = arith.constant 0 : index
      %c0_5 = arith.constant 0 : index
      %c0_6 = arith.constant 0 : index
      %20 = vector.load %arg4[%c0, %c0_5, %c0_6] : memref<1x16x64xbf16, #tpu.memory_space<vmem>>, vector<1x16x32xbf16>
      %21 = vector.shape_cast %20 : vector<1x16x32xbf16> to vector<16x32xbf16>
      %c0_7 = arith.constant 0 : index
      %c0_8 = arith.constant 0 : index
      %c0_9 = arith.constant 0 : index
      %22 = vector.load %arg5[%c0_7, %c0_8, %c0_9] : memref<1x16x64xbf16, #tpu.memory_space<vmem>>, vector<1x16x32xbf16>
      %23 = vector.shape_cast %22 : vector<1x16x32xbf16> to vector<16x32xbf16>
      %c0_10 = arith.constant 0 : index
      %c0_11 = arith.constant 0 : index
      %c0_12 = arith.constant 0 : index
      %24 = vector.load %arg3[%c0_10, %c0_11, %c0_12] : memref<1x8x128xbf16, #tpu.memory_space<vmem>>, vector<1x8x32xbf16>
      %25 = vector.shape_cast %24 : vector<1x8x32xbf16> to vector<8x32xbf16>
      %cst = arith.constant dense<0.000000e+00> : vector<8x16xf32>
      %26 = tpu.matmul %25, %21, %cst {dimension_numbers = #tpu.dot_dimension_numbers<[1], [1], [0], [0], [0, 0, 1, 0], [], []>} : vector<8x32xbf16>, vector<16x32xbf16>, vector<8x16xf32> -> vector<8x16xf32>
      %cst_13 = arith.constant -1.000000e+30 : f32
      %27 = vector.broadcast %cst_13 : f32 to vector<8x16xf32>
      %28 = arith.select %19, %26, %27 : vector<8x16xi1>, vector<8x16xf32>
      %c0_14 = arith.constant 0 : index
      %c0_15 = arith.constant 0 : index
      %c0_16 = arith.constant 0 : index
      %29 = vector.load %arg7[%c0_14, %c0_15, %c0_16] : memref<4x8x1xf32, #tpu.memory_space<vmem>>, vector<1x8x1xf32>
      %30 = vector.shape_cast %29 : vector<1x8x1xf32> to vector<8x1xf32>
      %cst_17 = arith.constant dense<0xFF800000> : vector<8xf32>
      %31 = vector.multi_reduction <maximumf>, %28, %cst_17 [1] : vector<8x16xf32> to vector<8xf32>
      %32 = vector.shape_cast %31 : vector<8xf32> to vector<8x1xf32>
      %33 = arith.maximumf %30, %32 : vector<8x1xf32>
      %34 = arith.subf %30, %33 : vector<8x1xf32>
      %35 = math.exp %34 : vector<8x1xf32>
      %36 = vector.broadcast %33 : vector<8x1xf32> to vector<8x16xf32>
      %37 = arith.subf %28, %36 : vector<8x16xf32>
      %38 = math.exp %37 : vector<8x16xf32>
      %c0_18 = arith.constant 0 : index
      %c0_19 = arith.constant 0 : index
      %c0_20 = arith.constant 0 : index
      %39 = vector.load %arg8[%c0_18, %c0_19, %c0_20] : memref<4x8x1xf32, #tpu.memory_space<vmem>>, vector<1x8x1xf32>
      %40 = vector.shape_cast %39 : vector<1x8x1xf32> to vector<8x1xf32>
      %41 = arith.mulf %35, %40 : vector<8x1xf32>
      %cst_21 = arith.constant dense<0.000000e+00> : vector<8xf32>
      %42 = vector.multi_reduction <add>, %38, %cst_21 [1] : vector<8x16xf32> to vector<8xf32>
      %43 = vector.shape_cast %42 : vector<8xf32> to vector<8x1xf32>
      %44 = arith.addf %41, %43 : vector<8x1xf32>
      %c0_22 = arith.constant 0 : index
      %c0_23 = arith.constant 0 : index
      %c0_24 = arith.constant 0 : index
      %45 = vector.load %arg8[%c0_22, %c0_23, %c0_24] : memref<4x8x1xf32, #tpu.memory_space<vmem>>, vector<1x8x1xf32>
      %46 = vector.shape_cast %45 : vector<1x8x1xf32> to vector<8x1xf32>
      %47 = vector.shape_cast %44 : vector<8x1xf32> to vector<1x8x1xf32>
      tpu.vector_store %arg8[%c0_22, %c0_23, %c0_24], %47 {strides = array<i32>} : memref<4x8x1xf32, #tpu.memory_space<vmem>>, vector<1x8x1xf32>,
      %c0_25 = arith.constant 0 : index
      %c0_26 = arith.constant 0 : index
      %c0_27 = arith.constant 0 : index
      %48 = vector.load %arg9[%c0_25, %c0_26, %c0_27] : memref<4x8x32xf32, #tpu.memory_space<vmem>>, vector<1x8x32xf32>
      %49 = vector.shape_cast %48 : vector<1x8x32xf32> to vector<8x32xf32>
      %50 = vector.broadcast %35 : vector<8x1xf32> to vector<8x32xf32>
      %51 = arith.mulf %50, %49 : vector<8x32xf32>
      %52 = arith.truncf %38 : vector<8x16xf32> to vector<8x16xbf16>
      %cst_28 = arith.constant dense<0.000000e+00> : vector<8x32xf32>
      %53 = tpu.matmul %52, %23, %cst_28 {dimension_numbers = #tpu.dot_dimension_numbers<[1], [0], [0], [1], [0, 0, 1, 1], [], []>} : vector<8x16xbf16>, vector<16x32xbf16>, vector<8x32xf32> -> vector<8x32xf32>
      %54 = arith.addf %51, %53 : vector<8x32xf32>
      %c0_29 = arith.constant 0 : index
      %c0_30 = arith.constant 0 : index
      %c0_31 = arith.constant 0 : index
      %55 = vector.load %arg9[%c0_29, %c0_30, %c0_31] : memref<4x8x32xf32, #tpu.memory_space<vmem>>, vector<1x8x32xf32>
      %56 = vector.shape_cast %55 : vector<1x8x32xf32> to vector<8x32xf32>
      %57 = vector.shape_cast %54 : vector<8x32xf32> to vector<1x8x32xf32>
      tpu.vector_store %arg9[%c0_29, %c0_30, %c0_31], %57 {strides = array<i32>} : memref<4x8x32xf32, #tpu.memory_space<vmem>>, vector<1x8x32xf32>,
      %c0_32 = arith.constant 0 : index
      %c0_33 = arith.constant 0 : index
      %c0_34 = arith.constant 0 : index
      %58 = vector.load %arg7[%c0_32, %c0_33, %c0_34] : memref<4x8x1xf32, #tpu.memory_space<vmem>>, vector<1x8x1xf32>
      %59 = vector.shape_cast %58 : vector<1x8x1xf32> to vector<8x1xf32>
      %60 = vector.shape_cast %33 : vector<8x1xf32> to vector<1x8x1xf32>
      tpu.vector_store %arg7[%c0_32, %c0_33, %c0_34], %60 {strides = array<i32>} : memref<4x8x1xf32, #tpu.memory_space<vmem>>, vector<1x8x1xf32>,
      %c0_35 = arith.constant 0 : index
      %c0_36 = arith.constant 0 : index
      %c32 = arith.constant 32 : index
      %61 = vector.load %arg3[%c0_35, %c0_36, %c32] : memref<1x8x128xbf16, #tpu.memory_space<vmem>>, vector<1x8x32xbf16>
      %62 = vector.shape_cast %61 : vector<1x8x32xbf16> to vector<8x32xbf16>
      %cst_37 = arith.constant dense<0.000000e+00> : vector<8x16xf32>
      %63 = tpu.matmul %62, %21, %cst_37 {dimension_numbers = #tpu.dot_dimension_numbers<[1], [1], [0], [0], [0, 0, 1, 0], [], []>} : vector<8x32xbf16>, vector<16x32xbf16>, vector<8x16xf32> -> vector<8x16xf32>
      %cst_38 = arith.constant -1.000000e+30 : f32
      %64 = vector.broadcast %cst_38 : f32 to vector<8x16xf32>
      %65 = arith.select %19, %63, %64 : vector<8x16xi1>, vector<8x16xf32>
      %c1 = arith.constant 1 : index
      %c0_39 = arith.constant 0 : index
      %c0_40 = arith.constant 0 : index
      %66 = vector.load %arg7[%c1, %c0_39, %c0_40] : memref<4x8x1xf32, #tpu.memory_space<vmem>>, vector<1x8x1xf32>
      %67 = vector.shape_cast %66 : vector<1x8x1xf32> to vector<8x1xf32>
      %cst_41 = arith.constant dense<0xFF800000> : vector<8xf32>
      %68 = vector.multi_reduction <maximumf>, %65, %cst_41 [1] : vector<8x16xf32> to vector<8xf32>
      %69 = vector.shape_cast %68 : vector<8xf32> to vector<8x1xf32>
      %70 = arith.maximumf %67, %69 : vector<8x1xf32>
      %71 = arith.subf %67, %70 : vector<8x1xf32>
      %72 = math.exp %71 : vector<8x1xf32>
      %73 = vector.broadcast %70 : vector<8x1xf32> to vector<8x16xf32>
      %74 = arith.subf %65, %73 : vector<8x16xf32>
      %75 = math.exp %74 : vector<8x16xf32>
      %c1_42 = arith.constant 1 : index
      %c0_43 = arith.constant 0 : index
      %c0_44 = arith.constant 0 : index
      %76 = vector.load %arg8[%c1_42, %c0_43, %c0_44] : memref<4x8x1xf32, #tpu.memory_space<vmem>>, vector<1x8x1xf32>
      %77 = vector.shape_cast %76 : vector<1x8x1xf32> to vector<8x1xf32>
      %78 = arith.mulf %72, %77 : vector<8x1xf32>
      %cst_45 = arith.constant dense<0.000000e+00> : vector<8xf32>
      %79 = vector.multi_reduction <add>, %75, %cst_45 [1] : vector<8x16xf32> to vector<8xf32>
      %80 = vector.shape_cast %79 : vector<8xf32> to vector<8x1xf32>
      %81 = arith.addf %78, %80 : vector<8x1xf32>
      %c1_46 = arith.constant 1 : index
      %c0_47 = arith.constant 0 : index
      %c0_48 = arith.constant 0 : index
      %82 = vector.load %arg8[%c1_46, %c0_47, %c0_48] : memref<4x8x1xf32, #tpu.memory_space<vmem>>, vector<1x8x1xf32>
      %83 = vector.shape_cast %82 : vector<1x8x1xf32> to vector<8x1xf32>
      %84 = vector.shape_cast %81 : vector<8x1xf32> to vector<1x8x1xf32>
      tpu.vector_store %arg8[%c1_46, %c0_47, %c0_48], %84 {strides = array<i32>} : memref<4x8x1xf32, #tpu.memory_space<vmem>>, vector<1x8x1xf32>,
      %c1_49 = arith.constant 1 : index
      %c0_50 = arith.constant 0 : index
      %c0_51 = arith.constant 0 : index
      %85 = vector.load %arg9[%c1_49, %c0_50, %c0_51] : memref<4x8x32xf32, #tpu.memory_space<vmem>>, vector<1x8x32xf32>
      %86 = vector.shape_cast %85 : vector<1x8x32xf32> to vector<8x32xf32>
      %87 = vector.broadcast %72 : vector<8x1xf32> to vector<8x32xf32>
      %88 = arith.mulf %87, %86 : vector<8x32xf32>
      %89 = arith.truncf %75 : vector<8x16xf32> to vector<8x16xbf16>
      %cst_52 = arith.constant dense<0.000000e+00> : vector<8x32xf32>
      %90 = tpu.matmul %89, %23, %cst_52 {dimension_numbers = #tpu.dot_dimension_numbers<[1], [0], [0], [1], [0, 0, 1, 1], [], []>} : vector<8x16xbf16>, vector<16x32xbf16>, vector<8x32xf32> -> vector<8x32xf32>
      %91 = arith.addf %88, %90 : vector<8x32xf32>
      %c1_53 = arith.constant 1 : index
      %c0_54 = arith.constant 0 : index
      %c0_55 = arith.constant 0 : index
      %92 = vector.load %arg9[%c1_53, %c0_54, %c0_55] : memref<4x8x32xf32, #tpu.memory_space<vmem>>, vector<1x8x32xf32>
      %93 = vector.shape_cast %92 : vector<1x8x32xf32> to vector<8x32xf32>
      %94 = vector.shape_cast %91 : vector<8x32xf32> to vector<1x8x32xf32>
      tpu.vector_store %arg9[%c1_53, %c0_54, %c0_55], %94 {strides = array<i32>} : memref<4x8x32xf32, #tpu.memory_space<vmem>>, vector<1x8x32xf32>,
      %c1_56 = arith.constant 1 : index
      %c0_57 = arith.constant 0 : index
      %c0_58 = arith.constant 0 : index
      %95 = vector.load %arg7[%c1_56, %c0_57, %c0_58] : memref<4x8x1xf32, #tpu.memory_space<vmem>>, vector<1x8x1xf32>
      %96 = vector.shape_cast %95 : vector<1x8x1xf32> to vector<8x1xf32>
      %97 = vector.shape_cast %70 : vector<8x1xf32> to vector<1x8x1xf32>
      tpu.vector_store %arg7[%c1_56, %c0_57, %c0_58], %97 {strides = array<i32>} : memref<4x8x1xf32, #tpu.memory_space<vmem>>, vector<1x8x1xf32>,
      %c0_59 = arith.constant 0 : index
      %c0_60 = arith.constant 0 : index
      %c32_61 = arith.constant 32 : index
      %98 = vector.load %arg4[%c0_59, %c0_60, %c32_61] : memref<1x16x64xbf16, #tpu.memory_space<vmem>>, vector<1x16x32xbf16>
      %99 = vector.shape_cast %98 : vector<1x16x32xbf16> to vector<16x32xbf16>
      %c0_62 = arith.constant 0 : index
      %c0_63 = arith.constant 0 : index
      %c32_64 = arith.constant 32 : index
      %100 = vector.load %arg5[%c0_62, %c0_63, %c32_64] : memref<1x16x64xbf16, #tpu.memory_space<vmem>>, vector<1x16x32xbf16>
      %101 = vector.shape_cast %100 : vector<1x16x32xbf16> to vector<16x32xbf16>
      %c0_65 = arith.constant 0 : index
      %c0_66 = arith.constant 0 : index
      %c64 = arith.constant 64 : index
      %102 = vector.load %arg3[%c0_65, %c0_66, %c64] : memref<1x8x128xbf16, #tpu.memory_space<vmem>>, vector<1x8x32xbf16>
      %103 = vector.shape_cast %102 : vector<1x8x32xbf16> to vector<8x32xbf16>
      %cst_67 = arith.constant dense<0.000000e+00> : vector<8x16xf32>
      %104 = tpu.matmul %103, %99, %cst_67 {dimension_numbers = #tpu.dot_dimension_numbers<[1], [1], [0], [0], [0, 0, 1, 0], [], []>} : vector<8x32xbf16>, vector<16x32xbf16>, vector<8x16xf32> -> vector<8x16xf32>
      %cst_68 = arith.constant -1.000000e+30 : f32
      %105 = vector.broadcast %cst_68 : f32 to vector<8x16xf32>
      %106 = arith.select %19, %104, %105 : vector<8x16xi1>, vector<8x16xf32>
      %c2 = arith.constant 2 : index
      %c0_69 = arith.constant 0 : index
      %c0_70 = arith.constant 0 : index
      %107 = vector.load %arg7[%c2, %c0_69, %c0_70] : memref<4x8x1xf32, #tpu.memory_space<vmem>>, vector<1x8x1xf32>
      %108 = vector.shape_cast %107 : vector<1x8x1xf32> to vector<8x1xf32>
      %cst_71 = arith.constant dense<0xFF800000> : vector<8xf32>
      %109 = vector.multi_reduction <maximumf>, %106, %cst_71 [1] : vector<8x16xf32> to vector<8xf32>
      %110 = vector.shape_cast %109 : vector<8xf32> to vector<8x1xf32>
      %111 = arith.maximumf %108, %110 : vector<8x1xf32>
      %112 = arith.subf %108, %111 : vector<8x1xf32>
      %113 = math.exp %112 : vector<8x1xf32>
      %114 = vector.broadcast %111 : vector<8x1xf32> to vector<8x16xf32>
      %115 = arith.subf %106, %114 : vector<8x16xf32>
      %116 = math.exp %115 : vector<8x16xf32>
      %c2_72 = arith.constant 2 : index
      %c0_73 = arith.constant 0 : index
      %c0_74 = arith.constant 0 : index
      %117 = vector.load %arg8[%c2_72, %c0_73, %c0_74] : memref<4x8x1xf32, #tpu.memory_space<vmem>>, vector<1x8x1xf32>
      %118 = vector.shape_cast %117 : vector<1x8x1xf32> to vector<8x1xf32>
      %119 = arith.mulf %113, %118 : vector<8x1xf32>
      %cst_75 = arith.constant dense<0.000000e+00> : vector<8xf32>
      %120 = vector.multi_reduction <add>, %116, %cst_75 [1] : vector<8x16xf32> to vector<8xf32>
      %121 = vector.shape_cast %120 : vector<8xf32> to vector<8x1xf32>
      %122 = arith.addf %119, %121 : vector<8x1xf32>
      %c2_76 = arith.constant 2 : index
      %c0_77 = arith.constant 0 : index
      %c0_78 = arith.constant 0 : index
      %123 = vector.load %arg8[%c2_76, %c0_77, %c0_78] : memref<4x8x1xf32, #tpu.memory_space<vmem>>, vector<1x8x1xf32>
      %124 = vector.shape_cast %123 : vector<1x8x1xf32> to vector<8x1xf32>
      %125 = vector.shape_cast %122 : vector<8x1xf32> to vector<1x8x1xf32>
      tpu.vector_store %arg8[%c2_76, %c0_77, %c0_78], %125 {strides = array<i32>} : memref<4x8x1xf32, #tpu.memory_space<vmem>>, vector<1x8x1xf32>,
      %c2_79 = arith.constant 2 : index
      %c0_80 = arith.constant 0 : index
      %c0_81 = arith.constant 0 : index
      %126 = vector.load %arg9[%c2_79, %c0_80, %c0_81] : memref<4x8x32xf32, #tpu.memory_space<vmem>>, vector<1x8x32xf32>
      %127 = vector.shape_cast %126 : vector<1x8x32xf32> to vector<8x32xf32>
      %128 = vector.broadcast %113 : vector<8x1xf32> to vector<8x32xf32>
      %129 = arith.mulf %128, %127 : vector<8x32xf32>
      %130 = arith.truncf %116 : vector<8x16xf32> to vector<8x16xbf16>
      %cst_82 = arith.constant dense<0.000000e+00> : vector<8x32xf32>
      %131 = tpu.matmul %130, %101, %cst_82 {dimension_numbers = #tpu.dot_dimension_numbers<[1], [0], [0], [1], [0, 0, 1, 1], [], []>} : vector<8x16xbf16>, vector<16x32xbf16>, vector<8x32xf32> -> vector<8x32xf32>
      %132 = arith.addf %129, %131 : vector<8x32xf32>
      %c2_83 = arith.constant 2 : index
      %c0_84 = arith.constant 0 : index
      %c0_85 = arith.constant 0 : index
      %133 = vector.load %arg9[%c2_83, %c0_84, %c0_85] : memref<4x8x32xf32, #tpu.memory_space<vmem>>, vector<1x8x32xf32>
      %134 = vector.shape_cast %133 : vector<1x8x32xf32> to vector<8x32xf32>
      %135 = vector.shape_cast %132 : vector<8x32xf32> to vector<1x8x32xf32>
      tpu.vector_store %arg9[%c2_83, %c0_84, %c0_85], %135 {strides = array<i32>} : memref<4x8x32xf32, #tpu.memory_space<vmem>>, vector<1x8x32xf32>,
      %c2_86 = arith.constant 2 : index
      %c0_87 = arith.constant 0 : index
      %c0_88 = arith.constant 0 : index
      %136 = vector.load %arg7[%c2_86, %c0_87, %c0_88] : memref<4x8x1xf32, #tpu.memory_space<vmem>>, vector<1x8x1xf32>
      %137 = vector.shape_cast %136 : vector<1x8x1xf32> to vector<8x1xf32>
      %138 = vector.shape_cast %111 : vector<8x1xf32> to vector<1x8x1xf32>
      tpu.vector_store %arg7[%c2_86, %c0_87, %c0_88], %138 {strides = array<i32>} : memref<4x8x1xf32, #tpu.memory_space<vmem>>, vector<1x8x1xf32>,
      %c0_89 = arith.constant 0 : index
      %c0_90 = arith.constant 0 : index
      %c96 = arith.constant 96 : index
      %139 = vector.load %arg3[%c0_89, %c0_90, %c96] : memref<1x8x128xbf16, #tpu.memory_space<vmem>>, vector<1x8x32xbf16>
      %140 = vector.shape_cast %139 : vector<1x8x32xbf16> to vector<8x32xbf16>
      %cst_91 = arith.constant dense<0.000000e+00> : vector<8x16xf32>
      %141 = tpu.matmul %140, %99, %cst_91 {dimension_numbers = #tpu.dot_dimension_numbers<[1], [1], [0], [0], [0, 0, 1, 0], [], []>} : vector<8x32xbf16>, vector<16x32xbf16>, vector<8x16xf32> -> vector<8x16xf32>
      %cst_92 = arith.constant -1.000000e+30 : f32
      %142 = vector.broadcast %cst_92 : f32 to vector<8x16xf32>
      %143 = arith.select %19, %141, %142 : vector<8x16xi1>, vector<8x16xf32>
      %c3 = arith.constant 3 : index
      %c0_93 = arith.constant 0 : index
      %c0_94 = arith.constant 0 : index
      %144 = vector.load %arg7[%c3, %c0_93, %c0_94] : memref<4x8x1xf32, #tpu.memory_space<vmem>>, vector<1x8x1xf32>
      %145 = vector.shape_cast %144 : vector<1x8x1xf32> to vector<8x1xf32>
      %cst_95 = arith.constant dense<0xFF800000> : vector<8xf32>
      %146 = vector.multi_reduction <maximumf>, %143, %cst_95 [1] : vector<8x16xf32> to vector<8xf32>
      %147 = vector.shape_cast %146 : vector<8xf32> to vector<8x1xf32>
      %148 = arith.maximumf %145, %147 : vector<8x1xf32>
      %149 = arith.subf %145, %148 : vector<8x1xf32>
      %150 = math.exp %149 : vector<8x1xf32>
      %151 = vector.broadcast %148 : vector<8x1xf32> to vector<8x16xf32>
      %152 = arith.subf %143, %151 : vector<8x16xf32>
      %153 = math.exp %152 : vector<8x16xf32>
      %c3_96 = arith.constant 3 : index
      %c0_97 = arith.constant 0 : index
      %c0_98 = arith.constant 0 : index
      %154 = vector.load %arg8[%c3_96, %c0_97, %c0_98] : memref<4x8x1xf32, #tpu.memory_space<vmem>>, vector<1x8x1xf32>
      %155 = vector.shape_cast %154 : vector<1x8x1xf32> to vector<8x1xf32>
      %156 = arith.mulf %150, %155 : vector<8x1xf32>
      %cst_99 = arith.constant dense<0.000000e+00> : vector<8xf32>
      %157 = vector.multi_reduction <add>, %153, %cst_99 [1] : vector<8x16xf32> to vector<8xf32>
      %158 = vector.shape_cast %157 : vector<8xf32> to vector<8x1xf32>
      %159 = arith.addf %156, %158 : vector<8x1xf32>
      %c3_100 = arith.constant 3 : index
      %c0_101 = arith.constant 0 : index
      %c0_102 = arith.constant 0 : index
      %160 = vector.load %arg8[%c3_100, %c0_101, %c0_102] : memref<4x8x1xf32, #tpu.memory_space<vmem>>, vector<1x8x1xf32>
      %161 = vector.shape_cast %160 : vector<1x8x1xf32> to vector<8x1xf32>
      %162 = vector.shape_cast %159 : vector<8x1xf32> to vector<1x8x1xf32>
      tpu.vector_store %arg8[%c3_100, %c0_101, %c0_102], %162 {strides = array<i32>} : memref<4x8x1xf32, #tpu.memory_space<vmem>>, vector<1x8x1xf32>,
      %c3_103 = arith.constant 3 : index
      %c0_104 = arith.constant 0 : index
      %c0_105 = arith.constant 0 : index
      %163 = vector.load %arg9[%c3_103, %c0_104, %c0_105] : memref<4x8x32xf32, #tpu.memory_space<vmem>>, vector<1x8x32xf32>
      %164 = vector.shape_cast %163 : vector<1x8x32xf32> to vector<8x32xf32>
      %165 = vector.broadcast %150 : vector<8x1xf32> to vector<8x32xf32>
      %166 = arith.mulf %165, %164 : vector<8x32xf32>
      %167 = arith.truncf %153 : vector<8x16xf32> to vector<8x16xbf16>
      %cst_106 = arith.constant dense<0.000000e+00> : vector<8x32xf32>
      %168 = tpu.matmul %167, %101, %cst_106 {dimension_numbers = #tpu.dot_dimension_numbers<[1], [0], [0], [1], [0, 0, 1, 1], [], []>} : vector<8x16xbf16>, vector<16x32xbf16>, vector<8x32xf32> -> vector<8x32xf32>
      %169 = arith.addf %166, %168 : vector<8x32xf32>
      %c3_107 = arith.constant 3 : index
      %c0_108 = arith.constant 0 : index
      %c0_109 = arith.constant 0 : index
      %170 = vector.load %arg9[%c3_107, %c0_108, %c0_109] : memref<4x8x32xf32, #tpu.memory_space<vmem>>, vector<1x8x32xf32>
      %171 = vector.shape_cast %170 : vector<1x8x32xf32> to vector<8x32xf32>
      %172 = vector.shape_cast %169 : vector<8x32xf32> to vector<1x8x32xf32>
      tpu.vector_store %arg9[%c3_107, %c0_108, %c0_109], %172 {strides = array<i32>} : memref<4x8x32xf32, #tpu.memory_space<vmem>>, vector<1x8x32xf32>,
      %c3_110 = arith.constant 3 : index
      %c0_111 = arith.constant 0 : index
      %c0_112 = arith.constant 0 : index
      %173 = vector.load %arg7[%c3_110, %c0_111, %c0_112] : memref<4x8x1xf32, #tpu.memory_space<vmem>>, vector<1x8x1xf32>
      %174 = vector.shape_cast %173 : vector<1x8x1xf32> to vector<8x1xf32>
      %175 = vector.shape_cast %148 : vector<8x1xf32> to vector<1x8x1xf32>
      tpu.vector_store %arg7[%c3_110, %c0_111, %c0_112], %175 {strides = array<i32>} : memref<4x8x1xf32, #tpu.memory_space<vmem>>, vector<1x8x1xf32>,
    } else {
    }
    %c0_i32_3 = arith.constant 0 : i32
    %10 = arith.cmpi eq, %arg2, %c0_i32_3 : i32
    %11 = arith.extui %10 : i1 to i32
    %c0_i32_4 = arith.constant 0 : i32
    %12 = arith.cmpi ne, %11, %c0_i32_4 : i32
    scf.if %12 {
      %c0 = arith.constant 0 : index
      %c0_5 = arith.constant 0 : index
      %c0_6 = arith.constant 0 : index
      %13 = vector.load %arg8[%c0, %c0_5, %c0_6] : memref<4x8x1xf32, #tpu.memory_space<vmem>>, vector<1x8x1xf32>
      %14 = vector.shape_cast %13 : vector<1x8x1xf32> to vector<8x1xf32>
      %15 = tpu.reciprocal %14 {approx = true} : vector<8x1xf32> -> vector<8x1xf32>
      %c0_7 = arith.constant 0 : index
      %c0_8 = arith.constant 0 : index
      %c0_9 = arith.constant 0 : index
      %16 = vector.load %arg9[%c0_7, %c0_8, %c0_9] : memref<4x8x32xf32, #tpu.memory_space<vmem>>, vector<1x8x32xf32>
      %17 = vector.shape_cast %16 : vector<1x8x32xf32> to vector<8x32xf32>
      %18 = vector.broadcast %15 : vector<8x1xf32> to vector<8x32xf32>
      %19 = arith.mulf %17, %18 : vector<8x32xf32>
      %20 = arith.truncf %19 : vector<8x32xf32> to vector<8x32xbf16>
      %c0_10 = arith.constant 0 : index
      %c0_11 = arith.constant 0 : index
      %c0_12 = arith.constant 0 : index
      %21 = vector.load %arg6[%c0_10, %c0_11, %c0_12] : memref<1x8x128xbf16, #tpu.memory_space<vmem>>, vector<1x8x32xbf16>
      %22 = vector.shape_cast %21 : vector<1x8x32xbf16> to vector<8x32xbf16>
      %23 = vector.shape_cast %20 : vector<8x32xbf16> to vector<1x8x32xbf16>
      tpu.vector_store %arg6[%c0_10, %c0_11, %c0_12], %23 {strides = array<i32>} : memref<1x8x128xbf16, #tpu.memory_space<vmem>>, vector<1x8x32xbf16>,
      %c1 = arith.constant 1 : index
      %c0_13 = arith.constant 0 : index
      %c0_14 = arith.constant 0 : index
      %24 = vector.load %arg8[%c1, %c0_13, %c0_14] : memref<4x8x1xf32, #tpu.memory_space<vmem>>, vector<1x8x1xf32>
      %25 = vector.shape_cast %24 : vector<1x8x1xf32> to vector<8x1xf32>
      %26 = tpu.reciprocal %25 {approx = true} : vector<8x1xf32> -> vector<8x1xf32>
      %c1_15 = arith.constant 1 : index
      %c0_16 = arith.constant 0 : index
      %c0_17 = arith.constant 0 : index
      %27 = vector.load %arg9[%c1_15, %c0_16, %c0_17] : memref<4x8x32xf32, #tpu.memory_space<vmem>>, vector<1x8x32xf32>
      %28 = vector.shape_cast %27 : vector<1x8x32xf32> to vector<8x32xf32>
      %29 = vector.broadcast %26 : vector<8x1xf32> to vector<8x32xf32>
      %30 = arith.mulf %28, %29 : vector<8x32xf32>
      %31 = arith.truncf %30 : vector<8x32xf32> to vector<8x32xbf16>
      %c0_18 = arith.constant 0 : index
      %c0_19 = arith.constant 0 : index
      %c32 = arith.constant 32 : index
      %32 = vector.load %arg6[%c0_18, %c0_19, %c32] : memref<1x8x128xbf16, #tpu.memory_space<vmem>>, vector<1x8x32xbf16>
      %33 = vector.shape_cast %32 : vector<1x8x32xbf16> to vector<8x32xbf16>
      %34 = vector.shape_cast %31 : vector<8x32xbf16> to vector<1x8x32xbf16>
      tpu.vector_store %arg6[%c0_18, %c0_19, %c32], %34 {strides = array<i32>} : memref<1x8x128xbf16, #tpu.memory_space<vmem>>, vector<1x8x32xbf16>,
      %c2 = arith.constant 2 : index
      %c0_20 = arith.constant 0 : index
      %c0_21 = arith.constant 0 : index
      %35 = vector.load %arg8[%c2, %c0_20, %c0_21] : memref<4x8x1xf32, #tpu.memory_space<vmem>>, vector<1x8x1xf32>
      %36 = vector.shape_cast %35 : vector<1x8x1xf32> to vector<8x1xf32>
      %37 = tpu.reciprocal %36 {approx = true} : vector<8x1xf32> -> vector<8x1xf32>
      %c2_22 = arith.constant 2 : index
      %c0_23 = arith.constant 0 : index
      %c0_24 = arith.constant 0 : index
      %38 = vector.load %arg9[%c2_22, %c0_23, %c0_24] : memref<4x8x32xf32, #tpu.memory_space<vmem>>, vector<1x8x32xf32>
      %39 = vector.shape_cast %38 : vector<1x8x32xf32> to vector<8x32xf32>
      %40 = vector.broadcast %37 : vector<8x1xf32> to vector<8x32xf32>
      %41 = arith.mulf %39, %40 : vector<8x32xf32>
      %42 = arith.truncf %41 : vector<8x32xf32> to vector<8x32xbf16>
      %c0_25 = arith.constant 0 : index
      %c0_26 = arith.constant 0 : index
      %c64 = arith.constant 64 : index
      %43 = vector.load %arg6[%c0_25, %c0_26, %c64] : memref<1x8x128xbf16, #tpu.memory_space<vmem>>, vector<1x8x32xbf16>
      %44 = vector.shape_cast %43 : vector<1x8x32xbf16> to vector<8x32xbf16>
      %45 = vector.shape_cast %42 : vector<8x32xbf16> to vector<1x8x32xbf16>
      tpu.vector_store %arg6[%c0_25, %c0_26, %c64], %45 {strides = array<i32>} : memref<1x8x128xbf16, #tpu.memory_space<vmem>>, vector<1x8x32xbf16>,
      %c3 = arith.constant 3 : index
      %c0_27 = arith.constant 0 : index
      %c0_28 = arith.constant 0 : index
      %46 = vector.load %arg8[%c3, %c0_27, %c0_28] : memref<4x8x1xf32, #tpu.memory_space<vmem>>, vector<1x8x1xf32>
      %47 = vector.shape_cast %46 : vector<1x8x1xf32> to vector<8x1xf32>
      %48 = tpu.reciprocal %47 {approx = true} : vector<8x1xf32> -> vector<8x1xf32>
      %c3_29 = arith.constant 3 : index
      %c0_30 = arith.constant 0 : index
      %c0_31 = arith.constant 0 : index
      %49 = vector.load %arg9[%c3_29, %c0_30, %c0_31] : memref<4x8x32xf32, #tpu.memory_space<vmem>>, vector<1x8x32xf32>
      %50 = vector.shape_cast %49 : vector<1x8x32xf32> to vector<8x32xf32>
      %51 = vector.broadcast %48 : vector<8x1xf32> to vector<8x32xf32>
      %52 = arith.mulf %50, %51 : vector<8x32xf32>
      %53 = arith.truncf %52 : vector<8x32xf32> to vector<8x32xbf16>
      %c0_32 = arith.constant 0 : index
      %c0_33 = arith.constant 0 : index
      %c96 = arith.constant 96 : index
      %54 = vector.load %arg6[%c0_32, %c0_33, %c96] : memref<1x8x128xbf16, #tpu.memory_space<vmem>>, vector<1x8x32xbf16>
      %55 = vector.shape_cast %54 : vector<1x8x32xbf16> to vector<8x32xbf16>
      %56 = vector.shape_cast %53 : vector<8x32xbf16> to vector<1x8x32xbf16>
      tpu.vector_store %arg6[%c0_32, %c0_33, %c96], %56 {strides = array<i32>} : memref<1x8x128xbf16, #tpu.memory_space<vmem>>, vector<1x8x32xbf16>,
    } else {
    }
    return
  }
  func.func @transform_0(%arg0: i32, %arg1: i32, %arg2: i32) -> (i32, i32, i32) {
    %c0_i32 = arith.constant 0 : i32
    %c0_i32_0 = arith.constant 0 : i32
    return %arg0, %arg1, %c0_i32 : i32, i32, i32
  }
  func.func @transform_1(%arg0: i32, %arg1: i32, %arg2: i32) -> (i32, i32, i32) {
    %c0_i32 = arith.constant 0 : i32
    %c0_i32_0 = arith.constant 0 : i32
    return %arg0, %arg2, %c0_i32 : i32, i32, i32
  }
  func.func @transform_2(%arg0: i32, %arg1: i32, %arg2: i32) -> (i32, i32, i32) {
    %c0_i32 = arith.constant 0 : i32
    %c0_i32_0 = arith.constant 0 : i32
    return %arg0, %arg2, %c0_i32 : i32, i32, i32
  }
  func.func @transform_3(%arg0: i32, %arg1: i32, %arg2: i32) -> (i32, i32, i32) {
    %c0_i32 = arith.constant 0 : i32
    %c0_i32_0 = arith.constant 0 : i32
    return %arg0, %arg1, %c0_i32 : i32, i32, i32
  }
}

module attributes {stable_mosaic.version = 11 : i64} {
  func.func @_rmsnorm_kernel(%arg0: i32, %arg1: memref<16x128xf32, #tpu.memory_space<vmem>>, %arg2: memref<1x128xf32, #tpu.memory_space<vmem>>, %arg3: memref<16x128xbf16, #tpu.memory_space<vmem>>) attributes {dimension_semantics = [#tpu.dimension_semantics<parallel>], iteration_bounds = array<i64: 1>, scalar_prefetch = 0 : i64, scratch_operands = 0 : i64, tpu.core_type = #tpu.core_type<tc>, window_params = [{transform_indices = @transform_0, window_bounds = array<i64: 16, 128>}, {pipeline_mode = #tpu.pipeline_mode<synchronous>, transform_indices = @transform_1, window_bounds = array<i64: 1, 128>}, {transform_indices = @transform_2, window_bounds = array<i64: 16, 128>}]} {
    %c0 = arith.constant 0 : index
    %c0_0 = arith.constant 0 : index
    %0 = vector.load %arg1[%c0, %c0_0] : memref<16x128xf32, #tpu.memory_space<vmem>>, vector<16x128xf32>
    %1 = arith.mulf %0, %0 : vector<16x128xf32>
    %cst = arith.constant dense<0.000000e+00> : vector<16xf32>
    %2 = vector.multi_reduction <add>, %1, %cst [1] : vector<16x128xf32> to vector<16xf32>
    %3 = vector.shape_cast %2 : vector<16xf32> to vector<16x1xf32>
    %cst_1 = arith.constant 1.280000e+02 : f32
    %4 = vector.broadcast %cst_1 : f32 to vector<16x1xf32>
    %5 = arith.divf %3, %4 : vector<16x1xf32>
    %cst_2 = arith.constant 9.99999974E-6 : f32
    %6 = vector.broadcast %cst_2 : f32 to vector<16x1xf32>
    %7 = arith.addf %5, %6 : vector<16x1xf32>
    %8 = math.rsqrt %7 : vector<16x1xf32>
    %9 = vector.broadcast %8 : vector<16x1xf32> to vector<16x128xf32>
    %10 = arith.mulf %0, %9 : vector<16x128xf32>
    %c0_3 = arith.constant 0 : index
    %c0_4 = arith.constant 0 : index
    %11 = vector.load %arg2[%c0_3, %c0_4] : memref<1x128xf32, #tpu.memory_space<vmem>>, vector<1x128xf32>
    %12 = vector.broadcast %11 : vector<1x128xf32> to vector<16x128xf32>
    %13 = arith.mulf %10, %12 : vector<16x128xf32>
    %14 = arith.truncf %13 : vector<16x128xf32> to vector<16x128xbf16>
    %c0_5 = arith.constant 0 : index
    %c0_6 = arith.constant 0 : index
    %15 = vector.load %arg3[%c0_5, %c0_6] : memref<16x128xbf16, #tpu.memory_space<vmem>>, vector<16x128xbf16>
    tpu.vector_store %arg3[%c0_5, %c0_6], %14 {strides = array<i32>} : memref<16x128xbf16, #tpu.memory_space<vmem>>, vector<16x128xbf16>,
    return
  }
  func.func @transform_0(%arg0: i32) -> (i32, i32) {
    %c0_i32 = arith.constant 0 : i32
    %c0_i32_0 = arith.constant 0 : i32
    return %arg0, %c0_i32 : i32, i32
  }
  func.func @transform_1(%arg0: i32) -> (i32, i32) {
    %c0_i32 = arith.constant 0 : i32
    %c0_i32_0 = arith.constant 0 : i32
    %c0_i32_1 = arith.constant 0 : i32
    return %c0_i32, %c0_i32_0 : i32, i32
  }
  func.func @transform_2(%arg0: i32) -> (i32, i32) {
    %c0_i32 = arith.constant 0 : i32
    %c0_i32_0 = arith.constant 0 : i32
    return %arg0, %c0_i32 : i32, i32
  }
}

module attributes {stable_mosaic.version = 11 : i64} {
  func.func @_ffn_gate_kernel(%arg0: i32, %arg1: i32, %arg2: i32, %arg3: memref<16x128xbf16, #tpu.memory_space<vmem>>, %arg4: memref<128x384xbf16, #tpu.memory_space<vmem>>, %arg5: memref<128x384xbf16, #tpu.memory_space<vmem>>, %arg6: memref<16x384xbf16, #tpu.memory_space<vmem>>, %arg7: memref<16x384xf32, #tpu.memory_space<vmem>>, %arg8: memref<16x384xf32, #tpu.memory_space<vmem>>) attributes {dimension_semantics = [#tpu.dimension_semantics<parallel>, #tpu.dimension_semantics<parallel>, #tpu.dimension_semantics<arbitrary>], iteration_bounds = array<i64: 1, 1, 1>, scalar_prefetch = 0 : i64, scratch_operands = 2 : i64, tpu.core_type = #tpu.core_type<tc>, window_params = [{transform_indices = @transform_0, window_bounds = array<i64: 16, 128>}, {transform_indices = @transform_1, window_bounds = array<i64: 128, 384>}, {transform_indices = @transform_2, window_bounds = array<i64: 128, 384>}, {transform_indices = @transform_3, window_bounds = array<i64: 16, 384>}]} {
    %c0_i32 = arith.constant 0 : i32
    %0 = arith.cmpi eq, %arg2, %c0_i32 : i32
    %1 = arith.extui %0 : i1 to i32
    %c0_i32_0 = arith.constant 0 : i32
    %2 = arith.cmpi ne, %1, %c0_i32_0 : i32
    scf.if %2 {
      %cst_17 = arith.constant 0.000000e+00 : f32
      %17 = vector.broadcast %cst_17 : f32 to vector<16x384xf32>
      %c0_18 = arith.constant 0 : index
      %c0_19 = arith.constant 0 : index
      %18 = vector.load %arg7[%c0_18, %c0_19] : memref<16x384xf32, #tpu.memory_space<vmem>>, vector<16x384xf32>
      tpu.vector_store %arg7[%c0_18, %c0_19], %17 {strides = array<i32>} : memref<16x384xf32, #tpu.memory_space<vmem>>, vector<16x384xf32>,
      %cst_20 = arith.constant 0.000000e+00 : f32
      %19 = vector.broadcast %cst_20 : f32 to vector<16x384xf32>
      %c0_21 = arith.constant 0 : index
      %c0_22 = arith.constant 0 : index
      %20 = vector.load %arg8[%c0_21, %c0_22] : memref<16x384xf32, #tpu.memory_space<vmem>>, vector<16x384xf32>
      tpu.vector_store %arg8[%c0_21, %c0_22], %19 {strides = array<i32>} : memref<16x384xf32, #tpu.memory_space<vmem>>, vector<16x384xf32>,
    } else {
    }
    %c0 = arith.constant 0 : index
    %c0_1 = arith.constant 0 : index
    %3 = vector.load %arg3[%c0, %c0_1] : memref<16x128xbf16, #tpu.memory_space<vmem>>, vector<16x128xbf16>
    %c0_2 = arith.constant 0 : index
    %c0_3 = arith.constant 0 : index
    %4 = vector.load %arg7[%c0_2, %c0_3] : memref<16x384xf32, #tpu.memory_space<vmem>>, vector<16x384xf32>
    %c0_4 = arith.constant 0 : index
    %c0_5 = arith.constant 0 : index
    %5 = vector.load %arg4[%c0_4, %c0_5] : memref<128x384xbf16, #tpu.memory_space<vmem>>, vector<128x384xbf16>
    %cst = arith.constant dense<0.000000e+00> : vector<16x384xf32>
    %6 = tpu.matmul %3, %5, %cst {dimension_numbers = #tpu.dot_dimension_numbers<[1], [0], [0], [1], [0, 0, 1, 1], [], []>} : vector<16x128xbf16>, vector<128x384xbf16>, vector<16x384xf32> -> vector<16x384xf32>
    %7 = arith.addf %4, %6 : vector<16x384xf32>
    %c0_6 = arith.constant 0 : index
    %c0_7 = arith.constant 0 : index
    %8 = vector.load %arg7[%c0_6, %c0_7] : memref<16x384xf32, #tpu.memory_space<vmem>>, vector<16x384xf32>
    tpu.vector_store %arg7[%c0_6, %c0_7], %7 {strides = array<i32>} : memref<16x384xf32, #tpu.memory_space<vmem>>, vector<16x384xf32>,
    %c0_8 = arith.constant 0 : index
    %c0_9 = arith.constant 0 : index
    %9 = vector.load %arg8[%c0_8, %c0_9] : memref<16x384xf32, #tpu.memory_space<vmem>>, vector<16x384xf32>
    %c0_10 = arith.constant 0 : index
    %c0_11 = arith.constant 0 : index
    %10 = vector.load %arg5[%c0_10, %c0_11] : memref<128x384xbf16, #tpu.memory_space<vmem>>, vector<128x384xbf16>
    %cst_12 = arith.constant dense<0.000000e+00> : vector<16x384xf32>
    %11 = tpu.matmul %3, %10, %cst_12 {dimension_numbers = #tpu.dot_dimension_numbers<[1], [0], [0], [1], [0, 0, 1, 1], [], []>} : vector<16x128xbf16>, vector<128x384xbf16>, vector<16x384xf32> -> vector<16x384xf32>
    %12 = arith.addf %9, %11 : vector<16x384xf32>
    %c0_13 = arith.constant 0 : index
    %c0_14 = arith.constant 0 : index
    %13 = vector.load %arg8[%c0_13, %c0_14] : memref<16x384xf32, #tpu.memory_space<vmem>>, vector<16x384xf32>
    tpu.vector_store %arg8[%c0_13, %c0_14], %12 {strides = array<i32>} : memref<16x384xf32, #tpu.memory_space<vmem>>, vector<16x384xf32>,
    %c0_i32_15 = arith.constant 0 : i32
    %14 = arith.cmpi eq, %arg2, %c0_i32_15 : i32
    %15 = arith.extui %14 : i1 to i32
    %c0_i32_16 = arith.constant 0 : i32
    %16 = arith.cmpi ne, %15, %c0_i32_16 : i32
    scf.if %16 {
      %c0_17 = arith.constant 0 : index
      %c0_18 = arith.constant 0 : index
      %17 = vector.load %arg7[%c0_17, %c0_18] : memref<16x384xf32, #tpu.memory_space<vmem>>, vector<16x384xf32>
      %18 = arith.negf %17 : vector<16x384xf32>
      %19 = math.exp %18 : vector<16x384xf32>
      %cst_19 = arith.constant 1.000000e+00 : f32
      %20 = vector.broadcast %cst_19 : f32 to vector<16x384xf32>
      %21 = arith.addf %20, %19 : vector<16x384xf32>
      %22 = arith.divf %20, %21 : vector<16x384xf32>
      %23 = arith.mulf %17, %22 : vector<16x384xf32>
      %c0_20 = arith.constant 0 : index
      %c0_21 = arith.constant 0 : index
      %24 = vector.load %arg8[%c0_20, %c0_21] : memref<16x384xf32, #tpu.memory_space<vmem>>, vector<16x384xf32>
      %25 = arith.mulf %23, %24 : vector<16x384xf32>
      %26 = arith.truncf %25 : vector<16x384xf32> to vector<16x384xbf16>
      %c0_22 = arith.constant 0 : index
      %c0_23 = arith.constant 0 : index
      %27 = vector.load %arg6[%c0_22, %c0_23] : memref<16x384xbf16, #tpu.memory_space<vmem>>, vector<16x384xbf16>
      tpu.vector_store %arg6[%c0_22, %c0_23], %26 {strides = array<i32>} : memref<16x384xbf16, #tpu.memory_space<vmem>>, vector<16x384xbf16>,
    } else {
    }
    return
  }
  func.func @transform_0(%arg0: i32, %arg1: i32, %arg2: i32) -> (i32, i32) {
    %c0_i32 = arith.constant 0 : i32
    return %arg0, %arg2 : i32, i32
  }
  func.func @transform_1(%arg0: i32, %arg1: i32, %arg2: i32) -> (i32, i32) {
    %c0_i32 = arith.constant 0 : i32
    return %arg2, %arg1 : i32, i32
  }
  func.func @transform_2(%arg0: i32, %arg1: i32, %arg2: i32) -> (i32, i32) {
    %c0_i32 = arith.constant 0 : i32
    return %arg2, %arg1 : i32, i32
  }
  func.func @transform_3(%arg0: i32, %arg1: i32, %arg2: i32) -> (i32, i32) {
    %c0_i32 = arith.constant 0 : i32
    return %arg0, %arg1 : i32, i32
  }
}

module attributes {stable_mosaic.version = 11 : i64} {
  func.func @_matmul_res_kernel(%arg0: i32, %arg1: i32, %arg2: i32, %arg3: memref<16x384xbf16, #tpu.memory_space<vmem>>, %arg4: memref<384x128xbf16, #tpu.memory_space<vmem>>, %arg5: memref<16x128xf32, #tpu.memory_space<vmem>>, %arg6: memref<16x128xf32, #tpu.memory_space<vmem>>, %arg7: memref<16x128xf32, #tpu.memory_space<vmem>>) attributes {dimension_semantics = [#tpu.dimension_semantics<parallel>, #tpu.dimension_semantics<parallel>, #tpu.dimension_semantics<arbitrary>], iteration_bounds = array<i64: 1, 1, 1>, scalar_prefetch = 0 : i64, scratch_operands = 1 : i64, tpu.core_type = #tpu.core_type<tc>, window_params = [{transform_indices = @transform_0, window_bounds = array<i64: 16, 384>}, {transform_indices = @transform_1, window_bounds = array<i64: 384, 128>}, {transform_indices = @transform_2, window_bounds = array<i64: 16, 128>}, {transform_indices = @transform_3, window_bounds = array<i64: 16, 128>}]} {
    %c0_i32 = arith.constant 0 : i32
    %0 = arith.cmpi eq, %arg2, %c0_i32 : i32
    %1 = arith.extui %0 : i1 to i32
    %c0_i32_0 = arith.constant 0 : i32
    %2 = arith.cmpi ne, %1, %c0_i32_0 : i32
    scf.if %2 {
      %cst_10 = arith.constant 0.000000e+00 : f32
      %12 = vector.broadcast %cst_10 : f32 to vector<16x128xf32>
      %c0_11 = arith.constant 0 : index
      %c0_12 = arith.constant 0 : index
      %13 = vector.load %arg7[%c0_11, %c0_12] : memref<16x128xf32, #tpu.memory_space<vmem>>, vector<16x128xf32>
      tpu.vector_store %arg7[%c0_11, %c0_12], %12 {strides = array<i32>} : memref<16x128xf32, #tpu.memory_space<vmem>>, vector<16x128xf32>,
    } else {
    }
    %c0 = arith.constant 0 : index
    %c0_1 = arith.constant 0 : index
    %3 = vector.load %arg7[%c0, %c0_1] : memref<16x128xf32, #tpu.memory_space<vmem>>, vector<16x128xf32>
    %c0_2 = arith.constant 0 : index
    %c0_3 = arith.constant 0 : index
    %4 = vector.load %arg3[%c0_2, %c0_3] : memref<16x384xbf16, #tpu.memory_space<vmem>>, vector<16x384xbf16>
    %c0_4 = arith.constant 0 : index
    %c0_5 = arith.constant 0 : index
    %5 = vector.load %arg4[%c0_4, %c0_5] : memref<384x128xbf16, #tpu.memory_space<vmem>>, vector<384x128xbf16>
    %cst = arith.constant dense<0.000000e+00> : vector<16x128xf32>
    %6 = tpu.matmul %4, %5, %cst {dimension_numbers = #tpu.dot_dimension_numbers<[1], [0], [0], [1], [0, 0, 1, 1], [], []>} : vector<16x384xbf16>, vector<384x128xbf16>, vector<16x128xf32> -> vector<16x128xf32>
    %7 = arith.addf %3, %6 : vector<16x128xf32>
    %c0_6 = arith.constant 0 : index
    %c0_7 = arith.constant 0 : index
    %8 = vector.load %arg7[%c0_6, %c0_7] : memref<16x128xf32, #tpu.memory_space<vmem>>, vector<16x128xf32>
    tpu.vector_store %arg7[%c0_6, %c0_7], %7 {strides = array<i32>} : memref<16x128xf32, #tpu.memory_space<vmem>>, vector<16x128xf32>,
    %c0_i32_8 = arith.constant 0 : i32
    %9 = arith.cmpi eq, %arg2, %c0_i32_8 : i32
    %10 = arith.extui %9 : i1 to i32
    %c0_i32_9 = arith.constant 0 : i32
    %11 = arith.cmpi ne, %10, %c0_i32_9 : i32
    scf.if %11 {
      %c0_10 = arith.constant 0 : index
      %c0_11 = arith.constant 0 : index
      %12 = vector.load %arg7[%c0_10, %c0_11] : memref<16x128xf32, #tpu.memory_space<vmem>>, vector<16x128xf32>
      %c0_12 = arith.constant 0 : index
      %c0_13 = arith.constant 0 : index
      %13 = vector.load %arg5[%c0_12, %c0_13] : memref<16x128xf32, #tpu.memory_space<vmem>>, vector<16x128xf32>
      %14 = arith.addf %12, %13 : vector<16x128xf32>
      %c0_14 = arith.constant 0 : index
      %c0_15 = arith.constant 0 : index
      %15 = vector.load %arg6[%c0_14, %c0_15] : memref<16x128xf32, #tpu.memory_space<vmem>>, vector<16x128xf32>
      tpu.vector_store %arg6[%c0_14, %c0_15], %14 {strides = array<i32>} : memref<16x128xf32, #tpu.memory_space<vmem>>, vector<16x128xf32>,
    } else {
    }
    return
  }
  func.func @transform_0(%arg0: i32, %arg1: i32, %arg2: i32) -> (i32, i32) {
    %c0_i32 = arith.constant 0 : i32
    return %arg0, %arg2 : i32, i32
  }
  func.func @transform_1(%arg0: i32, %arg1: i32, %arg2: i32) -> (i32, i32) {
    %c0_i32 = arith.constant 0 : i32
    return %arg2, %arg1 : i32, i32
  }
  func.func @transform_2(%arg0: i32, %arg1: i32, %arg2: i32) -> (i32, i32) {
    %c0_i32 = arith.constant 0 : i32
    return %arg0, %arg1 : i32, i32
  }
  func.func @transform_3(%arg0: i32, %arg1: i32, %arg2: i32) -> (i32, i32) {
    %c0_i32 = arith.constant 0 : i32
    return %arg0, %arg1 : i32, i32
  }
}

module attributes {stable_mosaic.version = 11 : i64} {
  func.func @_matmul_kernel(%arg0: i32, %arg1: i32, %arg2: i32, %arg3: memref<16x128xbf16, #tpu.memory_space<vmem>>, %arg4: memref<128x256xbf16, #tpu.memory_space<vmem>>, %arg5: memref<16x256xf32, #tpu.memory_space<vmem>>, %arg6: memref<16x256xf32, #tpu.memory_space<vmem>>) attributes {dimension_semantics = [#tpu.dimension_semantics<parallel>, #tpu.dimension_semantics<parallel>, #tpu.dimension_semantics<arbitrary>], iteration_bounds = array<i64: 1, 1, 1>, scalar_prefetch = 0 : i64, scratch_operands = 1 : i64, tpu.core_type = #tpu.core_type<tc>, window_params = [{transform_indices = @transform_0, window_bounds = array<i64: 16, 128>}, {transform_indices = @transform_1, window_bounds = array<i64: 128, 256>}, {transform_indices = @transform_2, window_bounds = array<i64: 16, 256>}]} {
    %c0_i32 = arith.constant 0 : i32
    %0 = arith.cmpi eq, %arg2, %c0_i32 : i32
    %1 = arith.extui %0 : i1 to i32
    %c0_i32_0 = arith.constant 0 : i32
    %2 = arith.cmpi ne, %1, %c0_i32_0 : i32
    scf.if %2 {
      %cst_10 = arith.constant 0.000000e+00 : f32
      %12 = vector.broadcast %cst_10 : f32 to vector<16x256xf32>
      %c0_11 = arith.constant 0 : index
      %c0_12 = arith.constant 0 : index
      %13 = vector.load %arg6[%c0_11, %c0_12] : memref<16x256xf32, #tpu.memory_space<vmem>>, vector<16x256xf32>
      tpu.vector_store %arg6[%c0_11, %c0_12], %12 {strides = array<i32>} : memref<16x256xf32, #tpu.memory_space<vmem>>, vector<16x256xf32>,
    } else {
    }
    %c0 = arith.constant 0 : index
    %c0_1 = arith.constant 0 : index
    %3 = vector.load %arg6[%c0, %c0_1] : memref<16x256xf32, #tpu.memory_space<vmem>>, vector<16x256xf32>
    %c0_2 = arith.constant 0 : index
    %c0_3 = arith.constant 0 : index
    %4 = vector.load %arg3[%c0_2, %c0_3] : memref<16x128xbf16, #tpu.memory_space<vmem>>, vector<16x128xbf16>
    %c0_4 = arith.constant 0 : index
    %c0_5 = arith.constant 0 : index
    %5 = vector.load %arg4[%c0_4, %c0_5] : memref<128x256xbf16, #tpu.memory_space<vmem>>, vector<128x256xbf16>
    %cst = arith.constant dense<0.000000e+00> : vector<16x256xf32>
    %6 = tpu.matmul %4, %5, %cst {dimension_numbers = #tpu.dot_dimension_numbers<[1], [0], [0], [1], [0, 0, 1, 1], [], []>} : vector<16x128xbf16>, vector<128x256xbf16>, vector<16x256xf32> -> vector<16x256xf32>
    %7 = arith.addf %3, %6 : vector<16x256xf32>
    %c0_6 = arith.constant 0 : index
    %c0_7 = arith.constant 0 : index
    %8 = vector.load %arg6[%c0_6, %c0_7] : memref<16x256xf32, #tpu.memory_space<vmem>>, vector<16x256xf32>
    tpu.vector_store %arg6[%c0_6, %c0_7], %7 {strides = array<i32>} : memref<16x256xf32, #tpu.memory_space<vmem>>, vector<16x256xf32>,
    %c0_i32_8 = arith.constant 0 : i32
    %9 = arith.cmpi eq, %arg2, %c0_i32_8 : i32
    %10 = arith.extui %9 : i1 to i32
    %c0_i32_9 = arith.constant 0 : i32
    %11 = arith.cmpi ne, %10, %c0_i32_9 : i32
    scf.if %11 {
      %c0_10 = arith.constant 0 : index
      %c0_11 = arith.constant 0 : index
      %12 = vector.load %arg6[%c0_10, %c0_11] : memref<16x256xf32, #tpu.memory_space<vmem>>, vector<16x256xf32>
      %c0_12 = arith.constant 0 : index
      %c0_13 = arith.constant 0 : index
      %13 = vector.load %arg5[%c0_12, %c0_13] : memref<16x256xf32, #tpu.memory_space<vmem>>, vector<16x256xf32>
      tpu.vector_store %arg5[%c0_12, %c0_13], %12 {strides = array<i32>} : memref<16x256xf32, #tpu.memory_space<vmem>>, vector<16x256xf32>,
    } else {
    }
    return
  }
  func.func @transform_0(%arg0: i32, %arg1: i32, %arg2: i32) -> (i32, i32) {
    %c0_i32 = arith.constant 0 : i32
    return %arg0, %arg2 : i32, i32
  }
  func.func @transform_1(%arg0: i32, %arg1: i32, %arg2: i32) -> (i32, i32) {
    %c0_i32 = arith.constant 0 : i32
    return %arg2, %arg1 : i32, i32
  }
  func.func @transform_2(%arg0: i32, %arg1: i32, %arg2: i32) -> (i32, i32) {
    %c0_i32 = arith.constant 0 : i32
    return %arg0, %arg1 : i32, i32
  }
}

</mosaic_0001>

<llo_original>
// kernel: tile.24
$region0: #{tile.24}
  #allocation0 [shape = 's32[1]{0}', space=sflag, size = 0x4, scoped, tag = 'scoped memory for tile.24']
  %s0 = inlined_call_operand.vmem [shape: f32[2], index: 0, kind: input, shape index: {}]
  %s1 = inlined_call_operand.vmem [shape: f32[16,2], index: 1, kind: output, shape index: {}]
  // Predicated region
  $region2: #{tile.24} parent=0 // pred_check
    _
  $region3: #{tile.24} parent=0 // pred_check_branch
    %3 = sbr.rel (0) target = $region5
  $region4: #{tile.24} parent=0 // pred_region
    _
  $region5: #{tile.24} parent=0 // pred_fallthru
    _
  %v4 = vld [vmem:[%s0] ss:$0 sm:$0xff]
  %5 = vst [vmem:[%s1] sm:$0xff] %v4
  %s6 = scalar_lea.vmem %s1, 8
  %7 = vst [vmem:[%s6] sm:$0xff] %v4

// kernel: tile.43
$region0: #{tile.43}
  %s0 = inlined_call_operand.vmem [shape: f32[8,2,32], index: 0, kind: input, shape index: {}]
  %s1 = inlined_call_operand.vmem [shape: f32[8,64], index: 1, kind: output, shape index: {}]
  $region1: #{tile.43} parent=0
    #allocation0 [shape = 'u8[32768]{0}', space=vmem, size = 0x8000, scoped, tag = 'scoped mem for input reshape']
    %s3 = sshllo.u32 0, 2
    %s4 = smul.addr 2, 7
    %s5 = scalar_lea.vmem %s0, %s4
    %v6 = vld [vmem:[%s5] sm:%s3]
    %s7 = scalar_lea.vmem [#allocation0], 56
    %8 = vst [vmem:[%s7] sm:%s3] %v6
    %s9 = smul.addr 2, 6
    %s10 = scalar_lea.vmem %s0, %s9
    %v11 = vld [vmem:[%s10] sm:%s3]
    %s12 = scalar_lea.vmem [#allocation0], 48
    %13 = vst [vmem:[%s12] sm:%s3] %v11
    %s14 = smul.addr 2, 5
    %s15 = scalar_lea.vmem %s0, %s14
    %v16 = vld [vmem:[%s15] sm:%s3]
    %s17 = scalar_lea.vmem [#allocation0], 40
    %18 = vst [vmem:[%s17] sm:%s3] %v16
    %s19 = smul.addr 2, 4
    %s20 = scalar_lea.vmem %s0, %s19
    %v21 = vld [vmem:[%s20] sm:%s3]
    %s22 = scalar_lea.vmem [#allocation0], 32
    %23 = vst [vmem:[%s22] sm:%s3] %v21
    %s24 = smul.addr 2, 3
    %s25 = scalar_lea.vmem %s0, %s24
    %v26 = vld [vmem:[%s25] sm:%s3]
    %s27 = scalar_lea.vmem [#allocation0], 24
    %28 = vst [vmem:[%s27] sm:%s3] %v26
    %s29 = smul.addr 2, 2
    %s30 = scalar_lea.vmem %s0, %s29
    %v31 = vld [vmem:[%s30] sm:%s3]
    %s32 = scalar_lea.vmem [#allocation0], 16
    %33 = vst [vmem:[%s32] sm:%s3] %v31
    %s34 = scalar_lea.vmem %s0, 2
    %v35 = vld [vmem:[%s34] sm:%s3]
    %s36 = scalar_lea.vmem [#allocation0], 8
    %37 = vst [vmem:[%s36] sm:%s3] %v35
    %v38 = vld [vmem:[%s0] sm:%s3]
    %39 = vst [vmem:[#allocation0] sm:%s3] %v38
    %v40 = vld [vmem:[#allocation0] ss:$8 sm:$0xf]
    %v41 = vld [vmem:[#allocation0] ss:$8 sm:$0xf0]
    %vm42 = vcmask 1047556
    %v43 = vsel %vm42, %v41, %v40
    %vm44 = vcmask 261120
    %45 = vst.msk [vmem:[%s1] sm:$0xff] %vm44, %v43
    %s46 = scalar_lea.vmem [#allocation0], 1
    %v47 = vld [vmem:[%s46] ss:$8 sm:$0xf]
    %s48 = scalar_lea.vmem [#allocation0], 1
    %v49 = vld [vmem:[%s48] ss:$8 sm:$0xf0]
    %vm50 = vcmask 1047556
    %v51 = vsel %vm50, %v49, %v47
    %52 = vrot.lane.b32.xlu0 %v51, 32
    %v53 = vpop.permute.xlu0 %52
    %vm54 = vcmask 523520
    %55 = vst.msk [vmem:[%s1] sm:$0xff] %vm54, %v53

// kernel: tile.34
$region0: #{tile.34}
  %s0 = inlined_call_operand.vmem [shape: f32[8,4,32], index: 0, kind: input, shape index: {}]
  %s1 = inlined_call_operand.vmem [shape: f32[8,128], index: 1, kind: output, shape index: {}]
  $region1: #{tile.34} parent=0
    #allocation0 [shape = 'u8[32768]{0}', space=vmem, size = 0x8000, scoped, tag = 'scoped mem for input reshape']
    %s3 = sshllo.u32 0, 4
    %s4 = smul.addr 4, 7
    %s5 = scalar_lea.vmem %s0, %s4
    %v6 = vld [vmem:[%s5] sm:%s3]
    %s7 = scalar_lea.vmem [#allocation0], 56
    %8 = vst [vmem:[%s7] sm:%s3] %v6
    %s9 = smul.addr 4, 6
    %s10 = scalar_lea.vmem %s0, %s9
    %v11 = vld [vmem:[%s10] sm:%s3]
    %s12 = scalar_lea.vmem [#allocation0], 48
    %13 = vst [vmem:[%s12] sm:%s3] %v11
    %s14 = smul.addr 4, 5
    %s15 = scalar_lea.vmem %s0, %s14
    %v16 = vld [vmem:[%s15] sm:%s3]
    %s17 = scalar_lea.vmem [#allocation0], 40
    %18 = vst [vmem:[%s17] sm:%s3] %v16
    %s19 = smul.addr 4, 4
    %s20 = scalar_lea.vmem %s0, %s19
    %v21 = vld [vmem:[%s20] sm:%s3]
    %s22 = scalar_lea.vmem [#allocation0], 32
    %23 = vst [vmem:[%s22] sm:%s3] %v21
    %s24 = smul.addr 4, 3
    %s25 = scalar_lea.vmem %s0, %s24
    %v26 = vld [vmem:[%s25] sm:%s3]
    %s27 = scalar_lea.vmem [#allocation0], 24
    %28 = vst [vmem:[%s27] sm:%s3] %v26
    %s29 = smul.addr 4, 2
    %s30 = scalar_lea.vmem %s0, %s29
    %v31 = vld [vmem:[%s30] sm:%s3]
    %s32 = scalar_lea.vmem [#allocation0], 16
    %33 = vst [vmem:[%s32] sm:%s3] %v31
    %s34 = scalar_lea.vmem %s0, 4
    %v35 = vld [vmem:[%s34] sm:%s3]
    %s36 = scalar_lea.vmem [#allocation0], 8
    %37 = vst [vmem:[%s36] sm:%s3] %v35
    %v38 = vld [vmem:[%s0] sm:%s3]
    %39 = vst [vmem:[#allocation0] sm:%s3] %v38
    %v40 = vld [vmem:[#allocation0] ss:$8 sm:$0xf]
    %v41 = vld [vmem:[#allocation0] ss:$8 sm:$0xf0]
    %vm42 = vcmask 1047556
    %v43 = vsel %vm42, %v41, %v40
    %vm44 = vcmask 261120
    %45 = vst.msk [vmem:[%s1] sm:$0xff] %vm44, %v43
    %s46 = scalar_lea.vmem [#allocation0], 3
    %v47 = vld [vmem:[%s46] ss:$8 sm:$0xf]
    %s48 = scalar_lea.vmem [#allocation0], 3
    %v49 = vld [vmem:[%s48] ss:$8 sm:$0xf0]
    %vm50 = vcmask 1047556
    %v51 = vsel %vm50, %v49, %v47
    %52 = vrot.lane.b32.xlu0 %v51, 96
    %v53 = vpop.permute.xlu0 %52
    %vm54 = vcmask 1048320
    %55 = vst.msk [vmem:[%s1] sm:$0xff] %vm54, %v53
    %s56 = scalar_lea.vmem [#allocation0], 2
    %v57 = vld [vmem:[%s56] ss:$8 sm:$0xf]
    %s58 = scalar_lea.vmem [#allocation0], 2
    %v59 = vld [vmem:[%s58] ss:$8 sm:$0xf0]
    %vm60 = vcmask 1047556
    %v61 = vsel %vm60, %v59, %v57
    %62 = vrot.lane.b32.xlu0 %v61, 64
    %v63 = vpop.permute.xlu0 %62
    %vm64 = vcmask 785920
    %65 = vst.msk [vmem:[%s1] sm:$0xff] %vm64, %v63
    %s66 = scalar_lea.vmem [#allocation0], 1
    %v67 = vld [vmem:[%s66] ss:$8 sm:$0xf]
    %s68 = scalar_lea.vmem [#allocation0], 1
    %v69 = vld [vmem:[%s68] ss:$8 sm:$0xf0]
    %vm70 = vcmask 1047556
    %v71 = vsel %vm70, %v69, %v67
    %72 = vrot.lane.b32.xlu0 %v71, 32
    %v73 = vpop.permute.xlu0 %72
    %vm74 = vcmask 523520
    %75 = vst.msk [vmem:[%s1] sm:$0xff] %vm74, %v73

// kernel: llama_forward.20
$region0: #{llama_forward.20}
  #allocation0 [shape = 'u32[]', space=smem, size = 0x4, offset = 0x4, fixed_abs, tag = 'smem constant byte address 0x4 - core index']
  #allocation1 [shape = 'u32[144,128]{1,0:T(1,128)}', space=vmem, size = 0x12000, scoped, tag = 'internal scratch']
  %s0 = inlined_call_operand.vmem [shape: f32[16,128], index: 0, kind: input, shape index: {}]
  %s1 = inlined_call_operand.vmem [shape: f32[1,128], index: 1, kind: input, shape index: {}]
  %s2 = inlined_call_operand.hbm [shape: bf16[16,128], index: 2, kind: output, shape index: {}]
  %s3 = sld [smem:[#allocation0]]
  $region18: #{llama_forward.20} parent=0
    _
  %s5 = ssub.s32 1, %s3
  %s6 = scalar_select 0, %s5, %s3
  $region1: #{llama_forward.20} parent=0
    #allocation2 [shape = 'u8[4096]{0}', space=vmem, size = 0x1000, scoped, tag = 'output window, operand 0, single buffered']
    #allocation3 [shape = 's32[1]{0}', space=sflag, size = 0x4, scoped, tag = 'scoped memory for llama_forward.20']
    %7 = vsyncpa [#allocation3], 0
    // Predicated region
    $region2: #{llama_forward.20} parent=1 // pred_check
      _
    $region3: #{llama_forward.20} parent=1 // pred_check_branch
      %9 = sbr.rel (0) target = $region5
    $region4: #{llama_forward.20} parent=1 // pred_region
      _
    $region5: #{llama_forward.20} parent=1 // pred_fallthru
      _
    // Predicated region
    $region6: #{llama_forward.20} parent=1 // pred_check
      _
    $region7: #{llama_forward.20} parent=1 // pred_check_branch
      %11 = sbr.rel (0) target = $region9
    $region8: #{llama_forward.20} parent=1 // pred_region
      _
    $region9: #{llama_forward.20} parent=1 // pred_fallthru
      _
    %v12 = vld [vmem:[%s0] sm:$0xff]
    %v13 = vld [vmem:[%s0 + $0x8] sm:$0xff]
    %v14 = vmul.f32 %v12, %v12
    %v15 = vmul.f32 %v13, %v13
    %16 = vadd.xlane.f32.xlu0 %v14
    %v17 = vpop.xlane.xlu0 %16
    %18 = vadd.xlane.f32.xlu0 %v15
    %v19 = vpop.xlane.xlu0 %18
    %v20 = vrcp.pop 128.0
    %v21 = vmul.f32 %v17, %v20
    %v22 = vmul.f32 %v19, %v20
    %v23 = vadd.f32 %v21, 1e-05
    %v24 = vadd.f32 %v22, 1e-05
    %v25 = vrsqrt.pop %v23
    %v26 = vrsqrt.pop %v24
    %v27 = vmul.f32 %v12, %v25
    %v28 = vmul.f32 %v13, %v26
    %v29 = vld [vmem:[%s1] sm:$0x1]
    %v31 = vlaneseq
    %v32 = vshrl.u32 %v31, 7
    %v33 = vsub.s32 0, %v32
    %v34 = vrot.slane %v29, %v33
    %v36 = vmul.f32 %v27, %v34
    %v37 = vmul.f32 %v28, %v34
    %v38 = vpack.c.bf16 %v37, %v36
    %v40 = vunpack.c.l.b16 %v38
    %v41 = vunpack.c.h.b16 %v38
    %v42 = vpack.c.b16 %v40, %v40
    %v43 = vpack.c.b16 %v41, %v41
    %46 = vst [vmem:[#allocation2] sm:$0xf] %v42
    %47 = vst [vmem:[#allocation2 + $0x4] sm:$0xf] %v43
    // Predicated region
    $region10: #{llama_forward.20} parent=1 // pred_check
      _
    $region11: #{llama_forward.20} parent=1 // pred_check_branch
      %49 = sbr.rel (0) target = $region13
    $region12: #{llama_forward.20} parent=1 // pred_region
      %s51 = ssub.s32 128, 128
      %52 = vsyncadd [#allocation3], %s51
      %s53 = sshll.u32 [#allocation2], 4
      %s54 = int_to_ptr.vmem [resolvable:$true] %s53
      %59 = dma.vmem_to_hbm [thread:$0]  %s54, 128, %s2, [#allocation3], 64, 64, 4
    $region13: #{llama_forward.20} parent=1 // pred_fallthru
      _
    // Predicated region
    $region14: #{llama_forward.20} parent=1 // pred_check
      _
    $region15: #{llama_forward.20} parent=1 // pred_check_branch
      %61 = sbr.rel (0) target = $region17
    $region16: #{llama_forward.20} parent=1 // pred_region
      %62 = dma.done [#allocation3], 128
    $region17: #{llama_forward.20} parent=1 // pred_fallthru
      _
    %63 = vsyncpa [#allocation3], 1

// kernel: llama_forward.22
$region0: #{llama_forward.22}
  #allocation0 [shape = 'u32[]', space=smem, size = 0x4, offset = 0x4, fixed_abs, tag = 'smem constant byte address 0x4 - core index']
  #allocation1 [shape = 'u32[144,128]{1,0:T(1,128)}', space=vmem, size = 0x12000, scoped, tag = 'internal scratch']
  %s0 = inlined_call_operand.vmem [shape: bf16[2,8,128], index: 0, kind: input, shape index: {}]
  %s1 = inlined_call_operand.vmem [shape: f32[8,128], index: 1, kind: input, shape index: {}]
  %s2 = inlined_call_operand.vmem [shape: f32[8,128], index: 2, kind: input, shape index: {}]
  %s3 = inlined_call_operand.hbm [shape: bf16[2,8,128], index: 3, kind: output, shape index: {}]
  %s4 = sld [smem:[#allocation0]]
  $region45: #{llama_forward.22} parent=0
    _
  %s6 = ssub.s32 1, %s4
  %s7 = scalar_select 0, %s6, %s4
  $region1: #{llama_forward.22} parent=0
    #allocation2 [shape = 'u8[4096]{0}', space=vmem, size = 0x1000, scoped, tag = 'output window, operand 0']
    #allocation3 [shape = 's32[2]{0}', space=sflag, size = 0x8, scoped, tag = 'scoped memory for llama_forward.22']
    %8 = vsyncpa [#allocation3], 0
    %s9 = scalar_lea.sflag [#allocation3], 1
    %10 = vsyncpa %s9, 0
    loop: start=0, step=1, limit=4
    $region2: #{llama_forward.22} parent=1 // loop_pre_header
      _
    $region3: #{llama_forward.22} parent=1 // loop_header
      %s12 = sphi 0, %s16
      %p13 = scmp.ge.s32.totalorder %s12, 4
      %s19 = sphi 0, %s31
      %s20 = sphi 0, %s27
      %s21 = sphi 0, %s19
      %s22 = sphi 0, %s20
      %s23 = sphi 0, %s21
      %s24 = sphi 0, %s22
      %s36 = sphi 0, %s38
      %s39 = sphi 0, %s36
      %s40 = sphi 0, %s39
      %s56 = sphi 0, %s40
      %s62 = sphi 0, %s64
      %s65 = sphi 0, %s62
      %s66 = sphi 0, %s65
      %s82 = sphi 0, %s66
      %s88 = sphi 0, %s90
      %s91 = sphi 0, %s88
      %s92 = sphi 0, %s91
      %s108 = sphi 0, %s92
      %s116 = sphi 0, %s118
      %s119 = sphi 0, %s116
      %s120 = sphi 0, %s119
      %s136 = sphi 0, %s120
    $region4: #{llama_forward.22} parent=1 // loop_header_branch
      %15 = sbr.rel (%p13) target = $region8
    $region5: #{llama_forward.22} parent=1 // loop_body
      %s17 = ssub.s32 %s12, 1
      %s18 = ssub.s32 %s12, 2
      %s25 = sadd.s32 1, %s20
      %p26 = scmp.ge.s32.totalorder %s25, 1
      %s27 = scalar_select %p26, 0, %s25
      %s28 = sadd.s32 1, %s19
      %s29 = scalar_select %p26, %s28, %s19
      %p30 = scmp.ge.s32.totalorder %s29, 2
      %s31 = scalar_select %p30, 0, %s29
      %s32 = ssub.s32 %s19, %s31
      %s33 = ssub.s32 %s20, %s27
      %s34 = sor.u32 %s32, %s33
      %p35 = scmp.eq.s32.totalorder %s34, 0
      %s37 = sadd.s32 %s36, 1
      %s38 = scalar_select %p35, %s36, %s37
      %p41 = pneg %p35
      %p42 = scmp.eq.s32.totalorder %s12, 1
      %p43 = por %p41, %p42
      %p44 = scmp.ne.s32.totalorder %s36, %s39
      %p45 = scmp.eq.s32.totalorder %s12, 0
      %p46 = por %p44, %p45
      %p47 = scmp.ne.s32.totalorder %s36, %s39
      %p48 = scmp.eq.s32.totalorder %s17, 1
      %p49 = por %p47, %p48
      %p50 = scmp.ne.s32.totalorder %s39, %s40
      %p51 = scmp.eq.s32.totalorder %s17, 0
      %p52 = por %p50, %p51
      %p53 = scmp.ne.s32.totalorder %s39, %s40
      %p54 = scmp.eq.s32.totalorder %s18, 1
      %p55 = por %p53, %p54
      %p57 = scmp.ne.s32.totalorder %s40, %s56
      %p58 = scmp.eq.s32.totalorder %s18, 0
      %p59 = por %p57, %p58
      %s60 = ssub.s32 %s20, %s27
      %p61 = scmp.eq.s32.totalorder %s60, 0
      %s63 = sadd.s32 %s62, 1
      %s64 = scalar_select %p61, %s62, %s63
      %p67 = pneg %p61
      %p68 = scmp.eq.s32.totalorder %s12, 1
      %p69 = por %p67, %p68
      %p70 = scmp.ne.s32.totalorder %s62, %s65
      %p71 = scmp.eq.s32.totalorder %s12, 0
      %p72 = por %p70, %p71
      %p73 = scmp.ne.s32.totalorder %s62, %s65
      %p74 = scmp.eq.s32.totalorder %s17, 1
      %p75 = por %p73, %p74
      %p76 = scmp.ne.s32.totalorder %s65, %s66
      %p77 = scmp.eq.s32.totalorder %s17, 0
      %p78 = por %p76, %p77
      %p79 = scmp.ne.s32.totalorder %s65, %s66
      %p80 = scmp.eq.s32.totalorder %s18, 1
      %p81 = por %p79, %p80
      %p83 = scmp.ne.s32.totalorder %s66, %s82
      %p84 = scmp.eq.s32.totalorder %s18, 0
      %p85 = por %p83, %p84
      %s86 = ssub.s32 %s20, %s27
      %p87 = scmp.eq.s32.totalorder %s86, 0
      %s89 = sadd.s32 %s88, 1
      %s90 = scalar_select %p87, %s88, %s89
      %p93 = pneg %p87
      %p94 = scmp.eq.s32.totalorder %s12, 1
      %p95 = por %p93, %p94
      %p96 = scmp.ne.s32.totalorder %s88, %s91
      %p97 = scmp.eq.s32.totalorder %s12, 0
      %p98 = por %p96, %p97
      %p99 = scmp.ne.s32.totalorder %s88, %s91
      %p100 = scmp.eq.s32.totalorder %s17, 1
      %p101 = por %p99, %p100
      %p102 = scmp.ne.s32.totalorder %s91, %s92
      %p103 = scmp.eq.s32.totalorder %s17, 0
      %p104 = por %p102, %p103
      %p105 = scmp.ne.s32.totalorder %s91, %s92
      %p106 = scmp.eq.s32.totalorder %s18, 1
      %p107 = por %p105, %p106
      %p109 = scmp.ne.s32.totalorder %s92, %s108
      %p110 = scmp.eq.s32.totalorder %s18, 0
      %p111 = por %p109, %p110
      %s112 = ssub.s32 %s19, %s31
      %s113 = ssub.s32 %s20, %s27
      %s114 = sor.u32 %s112, %s113
      %p115 = scmp.eq.s32.totalorder %s114, 0
      %s117 = sadd.s32 %s116, 1
      %s118 = scalar_select %p115, %s116, %s117
      %p121 = pneg %p115
      %p122 = scmp.eq.s32.totalorder %s12, 1
      %p123 = por %p121, %p122
      %p124 = scmp.ne.s32.totalorder %s116, %s119
      %p125 = scmp.eq.s32.totalorder %s12, 0
      %p126 = por %p124, %p125
      %p127 = scmp.ne.s32.totalorder %s116, %s119
      %p128 = scmp.eq.s32.totalorder %s17, 1
      %p129 = por %p127, %p128
      %p130 = scmp.ne.s32.totalorder %s119, %s120
      %p131 = scmp.eq.s32.totalorder %s17, 0
      %p132 = por %p130, %p131
      %p133 = scmp.ne.s32.totalorder %s119, %s120
      %p134 = scmp.eq.s32.totalorder %s18, 1
      %p135 = por %p133, %p134
      %p137 = scmp.ne.s32.totalorder %s120, %s136
      %p138 = scmp.eq.s32.totalorder %s18, 0
      %p139 = por %p137, %p138
      %p140 = scmp.le.s32.totalorder 1, %s12
      %p141 = scmp.lt.s32.totalorder %s12, 3
      %p142 = pnand %p140, %p141
      %p143 = pneg %p142
      // Predicated region
      $region9: #{llama_forward.22} parent=5 // pred_check
        _
      $region10: #{llama_forward.22} parent=5 // pred_check_branch
        %145 = sbr.rel (%p142) target = $region12
      $region11: #{llama_forward.22} parent=5 // pred_region
        %s146 = ssub.s32 %s12, 1
        // Predicated region
        $region13: #{llama_forward.22} parent=11 // pred_check
          %p147 = pneg %p78
        $region14: #{llama_forward.22} parent=11 // pred_check_branch
          %149 = sbr.rel (%p147) target = $region16
        $region15: #{llama_forward.22} parent=11 // pred_region
          %p150 = scmp.lt.s32.totalorder %s22, 0
          %s151 = scalar_select %p150, %s22, 0
          %s152 = smul.addr %s151, 8
          %s153 = scalar_lea.vmem %s1, %s152
        $region16: #{llama_forward.22} parent=11 // pred_fallthru
          _
        // Predicated region
        $region17: #{llama_forward.22} parent=11 // pred_check
          %p154 = pneg %p104
        $region18: #{llama_forward.22} parent=11 // pred_check_branch
          %156 = sbr.rel (%p154) target = $region20
        $region19: #{llama_forward.22} parent=11 // pred_region
          %p157 = scmp.lt.s32.totalorder %s22, 0
          %s158 = scalar_select %p157, %s22, 0
          %s159 = smul.addr %s158, 8
          %s160 = scalar_lea.vmem %s2, %s159
        $region20: #{llama_forward.22} parent=11 // pred_fallthru
          _
      $region12: #{llama_forward.22} parent=5 // pred_fallthru
        _
      %p161 = scmp.lt.s32.totalorder %s12, 2
      // Predicated region
      $region21: #{llama_forward.22} parent=5 // pred_check
        %p162 = pneg %p161
      $region22: #{llama_forward.22} parent=5 // pred_check_branch
        %164 = sbr.rel (%p162) target = $region24
      $region23: #{llama_forward.22} parent=5 // pred_region
        // Predicated region
        $region25: #{llama_forward.22} parent=23 // pred_check
          %p165 = pneg %p46
        $region26: #{llama_forward.22} parent=23 // pred_check_branch
          %167 = sbr.rel (%p165) target = $region28
        $region27: #{llama_forward.22} parent=23 // pred_region
          %p168 = scmp.lt.s32.totalorder %s19, 1
          %s169 = scalar_select %p168, %s19, 1
          %p170 = scmp.lt.s32.totalorder %s20, 0
          %s171 = scalar_select %p170, %s20, 0
          %s172 = sadd.s32 %s171, %s169
          %s173 = smul.addr %s172, 4
          %s174 = scalar_lea.vmem %s0, %s173
        $region28: #{llama_forward.22} parent=23 // pred_fallthru
          _
      $region24: #{llama_forward.22} parent=5 // pred_fallthru
        _
      %p175 = scmp.le.s32.totalorder 1, %s12
      %p176 = scmp.lt.s32.totalorder %s12, 3
      %p177 = pnand %p175, %p176
      %p178 = pneg %p177
      // Predicated region
      $region29: #{llama_forward.22} parent=5 // pred_check
        _
      $region30: #{llama_forward.22} parent=5 // pred_check_branch
        %180 = sbr.rel (%p177) target = $region32
      $region31: #{llama_forward.22} parent=5 // pred_region
        %s181 = ssub.s32 %s12, 1
        %p182 = scmp.lt.s32.totalorder %s21, 1
        %s183 = scalar_select %p182, %s21, 1
        %p184 = scmp.lt.s32.totalorder %s22, 0
        %s185 = scalar_select %p184, %s22, 0
        %s186 = sadd.s32 %s185, %s183
        %s187 = smul.addr %s186, 4
        %s188 = scalar_lea.vmem %s0, %s187
        %p189 = pneg %p52
        %p190 = pneg %p49
        %p191 = scmp.lt.s32.totalorder %s22, 0
        %s192 = scalar_select %p191, %s22, 0
        %s193 = smul.addr %s192, 8
        %s194 = scalar_lea.vmem %s1, %s193
        %p195 = pneg %p78
        %p196 = pneg %p75
        %p197 = scmp.lt.s32.totalorder %s22, 0
        %s198 = scalar_select %p197, %s22, 0
        %s199 = smul.addr %s198, 8
        %s200 = scalar_lea.vmem %s2, %s199
        %p201 = pneg %p104
        %p202 = pneg %p101
        %p203 = pneg %p132
        %p204 = pneg %p129
        %s205 = sand.u32 %s119, 1
        %s206 = scalar_lea.sflag [#allocation3], %s205
        %s207 = sand.u32 %s119, 1
        %s208 = smul.addr %s207, 4
        %s209 = scalar_lea.vmem [#allocation2], %s208
        %p210 = scmp.lt.s32.totalorder %s21, 1
        %s211 = scalar_select %p210, %s21, 1
        %p212 = scmp.lt.s32.totalorder %s22, 0
        %s213 = scalar_select %p212, %s22, 0
        %s214 = sadd.s32 %s213, %s211
        %s215 = smul.addr %s214, 4
        %s216 = scalar_lea.vmem %s0, %s215
        %p217 = scmp.lt.s32.totalorder %s22, 0
        %s218 = scalar_select %p217, %s22, 0
        %s219 = smul.addr %s218, 8
        %s220 = scalar_lea.vmem %s1, %s219
        %p221 = scmp.lt.s32.totalorder %s22, 0
        %s222 = scalar_select %p221, %s22, 0
        %s223 = smul.addr %s222, 8
        %s224 = scalar_lea.vmem %s2, %s223
        %v225 = vld [vmem:[%s216] sm:$0xf]
        %v226 = vunpack.c.l.bf16 %v225
        %227 = vrot.lane.b32.xlu0 %v226, 127
        %v228 = vpop.permute.xlu0 %227
        %229 = vrot.lane.b32.xlu0 %v226, 1
        %v230 = vpop.permute.xlu0 %229
        %v231 = vlaneseq
        %v232 = vand.u32 %v231, 127
        %vm233 = vcmp.lt.s32.totalorder %v232, 0
        %v234 = vsub.s32 0, %v232
        %v235 = vsel %vm233, %v234, %v232
        %v236 = vshrl.u32 %v235, 1
        %v237 = vand.u32 %v235, 1
        %v238 = vsub.s32 0, %v237
        %v239 = vsel %vm233, %v238, %v237
        %vm240 = vcmp.ne.s32.totalorder %v239, 0
        %vm241 = vcmp.lt.s32.totalorder %v239, 0
        %vm242 = vmand %vm241, %vm240
        %v243 = vadd.s32 %v239, 2
        %v244 = vsel %vm242, %v243, %v239
        %vm245 = vcmp.eq.s32.totalorder %v244, 0
        %v246 = vsel %vm245, %v228, %v230
        %v247 = vld [vmem:[%s220] sm:$0xff]
        %v248 = vmul.f32 %v226, %v247
        %v249 = vld [vmem:[%s224] sm:$0xff]
        %v250 = vmul.f32 %v246, %v249
        %v251 = vadd.f32 %v248, %v250
        %v252 = vpack.c.bf16 %v251, %v251
        %253 = vst [vmem:[%s209] sm:$0xf] %v252
        %s254 = sand.u32 %s119, 1
        %s255 = scalar_lea.sflag [#allocation3], %s254
        %s256 = sand.u32 %s119, 1
        %s257 = smul.addr %s256, 4
        %s258 = scalar_lea.vmem [#allocation2], %s257
        // Predicated region
        $region33: #{llama_forward.22} parent=31 // pred_check
          %p259 = pneg %p129
        $region34: #{llama_forward.22} parent=31 // pred_check_branch
          %261 = sbr.rel (%p259) target = $region36
        $region35: #{llama_forward.22} parent=31 // pred_region
          %s263 = ssub.s32 64, 64
          %264 = vsyncadd %s255, %s263
          %s265 = sadd.s32 %s22, %s21
          %s266 = smul.addr %s265, 64
          %s267 = scalar_lea.hbm %s3, %s266
          %s269 = sshll.u32 %s258, 4
          %s270 = int_to_ptr.vmem [resolvable:$true] %s269
          %272 = dma.vmem_to_hbm [thread:$0]  %s270, 64, %s267, %s255
        $region36: #{llama_forward.22} parent=31 // pred_fallthru
          _
      $region32: #{llama_forward.22} parent=5 // pred_fallthru
        _
      %p273 = scmp.le.s32.totalorder 2, %s12
      // Predicated region
      $region37: #{llama_forward.22} parent=5 // pred_check
        %p274 = pneg %p273
      $region38: #{llama_forward.22} parent=5 // pred_check_branch
        %276 = sbr.rel (%p274) target = $region40
      $region39: #{llama_forward.22} parent=5 // pred_region
        %s277 = ssub.s32 %s12, 2
        // Predicated region
        $region41: #{llama_forward.22} parent=39 // pred_check
          %p278 = pneg %p135
        $region42: #{llama_forward.22} parent=39 // pred_check_branch
          %280 = sbr.rel (%p278) target = $region44
        $region43: #{llama_forward.22} parent=39 // pred_region
          %s281 = sand.u32 %s120, 1
          %s282 = scalar_lea.sflag [#allocation3], %s281
          %s283 = sand.u32 %s120, 1
          %s284 = smul.addr %s283, 4
          %s285 = scalar_lea.vmem [#allocation2], %s284
          %286 = dma.done %s282, 64
        $region44: #{llama_forward.22} parent=39 // pred_fallthru
          _
      $region40: #{llama_forward.22} parent=5 // pred_fallthru
        _
    $region6: #{llama_forward.22} parent=1 // loop_footer
      %s16 = sadd.s32 1, %s12
    $region7: #{llama_forward.22} parent=1 // loop_footer_branch
      %11 = sbr.rel target = $region3
    $region8: #{llama_forward.22} parent=1 // loop_exit
      _
    %287 = vsyncpa [#allocation3], 1
    %s288 = scalar_lea.sflag [#allocation3], 1
    %289 = vsyncpa %s288, 1

// kernel: llama_forward.21
$region0: #{llama_forward.21}
  #allocation0 [shape = 'u32[]', space=smem, size = 0x4, offset = 0x4, fixed_abs, tag = 'smem constant byte address 0x4 - core index']
  #allocation1 [shape = 'u32[144,128]{1,0:T(1,128)}', space=vmem, size = 0x12000, scoped, tag = 'internal scratch']
  #allocation2 [shape = 'f32[16,256]{1,0:T(8,128)}', space=vmem, size = 0x4000, scoped, tag = 'scratch operand']
  %s0 = inlined_call_operand.hbm [shape: bf16[16,128], index: 0, kind: input, shape index: {}]
  %s1 = inlined_call_operand.hbm [shape: bf16[128,256], index: 1, kind: input, shape index: {}]
  %s2 = inlined_call_operand.hbm [shape: bf16[16,256], index: 2, kind: output, shape index: {}]
  %s3 = sld [smem:[#allocation0]]
  $region34: #{llama_forward.21} parent=0
    _
  %s5 = ssub.s32 1, %s3
  %s6 = scalar_select 0, %s5, %s3
  $region1: #{llama_forward.21} parent=0
    #allocation3 [shape = 'u8[4096]{0}', space=vmem, size = 0x1000, scoped, tag = 'input window, operand 0, single buffered']
    #allocation4 [shape = 's32[1]{0}', space=sflag, size = 0x4, scoped, tag = 'scoped memory for llama_forward.21']
    #allocation5 [shape = 's32[1]{0}', space=sflag, size = 0x4, scoped, tag = 'scoped memory for llama_forward.21']
    #allocation6 [shape = 'u8[65536]{0}', space=vmem, size = 0x10000, scoped, tag = 'input window, operand 1, single buffered']
    #allocation7 [shape = 's32[1]{0}', space=sflag, size = 0x4, scoped, tag = 'scoped memory for llama_forward.21']
    #allocation8 [shape = 'u8[8192]{0}', space=vmem, size = 0x2000, scoped, tag = 'output window, operand 0, single buffered']
    %7 = vsyncpa [#allocation4], 0
    %8 = vsyncpa [#allocation7], 0
    %9 = vsyncpa [#allocation5], 0
    // Predicated region
    $region2: #{llama_forward.21} parent=1 // pred_check
      _
    $region3: #{llama_forward.21} parent=1 // pred_check_branch
      %11 = sbr.rel (0) target = $region5
    $region4: #{llama_forward.21} parent=1 // pred_region
      %s13 = ssub.s32 128, 128
      %14 = vsyncadd [#allocation4], %s13
      %s15 = sshll.u32 [#allocation3], 4
      %s16 = int_to_ptr.vmem [resolvable:$true] %s15
      %21 = dma.hbm_to_vmem [thread:$0]  %s0, 128, %s16, [#allocation4], 64, 64, 4
    $region5: #{llama_forward.21} parent=1 // pred_fallthru
      _
    // Predicated region
    $region6: #{llama_forward.21} parent=1 // pred_check
      _
    $region7: #{llama_forward.21} parent=1 // pred_check_branch
      %23 = sbr.rel (0) target = $region9
    $region8: #{llama_forward.21} parent=1 // pred_region
      %s25 = ssub.s32 2048, 2048
      %26 = vsyncadd [#allocation7], %s25
      %s27 = sshll.u32 [#allocation6], 4
      %s28 = int_to_ptr.vmem [resolvable:$true] %s27
      %33 = dma.hbm_to_vmem [thread:$0]  %s1, 2048, %s28, [#allocation7], 128, 128, 8
    $region9: #{llama_forward.21} parent=1 // pred_fallthru
      _
    // Predicated region
    $region10: #{llama_forward.21} parent=1 // pred_check
      _
    $region11: #{llama_forward.21} parent=1 // pred_check_branch
      %35 = sbr.rel (0) target = $region13
    $region12: #{llama_forward.21} parent=1 // pred_region
      %36 = dma.done [#allocation4], 128
    $region13: #{llama_forward.21} parent=1 // pred_fallthru
      _
    // Predicated region
    $region14: #{llama_forward.21} parent=1 // pred_check
      _
    $region15: #{llama_forward.21} parent=1 // pred_check_branch
      %38 = sbr.rel (0) target = $region17
    $region16: #{llama_forward.21} parent=1 // pred_region
      %39 = dma.done [#allocation7], 2048
    $region17: #{llama_forward.21} parent=1 // pred_fallthru
      _
    %p41 = scmp.eq.s32.totalorder 0, 0
    // Predicated region
    $region18: #{llama_forward.21} parent=1 // pred_check
      %p42 = pneg %p41
    $region19: #{llama_forward.21} parent=1 // pred_check_branch
      %44 = sbr.rel (%p42) target = $region21
    $region20: #{llama_forward.21} parent=1 // pred_region
      %45 = vst [vmem:[#allocation2] sm:$0xff] 0.0
      %46 = vst [vmem:[#allocation2 + $0x8] sm:$0xff] 0.0
      %47 = vst [vmem:[#allocation2 + $0x10] sm:$0xff] 0.0
      %48 = vst [vmem:[#allocation2 + $0x18] sm:$0xff] 0.0
    $region21: #{llama_forward.21} parent=1 // pred_fallthru
      _
    %v49 = vld [vmem:[#allocation2] sm:$0xff]
    %v50 = vld [vmem:[#allocation2 + $0x8] sm:$0xff]
    %v51 = vld [vmem:[#allocation2 + $0x10] sm:$0xff]
    %v52 = vld [vmem:[#allocation2 + $0x18] sm:$0xff]
    %v53 = vld [vmem:[#allocation3] sm:$0xf]
    %v54 = vld [vmem:[#allocation3 + $0x4] sm:$0xf]
    %v55 = vld [vmem:[#allocation6] sm:$0xff]
    %v56 = vld [vmem:[#allocation6 + $0x8] sm:$0xff]
    %v57 = vld [vmem:[#allocation6 + $0x10] sm:$0xff]
    %v58 = vld [vmem:[#allocation6 + $0x18] sm:$0xff]
    %v59 = vld [vmem:[#allocation6 + $0x20] sm:$0xff]
    %v60 = vld [vmem:[#allocation6 + $0x28] sm:$0xff]
    %v61 = vld [vmem:[#allocation6 + $0x30] sm:$0xff]
    %v62 = vld [vmem:[#allocation6 + $0x38] sm:$0xff]
    %v63 = vld [vmem:[#allocation6 + $0x40] sm:$0xff]
    %v64 = vld [vmem:[#allocation6 + $0x48] sm:$0xff]
    %v65 = vld [vmem:[#allocation6 + $0x50] sm:$0xff]
    %v66 = vld [vmem:[#allocation6 + $0x58] sm:$0xff]
    %v67 = vld [vmem:[#allocation6 + $0x60] sm:$0xff]
    %v68 = vld [vmem:[#allocation6 + $0x68] sm:$0xff]
    %v69 = vld [vmem:[#allocation6 + $0x70] sm:$0xff]
    %v70 = vld [vmem:[#allocation6 + $0x78] sm:$0xff]
    %v73 = vunpack.c.l.b16 %v53
    %v74 = vunpack.c.l.b16 %v54
    %v75 = vpack.c.b16 %v74, %v73
    %v93 = vunpack.c.l.b16 %v55
    %v94 = vunpack.c.h.b16 %v55
    %v95 = vunpack.c.l.b16 %v56
    %v96 = vunpack.c.h.b16 %v56
    %v97 = vunpack.c.l.b16 %v57
    %v98 = vunpack.c.h.b16 %v57
    %v99 = vunpack.c.l.b16 %v58
    %v100 = vunpack.c.h.b16 %v58
    %v101 = vunpack.c.l.b16 %v59
    %v102 = vunpack.c.h.b16 %v59
    %v103 = vunpack.c.l.b16 %v60
    %v104 = vunpack.c.h.b16 %v60
    %v105 = vunpack.c.l.b16 %v61
    %v106 = vunpack.c.h.b16 %v61
    %v107 = vunpack.c.l.b16 %v62
    %v108 = vunpack.c.h.b16 %v62
    %v109 = vunpack.c.l.b16 %v63
    %v110 = vunpack.c.h.b16 %v63
    %v111 = vunpack.c.l.b16 %v64
    %v112 = vunpack.c.h.b16 %v64
    %v113 = vunpack.c.l.b16 %v65
    %v114 = vunpack.c.h.b16 %v65
    %v115 = vunpack.c.l.b16 %v66
    %v116 = vunpack.c.h.b16 %v66
    %v117 = vunpack.c.l.b16 %v67
    %v118 = vunpack.c.h.b16 %v67
    %v119 = vunpack.c.l.b16 %v68
    %v120 = vunpack.c.h.b16 %v68
    %v121 = vunpack.c.l.b16 %v69
    %v122 = vunpack.c.h.b16 %v69
    %v123 = vunpack.c.l.b16 %v70
    %v124 = vunpack.c.h.b16 %v70
    %v125 = vpack.c.b16 %v95, %v93
    %v126 = vpack.c.b16 %v96, %v94
    %v127 = vpack.c.b16 %v99, %v97
    %v128 = vpack.c.b16 %v100, %v98
    %v129 = vpack.c.b16 %v103, %v101
    %v130 = vpack.c.b16 %v104, %v102
    %v131 = vpack.c.b16 %v107, %v105
    %v132 = vpack.c.b16 %v108, %v106
    %v133 = vpack.c.b16 %v111, %v109
    %v134 = vpack.c.b16 %v112, %v110
    %v135 = vpack.c.b16 %v115, %v113
    %v136 = vpack.c.b16 %v116, %v114
    %v137 = vpack.c.b16 %v119, %v117
    %v138 = vpack.c.b16 %v120, %v118
    %v139 = vpack.c.b16 %v123, %v121
    %v140 = vpack.c.b16 %v124, %v122
    %157 = vmatprep.subr.bf16.mxu0 %v126
    %158 = vmatpush1.bf16.msra.mxu0 %v125
    %159 = vmatprep.subr.bf16.mxu0 %v128
    %160 = vmatpush1.bf16.msra.mxu0 %v127
    %161 = vmatprep.subr.bf16.mxu0 %v130
    %162 = vmatpush1.bf16.msra.mxu0 %v129
    %163 = vmatprep.subr.bf16.mxu0 %v132
    %164 = vmatpush1.bf16.msra.mxu0 %v131
    %165 = vmatprep.subr.bf16.mxu0 %v134
    %166 = vmatpush1.bf16.msra.mxu0 %v133
    %167 = vmatprep.subr.bf16.mxu0 %v136
    %168 = vmatpush1.bf16.msra.mxu0 %v135
    %169 = vmatprep.subr.bf16.mxu0 %v138
    %170 = vmatpush1.bf16.msra.mxu0 %v137
    %171 = vmatprep.subr.bf16.mxu0 %v140
    %172 = vmatpush1.bf16.msra.mxu0 %v139
    %173 = vmatprep.subr.bf16.mxu0 0
    %174 = vmatpush1.bf16.msra.mxu0 0
    %175 = vmatprep.subr.bf16.mxu0 0
    %176 = vmatpush1.bf16.msra.mxu0 0
    %177 = vmatprep.subr.bf16.mxu0 0
    %178 = vmatpush1.bf16.msra.mxu0 0
    %179 = vmatprep.subr.bf16.mxu0 0
    %180 = vmatpush1.bf16.msra.mxu0 0
    %181 = vmatprep.subr.bf16.mxu0 0
    %182 = vmatpush1.bf16.msra.mxu0 0
    %183 = vmatprep.subr.bf16.mxu0 0
    %184 = vmatpush1.bf16.msra.mxu0 0
    %185 = vmatprep.subr.bf16.mxu0 0
    %186 = vmatpush1.bf16.msra.mxu0 0
    %187 = vmatprep.subr.bf16.mxu0 0
    %188 = vmatpush1.bf16.msra.mxu0 0
    %189 = vmatprep.mubr.bf16.mxu0 0
    %190 = vmatmul.mubr.bf16.gmra.mrb[0].mxu0 %v75
    %v191 = vpop.f32.mrb[0].mxu0
    %v192 = vadd.f32 0.0, %v191
    %v193 = vpop.f32.mrb[0].mxu0
    %v194 = vadd.f32 0.0, %v193
    %v195 = vpop.f32.mrb[0].mxu0
    %v196 = vadd.f32 0.0, %v195
    %v197 = vpop.f32.mrb[0].mxu0
    %v198 = vadd.f32 0.0, %v197
    %199 = vdwg.mxu0
    %v200 = vadd.f32 %v49, %v192
    %v201 = vadd.f32 %v50, %v194
    %v202 = vadd.f32 %v51, %v196
    %v203 = vadd.f32 %v52, %v198
    %204 = vst [vmem:[#allocation2] sm:$0xff] %v200
    %205 = vst [vmem:[#allocation2 + $0x8] sm:$0xff] %v201
    %206 = vst [vmem:[#allocation2 + $0x10] sm:$0xff] %v202
    %207 = vst [vmem:[#allocation2 + $0x18] sm:$0xff] %v203
    // Predicated region
    $region22: #{llama_forward.21} parent=1 // pred_check
      %p208 = pneg %p41
    $region23: #{llama_forward.21} parent=1 // pred_check_branch
      %210 = sbr.rel (%p208) target = $region25
    $region24: #{llama_forward.21} parent=1 // pred_region
      %v211 = vld [vmem:[#allocation2] sm:$0xff]
      %v212 = vld [vmem:[#allocation2 + $0x8] sm:$0xff]
      %v213 = vld [vmem:[#allocation2 + $0x10] sm:$0xff]
      %v214 = vld [vmem:[#allocation2 + $0x18] sm:$0xff]
      %v215 = vpack.c.bf16 %v213, %v211
      %v216 = vpack.c.bf16 %v214, %v212
      %v219 = vunpack.c.l.b16 %v215
      %v220 = vunpack.c.l.b16 %v216
      %v221 = vunpack.c.h.b16 %v215
      %v222 = vunpack.c.h.b16 %v216
      %v223 = vpack.c.b16 %v220, %v219
      %v224 = vpack.c.b16 %v222, %v221
      %227 = vst [vmem:[#allocation8] sm:$0xff] %v223
      %228 = vst [vmem:[#allocation8 + $0x8] sm:$0xff] %v224
    $region25: #{llama_forward.21} parent=1 // pred_fallthru
      _
    // Predicated region
    $region26: #{llama_forward.21} parent=1 // pred_check
      _
    $region27: #{llama_forward.21} parent=1 // pred_check_branch
      %230 = sbr.rel (0) target = $region29
    $region28: #{llama_forward.21} parent=1 // pred_region
      %s232 = ssub.s32 256, 256
      %233 = vsyncadd [#allocation5], %s232
      %s234 = sshll.u32 [#allocation8], 4
      %s235 = int_to_ptr.vmem [resolvable:$true] %s234
      %240 = dma.vmem_to_hbm [thread:$0]  %s235, 256, %s2, [#allocation5], 128, 128, 8
    $region29: #{llama_forward.21} parent=1 // pred_fallthru
      _
    // Predicated region
    $region30: #{llama_forward.21} parent=1 // pred_check
      _
    $region31: #{llama_forward.21} parent=1 // pred_check_branch
      %242 = sbr.rel (0) target = $region33
    $region32: #{llama_forward.21} parent=1 // pred_region
      %243 = dma.done [#allocation5], 256
    $region33: #{llama_forward.21} parent=1 // pred_fallthru
      _
    %244 = vsyncpa [#allocation4], 1
    %245 = vsyncpa [#allocation7], 1
    %246 = vsyncpa [#allocation5], 1

// kernel: llama_forward.23
$region0: #{llama_forward.23}
  #allocation0 [shape = 'u32[]', space=smem, size = 0x4, offset = 0x4, fixed_abs, tag = 'smem constant byte address 0x4 - core index']
  #allocation1 [shape = 'u32[144,128]{1,0:T(1,128)}', space=vmem, size = 0x12000, scoped, tag = 'internal scratch']
  %s0 = inlined_call_operand.vmem [shape: bf16[2,8,64], index: 0, kind: input, shape index: {}]
  %s1 = inlined_call_operand.vmem [shape: f32[8,64], index: 1, kind: input, shape index: {}]
  %s2 = inlined_call_operand.vmem [shape: f32[8,64], index: 2, kind: input, shape index: {}]
  %s3 = inlined_call_operand.vmem [shape: bf16[2,8,64], index: 3, kind: output, shape index: {}]
  %s4 = sld [smem:[#allocation0]]
  $region45: #{llama_forward.23} parent=0
    _
  %s6 = ssub.s32 1, %s4
  %s7 = scalar_select 0, %s6, %s4
  loop: start=0, step=1, limit=4
  $region2: #{llama_forward.23} parent=0 // loop_pre_header
    _
  $region3: #{llama_forward.23} parent=0 // loop_header
    %s9 = sphi 0, %s13
    %p10 = scmp.ge.s32.totalorder %s9, 4
    %s16 = sphi 0, %s28
    %s17 = sphi 0, %s24
    %s18 = sphi 0, %s16
    %s19 = sphi 0, %s17
    %s20 = sphi 0, %s18
    %s21 = sphi 0, %s19
    %s33 = sphi 0, %s35
    %s36 = sphi 0, %s33
    %s37 = sphi 0, %s36
    %s53 = sphi 0, %s37
    %s59 = sphi 0, %s61
    %s62 = sphi 0, %s59
    %s63 = sphi 0, %s62
    %s79 = sphi 0, %s63
    %s85 = sphi 0, %s87
    %s88 = sphi 0, %s85
    %s89 = sphi 0, %s88
    %s105 = sphi 0, %s89
    %s113 = sphi 0, %s115
    %s116 = sphi 0, %s113
    %s117 = sphi 0, %s116
    %s133 = sphi 0, %s117
  $region4: #{llama_forward.23} parent=0 // loop_header_branch
    %12 = sbr.rel (%p10) target = $region8
  $region5: #{llama_forward.23} parent=0 // loop_body
    %s14 = ssub.s32 %s9, 1
    %s15 = ssub.s32 %s9, 2
    %s22 = sadd.s32 1, %s17
    %p23 = scmp.ge.s32.totalorder %s22, 1
    %s24 = scalar_select %p23, 0, %s22
    %s25 = sadd.s32 1, %s16
    %s26 = scalar_select %p23, %s25, %s16
    %p27 = scmp.ge.s32.totalorder %s26, 2
    %s28 = scalar_select %p27, 0, %s26
    %s29 = ssub.s32 %s16, %s28
    %s30 = ssub.s32 %s17, %s24
    %s31 = sor.u32 %s29, %s30
    %p32 = scmp.eq.s32.totalorder %s31, 0
    %s34 = sadd.s32 %s33, 1
    %s35 = scalar_select %p32, %s33, %s34
    %p38 = pneg %p32
    %p39 = scmp.eq.s32.totalorder %s9, 1
    %p40 = por %p38, %p39
    %p41 = scmp.ne.s32.totalorder %s33, %s36
    %p42 = scmp.eq.s32.totalorder %s9, 0
    %p43 = por %p41, %p42
    %p44 = scmp.ne.s32.totalorder %s33, %s36
    %p45 = scmp.eq.s32.totalorder %s14, 1
    %p46 = por %p44, %p45
    %p47 = scmp.ne.s32.totalorder %s36, %s37
    %p48 = scmp.eq.s32.totalorder %s14, 0
    %p49 = por %p47, %p48
    %p50 = scmp.ne.s32.totalorder %s36, %s37
    %p51 = scmp.eq.s32.totalorder %s15, 1
    %p52 = por %p50, %p51
    %p54 = scmp.ne.s32.totalorder %s37, %s53
    %p55 = scmp.eq.s32.totalorder %s15, 0
    %p56 = por %p54, %p55
    %s57 = ssub.s32 %s17, %s24
    %p58 = scmp.eq.s32.totalorder %s57, 0
    %s60 = sadd.s32 %s59, 1
    %s61 = scalar_select %p58, %s59, %s60
    %p64 = pneg %p58
    %p65 = scmp.eq.s32.totalorder %s9, 1
    %p66 = por %p64, %p65
    %p67 = scmp.ne.s32.totalorder %s59, %s62
    %p68 = scmp.eq.s32.totalorder %s9, 0
    %p69 = por %p67, %p68
    %p70 = scmp.ne.s32.totalorder %s59, %s62
    %p71 = scmp.eq.s32.totalorder %s14, 1
    %p72 = por %p70, %p71
    %p73 = scmp.ne.s32.totalorder %s62, %s63
    %p74 = scmp.eq.s32.totalorder %s14, 0
    %p75 = por %p73, %p74
    %p76 = scmp.ne.s32.totalorder %s62, %s63
    %p77 = scmp.eq.s32.totalorder %s15, 1
    %p78 = por %p76, %p77
    %p80 = scmp.ne.s32.totalorder %s63, %s79
    %p81 = scmp.eq.s32.totalorder %s15, 0
    %p82 = por %p80, %p81
    %s83 = ssub.s32 %s17, %s24
    %p84 = scmp.eq.s32.totalorder %s83, 0
    %s86 = sadd.s32 %s85, 1
    %s87 = scalar_select %p84, %s85, %s86
    %p90 = pneg %p84
    %p91 = scmp.eq.s32.totalorder %s9, 1
    %p92 = por %p90, %p91
    %p93 = scmp.ne.s32.totalorder %s85, %s88
    %p94 = scmp.eq.s32.totalorder %s9, 0
    %p95 = por %p93, %p94
    %p96 = scmp.ne.s32.totalorder %s85, %s88
    %p97 = scmp.eq.s32.totalorder %s14, 1
    %p98 = por %p96, %p97
    %p99 = scmp.ne.s32.totalorder %s88, %s89
    %p100 = scmp.eq.s32.totalorder %s14, 0
    %p101 = por %p99, %p100
    %p102 = scmp.ne.s32.totalorder %s88, %s89
    %p103 = scmp.eq.s32.totalorder %s15, 1
    %p104 = por %p102, %p103
    %p106 = scmp.ne.s32.totalorder %s89, %s105
    %p107 = scmp.eq.s32.totalorder %s15, 0
    %p108 = por %p106, %p107
    %s109 = ssub.s32 %s16, %s28
    %s110 = ssub.s32 %s17, %s24
    %s111 = sor.u32 %s109, %s110
    %p112 = scmp.eq.s32.totalorder %s111, 0
    %s114 = sadd.s32 %s113, 1
    %s115 = scalar_select %p112, %s113, %s114
    %p118 = pneg %p112
    %p119 = scmp.eq.s32.totalorder %s9, 1
    %p120 = por %p118, %p119
    %p121 = scmp.ne.s32.totalorder %s113, %s116
    %p122 = scmp.eq.s32.totalorder %s9, 0
    %p123 = por %p121, %p122
    %p124 = scmp.ne.s32.totalorder %s113, %s116
    %p125 = scmp.eq.s32.totalorder %s14, 1
    %p126 = por %p124, %p125
    %p127 = scmp.ne.s32.totalorder %s116, %s117
    %p128 = scmp.eq.s32.totalorder %s14, 0
    %p129 = por %p127, %p128
    %p130 = scmp.ne.s32.totalorder %s116, %s117
    %p131 = scmp.eq.s32.totalorder %s15, 1
    %p132 = por %p130, %p131
    %p134 = scmp.ne.s32.totalorder %s117, %s133
    %p135 = scmp.eq.s32.totalorder %s15, 0
    %p136 = por %p134, %p135
    %p137 = scmp.le.s32.totalorder 1, %s9
    %p138 = scmp.lt.s32.totalorder %s9, 3
    %p139 = pnand %p137, %p138
    %p140 = pneg %p139
    // Predicated region
    $region9: #{llama_forward.23} parent=5 // pred_check
      _
    $region10: #{llama_forward.23} parent=5 // pred_check_branch
      %142 = sbr.rel (%p139) target = $region12
    $region11: #{llama_forward.23} parent=5 // pred_region
      %s143 = ssub.s32 %s9, 1
      // Predicated region
      $region13: #{llama_forward.23} parent=11 // pred_check
        %p144 = pneg %p75
      $region14: #{llama_forward.23} parent=11 // pred_check_branch
        %146 = sbr.rel (%p144) target = $region16
      $region15: #{llama_forward.23} parent=11 // pred_region
        %p147 = scmp.lt.s32.totalorder %s19, 0
        %s148 = scalar_select %p147, %s19, 0
        %s149 = smul.addr %s148, 8
        %s150 = scalar_lea.vmem %s1, %s149
      $region16: #{llama_forward.23} parent=11 // pred_fallthru
        _
      // Predicated region
      $region17: #{llama_forward.23} parent=11 // pred_check
        %p151 = pneg %p101
      $region18: #{llama_forward.23} parent=11 // pred_check_branch
        %153 = sbr.rel (%p151) target = $region20
      $region19: #{llama_forward.23} parent=11 // pred_region
        %p154 = scmp.lt.s32.totalorder %s19, 0
        %s155 = scalar_select %p154, %s19, 0
        %s156 = smul.addr %s155, 8
        %s157 = scalar_lea.vmem %s2, %s156
      $region20: #{llama_forward.23} parent=11 // pred_fallthru
        _
    $region12: #{llama_forward.23} parent=5 // pred_fallthru
      _
    %p158 = scmp.lt.s32.totalorder %s9, 2
    // Predicated region
    $region21: #{llama_forward.23} parent=5 // pred_check
      %p159 = pneg %p158
    $region22: #{llama_forward.23} parent=5 // pred_check_branch
      %161 = sbr.rel (%p159) target = $region24
    $region23: #{llama_forward.23} parent=5 // pred_region
      // Predicated region
      $region25: #{llama_forward.23} parent=23 // pred_check
        %p162 = pneg %p43
      $region26: #{llama_forward.23} parent=23 // pred_check_branch
        %164 = sbr.rel (%p162) target = $region28
      $region27: #{llama_forward.23} parent=23 // pred_region
        %p165 = scmp.lt.s32.totalorder %s16, 1
        %s166 = scalar_select %p165, %s16, 1
        %p167 = scmp.lt.s32.totalorder %s17, 0
        %s168 = scalar_select %p167, %s17, 0
        %s169 = sadd.s32 %s168, %s166
        %s170 = smul.addr %s169, 4
        %s171 = scalar_lea.vmem %s0, %s170
      $region28: #{llama_forward.23} parent=23 // pred_fallthru
        _
    $region24: #{llama_forward.23} parent=5 // pred_fallthru
      _
    %p172 = scmp.le.s32.totalorder 1, %s9
    %p173 = scmp.lt.s32.totalorder %s9, 3
    %p174 = pnand %p172, %p173
    %p175 = pneg %p174
    // Predicated region
    $region29: #{llama_forward.23} parent=5 // pred_check
      _
    $region30: #{llama_forward.23} parent=5 // pred_check_branch
      %177 = sbr.rel (%p174) target = $region32
    $region31: #{llama_forward.23} parent=5 // pred_region
      %s178 = ssub.s32 %s9, 1
      %p179 = scmp.lt.s32.totalorder %s18, 1
      %s180 = scalar_select %p179, %s18, 1
      %p181 = scmp.lt.s32.totalorder %s19, 0
      %s182 = scalar_select %p181, %s19, 0
      %s183 = sadd.s32 %s182, %s180
      %s184 = smul.addr %s183, 4
      %s185 = scalar_lea.vmem %s0, %s184
      %p186 = pneg %p49
      %p187 = pneg %p46
      %p188 = scmp.lt.s32.totalorder %s19, 0
      %s189 = scalar_select %p188, %s19, 0
      %s190 = smul.addr %s189, 8
      %s191 = scalar_lea.vmem %s1, %s190
      %p192 = pneg %p75
      %p193 = pneg %p72
      %p194 = scmp.lt.s32.totalorder %s19, 0
      %s195 = scalar_select %p194, %s19, 0
      %s196 = smul.addr %s195, 8
      %s197 = scalar_lea.vmem %s2, %s196
      %p198 = pneg %p101
      %p199 = pneg %p98
      %p200 = pneg %p129
      %p201 = pneg %p126
      %p202 = scmp.lt.s32.totalorder %s18, 1
      %s203 = scalar_select %p202, %s18, 1
      %p204 = scmp.lt.s32.totalorder %s19, 0
      %s205 = scalar_select %p204, %s19, 0
      %s206 = sadd.s32 %s205, %s203
      %s207 = smul.addr %s206, 4
      %s208 = scalar_lea.vmem %s3, %s207
      %p209 = scmp.lt.s32.totalorder %s18, 1
      %s210 = scalar_select %p209, %s18, 1
      %p211 = scmp.lt.s32.totalorder %s19, 0
      %s212 = scalar_select %p211, %s19, 0
      %s213 = sadd.s32 %s212, %s210
      %s214 = smul.addr %s213, 4
      %s215 = scalar_lea.vmem %s0, %s214
      %p216 = scmp.lt.s32.totalorder %s19, 0
      %s217 = scalar_select %p216, %s19, 0
      %s218 = smul.addr %s217, 8
      %s219 = scalar_lea.vmem %s1, %s218
      %p220 = scmp.lt.s32.totalorder %s19, 0
      %s221 = scalar_select %p220, %s19, 0
      %s222 = smul.addr %s221, 8
      %s223 = scalar_lea.vmem %s2, %s222
      %p224 = scmp.lt.s32.totalorder %s18, 1
      %s225 = scalar_select %p224, %s18, 1
      %p226 = scmp.lt.s32.totalorder %s19, 0
      %s227 = scalar_select %p226, %s19, 0
      %s228 = sadd.s32 %s227, %s225
      %s229 = smul.addr %s228, 4
      %s230 = scalar_lea.vmem %s3, %s229
      %v231 = vld [vmem:[%s215] sm:$0xf]
      %v232 = vunpack.c.l.bf16 %v231
      %vm233 = vcmask 1048064
      %234 = vrot.lane.b32.xlu0 %v232, 64
      %v235 = vpop.permute.xlu0 %234
      %v236 = vsel %vm233, %v235, %v232
      %237 = vrot.lane.b32.xlu0 %v236, 64
      %v238 = vpop.permute.xlu0 %237
      %v239 = vsel %vm233, %v238, %v232
      %v240 = vlaneseq
      %v241 = vand.u32 %v240, 127
      %vm242 = vcmp.lt.s32.totalorder %v241, 0
      %v243 = vsub.s32 0, %v241
      %v244 = vsel %vm242, %v243, %v241
      %v245 = vshrl.u32 %v244, 1
      %v246 = vand.u32 %v244, 1
      %v247 = vsub.s32 0, %v246
      %v248 = vsel %vm242, %v247, %v246
      %vm249 = vcmp.ne.s32.totalorder %v248, 0
      %vm250 = vcmp.lt.s32.totalorder %v248, 0
      %vm251 = vmand %vm250, %vm249
      %v252 = vadd.s32 %v248, 2
      %v253 = vsel %vm251, %v252, %v248
      %vm254 = vcmp.eq.s32.totalorder %v253, 0
      %256 = vrot.lane.b32.xlu0 %v239, 127
      %v257 = vpop.permute.xlu0 %256
      %259 = vrot.lane.b32.xlu0 %v239, 65
      %v260 = vpop.permute.xlu0 %259
      %v262 = vsel %vm254, %v257, %v260
      %v263 = vld [vmem:[%s219] sm:$0xff]
      %v264 = vmul.f32 %v232, %v263
      %v265 = vld [vmem:[%s223] sm:$0xff]
      %v266 = vmul.f32 %v262, %v265
      %v267 = vadd.f32 %v264, %v266
      %v268 = vpack.c.bf16 %v267, %v267
      %vm269 = vcmask 519168
      %270 = vst.msk [vmem:[%s230] sm:$0xf] %vm269, %v268
      %p271 = scmp.lt.s32.totalorder %s18, 1
      %s272 = scalar_select %p271, %s18, 1
      %p273 = scmp.lt.s32.totalorder %s19, 0
      %s274 = scalar_select %p273, %s19, 0
      %s275 = sadd.s32 %s274, %s272
      %s276 = smul.addr %s275, 4
      %s277 = scalar_lea.vmem %s3, %s276
      // Predicated region
      $region33: #{llama_forward.23} parent=31 // pred_check
        %p278 = pneg %p126
      $region34: #{llama_forward.23} parent=31 // pred_check_branch
        %280 = sbr.rel (%p278) target = $region36
      $region35: #{llama_forward.23} parent=31 // pred_region
        _
      $region36: #{llama_forward.23} parent=31 // pred_fallthru
        _
    $region32: #{llama_forward.23} parent=5 // pred_fallthru
      _
    %p281 = scmp.le.s32.totalorder 2, %s9
    // Predicated region
    $region37: #{llama_forward.23} parent=5 // pred_check
      %p282 = pneg %p281
    $region38: #{llama_forward.23} parent=5 // pred_check_branch
      %284 = sbr.rel (%p282) target = $region40
    $region39: #{llama_forward.23} parent=5 // pred_region
      %s285 = ssub.s32 %s9, 2
      // Predicated region
      $region41: #{llama_forward.23} parent=39 // pred_check
        %p286 = pneg %p132
      $region42: #{llama_forward.23} parent=39 // pred_check_branch
        %288 = sbr.rel (%p286) target = $region44
      $region43: #{llama_forward.23} parent=39 // pred_region
        %p289 = scmp.lt.s32.totalorder %s20, 1
        %s290 = scalar_select %p289, %s20, 1
        %p291 = scmp.lt.s32.totalorder %s21, 0
        %s292 = scalar_select %p291, %s21, 0
        %s293 = sadd.s32 %s292, %s290
        %s294 = smul.addr %s293, 4
        %s295 = scalar_lea.vmem %s3, %s294
      $region44: #{llama_forward.23} parent=39 // pred_fallthru
        _
    $region40: #{llama_forward.23} parent=5 // pred_fallthru
      _
  $region6: #{llama_forward.23} parent=0 // loop_footer
    %s13 = sadd.s32 1, %s9
  $region7: #{llama_forward.23} parent=0 // loop_footer_branch
    %8 = sbr.rel target = $region3
  $region8: #{llama_forward.23} parent=0 // loop_exit
    _

// kernel: llama_forward.25
$region0: #{llama_forward.25}
  #allocation0 [shape = 'u32[]', space=smem, size = 0x4, offset = 0x4, fixed_abs, tag = 'smem constant byte address 0x4 - core index']
  #allocation1 [shape = 'u32[144,128]{1,0:T(1,128)}', space=vmem, size = 0x12000, scoped, tag = 'internal scratch']
  #allocation2 [shape = 'f32[16,128]{1,0:T(8,128)}', space=vmem, size = 0x2000, scoped, tag = 'scratch operand']
  %s0 = inlined_call_operand.hbm [shape: bf16[16,128], index: 0, kind: input, shape index: {}]
  %s1 = inlined_call_operand.hbm [shape: bf16[128,128], index: 1, kind: input, shape index: {}]
  %s2 = inlined_call_operand.hbm [shape: f32[16,128], index: 2, kind: input, shape index: {}]
  %s3 = inlined_call_operand.hbm [shape: f32[16,128], index: 3, kind: output, shape index: {}]
  %s4 = sld [smem:[#allocation0]]
  $region42: #{llama_forward.25} parent=0
    _
  %s6 = ssub.s32 1, %s4
  %s7 = scalar_select 0, %s6, %s4
  $region1: #{llama_forward.25} parent=0
    #allocation3 [shape = 'u8[4096]{0}', space=vmem, size = 0x1000, scoped, tag = 'input window, operand 0, single buffered']
    #allocation4 [shape = 's32[1]{0}', space=sflag, size = 0x4, scoped, tag = 'scoped memory for llama_forward.25']
    #allocation5 [shape = 's32[1]{0}', space=sflag, size = 0x4, scoped, tag = 'scoped memory for llama_forward.25']
    #allocation6 [shape = 'u8[32768]{0}', space=vmem, size = 0x8000, scoped, tag = 'input window, operand 1, single buffered']
    #allocation7 [shape = 's32[1]{0}', space=sflag, size = 0x4, scoped, tag = 'scoped memory for llama_forward.25']
    #allocation8 [shape = 'u8[8192]{0}', space=vmem, size = 0x2000, scoped, tag = 'input window, operand 2, single buffered']
    #allocation9 [shape = 'u8[8192]{0}', space=vmem, size = 0x2000, scoped, tag = 'output window, operand 0, single buffered']
    %8 = vsyncpa [#allocation4], 0
    %9 = vsyncpa [#allocation7], 0
    %10 = vsyncpa [#allocation5], 0
    // Predicated region
    $region2: #{llama_forward.25} parent=1 // pred_check
      _
    $region3: #{llama_forward.25} parent=1 // pred_check_branch
      %12 = sbr.rel (0) target = $region5
    $region4: #{llama_forward.25} parent=1 // pred_region
      %s14 = ssub.s32 128, 128
      %15 = vsyncadd [#allocation4], %s14
      %s16 = sshll.u32 [#allocation3], 4
      %s17 = int_to_ptr.vmem [resolvable:$true] %s16
      %22 = dma.hbm_to_vmem [thread:$0]  %s0, 128, %s17, [#allocation4], 64, 64, 4
    $region5: #{llama_forward.25} parent=1 // pred_fallthru
      _
    // Predicated region
    $region6: #{llama_forward.25} parent=1 // pred_check
      _
    $region7: #{llama_forward.25} parent=1 // pred_check_branch
      %24 = sbr.rel (0) target = $region9
    $region8: #{llama_forward.25} parent=1 // pred_region
      %s26 = ssub.s32 1024, 1024
      %27 = vsyncadd [#allocation7], %s26
      %s28 = sshll.u32 [#allocation6], 4
      %s29 = int_to_ptr.vmem [resolvable:$true] %s28
      %34 = dma.hbm_to_vmem [thread:$0]  %s1, 1024, %s29, [#allocation7], 64, 64, 4
    $region9: #{llama_forward.25} parent=1 // pred_fallthru
      _
    // Predicated region
    $region10: #{llama_forward.25} parent=1 // pred_check
      _
    $region11: #{llama_forward.25} parent=1 // pred_check_branch
      %36 = sbr.rel (0) target = $region13
    $region12: #{llama_forward.25} parent=1 // pred_region
      %s38 = ssub.s32 256, 256
      %39 = vsyncadd [#allocation7], %s38
      %s40 = sshll.u32 [#allocation8], 4
      %s41 = int_to_ptr.vmem [resolvable:$true] %s40
      %46 = dma.hbm_to_vmem [thread:$0]  %s2, 256, %s41, [#allocation7], 128, 128, 8
    $region13: #{llama_forward.25} parent=1 // pred_fallthru
      _
    // Predicated region
    $region14: #{llama_forward.25} parent=1 // pred_check
      _
    $region15: #{llama_forward.25} parent=1 // pred_check_branch
      %48 = sbr.rel (0) target = $region17
    $region16: #{llama_forward.25} parent=1 // pred_region
      %49 = dma.done [#allocation4], 128
    $region17: #{llama_forward.25} parent=1 // pred_fallthru
      _
    // Predicated region
    $region18: #{llama_forward.25} parent=1 // pred_check
      _
    $region19: #{llama_forward.25} parent=1 // pred_check_branch
      %51 = sbr.rel (0) target = $region21
    $region20: #{llama_forward.25} parent=1 // pred_region
      %52 = dma.done [#allocation7], 1024
    $region21: #{llama_forward.25} parent=1 // pred_fallthru
      _
    // Predicated region
    $region22: #{llama_forward.25} parent=1 // pred_check
      _
    $region23: #{llama_forward.25} parent=1 // pred_check_branch
      %54 = sbr.rel (0) target = $region25
    $region24: #{llama_forward.25} parent=1 // pred_region
      %55 = dma.done [#allocation7], 256
    $region25: #{llama_forward.25} parent=1 // pred_fallthru
      _
    %p57 = scmp.eq.s32.totalorder 0, 0
    // Predicated region
    $region26: #{llama_forward.25} parent=1 // pred_check
      %p58 = pneg %p57
    $region27: #{llama_forward.25} parent=1 // pred_check_branch
      %60 = sbr.rel (%p58) target = $region29
    $region28: #{llama_forward.25} parent=1 // pred_region
      %61 = vst [vmem:[#allocation2] sm:$0xff] 0.0
      %62 = vst [vmem:[#allocation2 + $0x8] sm:$0xff] 0.0
    $region29: #{llama_forward.25} parent=1 // pred_fallthru
      _
    %v63 = vld [vmem:[#allocation2] sm:$0xff]
    %v64 = vld [vmem:[#allocation2 + $0x8] sm:$0xff]
    %v65 = vld [vmem:[#allocation3] sm:$0xf]
    %v66 = vld [vmem:[#allocation3 + $0x4] sm:$0xf]
    %v67 = vld [vmem:[#allocation6] sm:$0xf]
    %v68 = vld [vmem:[#allocation6 + $0x4] sm:$0xf]
    %v69 = vld [vmem:[#allocation6 + $0x8] sm:$0xf]
    %v70 = vld [vmem:[#allocation6 + $0xc] sm:$0xf]
    %v71 = vld [vmem:[#allocation6 + $0x10] sm:$0xf]
    %v72 = vld [vmem:[#allocation6 + $0x14] sm:$0xf]
    %v73 = vld [vmem:[#allocation6 + $0x18] sm:$0xf]
    %v74 = vld [vmem:[#allocation6 + $0x1c] sm:$0xf]
    %v75 = vld [vmem:[#allocation6 + $0x20] sm:$0xf]
    %v76 = vld [vmem:[#allocation6 + $0x24] sm:$0xf]
    %v77 = vld [vmem:[#allocation6 + $0x28] sm:$0xf]
    %v78 = vld [vmem:[#allocation6 + $0x2c] sm:$0xf]
    %v79 = vld [vmem:[#allocation6 + $0x30] sm:$0xf]
    %v80 = vld [vmem:[#allocation6 + $0x34] sm:$0xf]
    %v81 = vld [vmem:[#allocation6 + $0x38] sm:$0xf]
    %v82 = vld [vmem:[#allocation6 + $0x3c] sm:$0xf]
    %v85 = vunpack.c.l.b16 %v65
    %v86 = vunpack.c.l.b16 %v66
    %v87 = vpack.c.b16 %v86, %v85
    %v105 = vunpack.c.l.b16 %v67
    %v106 = vunpack.c.l.b16 %v68
    %v107 = vunpack.c.l.b16 %v69
    %v108 = vunpack.c.l.b16 %v70
    %v109 = vunpack.c.l.b16 %v71
    %v110 = vunpack.c.l.b16 %v72
    %v111 = vunpack.c.l.b16 %v73
    %v112 = vunpack.c.l.b16 %v74
    %v113 = vunpack.c.l.b16 %v75
    %v114 = vunpack.c.l.b16 %v76
    %v115 = vunpack.c.l.b16 %v77
    %v116 = vunpack.c.l.b16 %v78
    %v117 = vunpack.c.l.b16 %v79
    %v118 = vunpack.c.l.b16 %v80
    %v119 = vunpack.c.l.b16 %v81
    %v120 = vunpack.c.l.b16 %v82
    %v121 = vpack.c.b16 %v106, %v105
    %v122 = vpack.c.b16 %v108, %v107
    %v123 = vpack.c.b16 %v110, %v109
    %v124 = vpack.c.b16 %v112, %v111
    %v125 = vpack.c.b16 %v114, %v113
    %v126 = vpack.c.b16 %v116, %v115
    %v127 = vpack.c.b16 %v118, %v117
    %v128 = vpack.c.b16 %v120, %v119
    %137 = vmatprep.subr.bf16.mxu0 0
    %138 = vmatpush1.bf16.msra.mxu0 %v121
    %139 = vmatprep.subr.bf16.mxu0 0
    %140 = vmatpush1.bf16.msra.mxu0 %v122
    %141 = vmatprep.subr.bf16.mxu0 0
    %142 = vmatpush1.bf16.msra.mxu0 %v123
    %143 = vmatprep.subr.bf16.mxu0 0
    %144 = vmatpush1.bf16.msra.mxu0 %v124
    %145 = vmatprep.subr.bf16.mxu0 0
    %146 = vmatpush1.bf16.msra.mxu0 %v125
    %147 = vmatprep.subr.bf16.mxu0 0
    %148 = vmatpush1.bf16.msra.mxu0 %v126
    %149 = vmatprep.subr.bf16.mxu0 0
    %150 = vmatpush1.bf16.msra.mxu0 %v127
    %151 = vmatprep.subr.bf16.mxu0 0
    %152 = vmatpush1.bf16.msra.mxu0 %v128
    %153 = vmatprep.subr.bf16.mxu0 0
    %154 = vmatpush1.bf16.msra.mxu0 0
    %155 = vmatprep.subr.bf16.mxu0 0
    %156 = vmatpush1.bf16.msra.mxu0 0
    %157 = vmatprep.subr.bf16.mxu0 0
    %158 = vmatpush1.bf16.msra.mxu0 0
    %159 = vmatprep.subr.bf16.mxu0 0
    %160 = vmatpush1.bf16.msra.mxu0 0
    %161 = vmatprep.subr.bf16.mxu0 0
    %162 = vmatpush1.bf16.msra.mxu0 0
    %163 = vmatprep.subr.bf16.mxu0 0
    %164 = vmatpush1.bf16.msra.mxu0 0
    %165 = vmatprep.subr.bf16.mxu0 0
    %166 = vmatpush1.bf16.msra.mxu0 0
    %167 = vmatprep.subr.bf16.mxu0 0
    %168 = vmatpush1.bf16.msra.mxu0 0
    %169 = vmatprep.mubr.bf16.mxu0 0
    %170 = vmatmul.mubr.bf16.gmra.mrb[0].mxu0 %v87
    %v171 = vpop.f32.mrb[0].mxu0
    %v172 = vadd.f32 0.0, %v171
    %v173 = vpop.f32.mrb[0].mxu0
    %v174 = vpop.f32.mrb[0].mxu0
    %v175 = vadd.f32 0.0, %v174
    %v176 = vpop.f32.mrb[0].mxu0
    %177 = vdwg.mxu0
    %v178 = vadd.f32 %v63, %v172
    %v179 = vadd.f32 %v64, %v175
    %180 = vst [vmem:[#allocation2] sm:$0xff] %v178
    %181 = vst [vmem:[#allocation2 + $0x8] sm:$0xff] %v179
    // Predicated region
    $region30: #{llama_forward.25} parent=1 // pred_check
      %p182 = pneg %p57
    $region31: #{llama_forward.25} parent=1 // pred_check_branch
      %184 = sbr.rel (%p182) target = $region33
    $region32: #{llama_forward.25} parent=1 // pred_region
      %v185 = vld [vmem:[#allocation2] sm:$0xff]
      %v186 = vld [vmem:[#allocation2 + $0x8] sm:$0xff]
      %v187 = vld [vmem:[#allocation8] sm:$0xff]
      %v188 = vld [vmem:[#allocation8 + $0x8] sm:$0xff]
      %v189 = vadd.f32 %v185, %v187
      %v190 = vadd.f32 %v186, %v188
      %191 = vst [vmem:[#allocation9] sm:$0xff] %v189
      %192 = vst [vmem:[#allocation9 + $0x8] sm:$0xff] %v190
    $region33: #{llama_forward.25} parent=1 // pred_fallthru
      _
    // Predicated region
    $region34: #{llama_forward.25} parent=1 // pred_check
      _
    $region35: #{llama_forward.25} parent=1 // pred_check_branch
      %194 = sbr.rel (0) target = $region37
    $region36: #{llama_forward.25} parent=1 // pred_region
      %s196 = ssub.s32 256, 256
      %197 = vsyncadd [#allocation5], %s196
      %s198 = sshll.u32 [#allocation9], 4
      %s199 = int_to_ptr.vmem [resolvable:$true] %s198
      %204 = dma.vmem_to_hbm [thread:$0]  %s199, 256, %s3, [#allocation5], 128, 128, 8
    $region37: #{llama_forward.25} parent=1 // pred_fallthru
      _
    // Predicated region
    $region38: #{llama_forward.25} parent=1 // pred_check
      _
    $region39: #{llama_forward.25} parent=1 // pred_check_branch
      %206 = sbr.rel (0) target = $region41
    $region40: #{llama_forward.25} parent=1 // pred_region
      %207 = dma.done [#allocation5], 256
    $region41: #{llama_forward.25} parent=1 // pred_fallthru
      _
    %208 = vsyncpa [#allocation4], 1
    %209 = vsyncpa [#allocation7], 1
    %210 = vsyncpa [#allocation5], 1

// kernel: llama_forward.26
$region0: #{llama_forward.26}
  #allocation0 [shape = 'u32[]', space=smem, size = 0x4, offset = 0x4, fixed_abs, tag = 'smem constant byte address 0x4 - core index']
  #allocation1 [shape = 'u32[144,128]{1,0:T(1,128)}', space=vmem, size = 0x12000, scoped, tag = 'internal scratch']
  %s0 = inlined_call_operand.hbm [shape: f32[16,128], index: 0, kind: input, shape index: {}]
  %s1 = inlined_call_operand.hbm [shape: f32[1,128], index: 1, kind: input, shape index: {}]
  %s2 = inlined_call_operand.hbm [shape: bf16[16,128], index: 2, kind: output, shape index: {}]
  %s3 = sld [smem:[#allocation0]]
  $region26: #{llama_forward.26} parent=0
    _
  %s5 = ssub.s32 1, %s3
  %s6 = scalar_select 0, %s5, %s3
  $region1: #{llama_forward.26} parent=0
    #allocation2 [shape = 'u8[8192]{0}', space=vmem, size = 0x2000, scoped, tag = 'input window, operand 0, single buffered']
    #allocation3 [shape = 's32[1]{0}', space=sflag, size = 0x4, scoped, tag = 'scoped memory for llama_forward.26']
    #allocation4 [shape = 's32[1]{0}', space=sflag, size = 0x4, scoped, tag = 'scoped memory for llama_forward.26']
    #allocation5 [shape = 'u8[512]{0}', space=vmem, size = 0x400, scoped, tag = 'input window, operand 1, single buffered']
    #allocation6 [shape = 's32[1]{0}', space=sflag, size = 0x4, scoped, tag = 'scoped memory for llama_forward.26']
    #allocation7 [shape = 'u8[4096]{0}', space=vmem, size = 0x1000, scoped, tag = 'output window, operand 0, single buffered']
    %7 = vsyncpa [#allocation3], 0
    %8 = vsyncpa [#allocation6], 0
    %9 = vsyncpa [#allocation4], 0
    // Predicated region
    $region2: #{llama_forward.26} parent=1 // pred_check
      _
    $region3: #{llama_forward.26} parent=1 // pred_check_branch
      %11 = sbr.rel (0) target = $region5
    $region4: #{llama_forward.26} parent=1 // pred_region
      %s13 = ssub.s32 256, 256
      %14 = vsyncadd [#allocation3], %s13
      %s15 = sshll.u32 [#allocation2], 4
      %s16 = int_to_ptr.vmem [resolvable:$true] %s15
      %21 = dma.hbm_to_vmem [thread:$0]  %s0, 256, %s16, [#allocation3], 128, 128, 8
    $region5: #{llama_forward.26} parent=1 // pred_fallthru
      _
    // Predicated region
    $region6: #{llama_forward.26} parent=1 // pred_check
      _
    $region7: #{llama_forward.26} parent=1 // pred_check_branch
      %23 = sbr.rel (0) target = $region9
    $region8: #{llama_forward.26} parent=1 // pred_region
      %s25 = ssub.s32 16, 16
      %26 = vsyncadd [#allocation6], %s25
      %s28 = sshll.u32 [#allocation5], 4
      %s29 = int_to_ptr.vmem [resolvable:$true] %s28
      %31 = dma.hbm_to_vmem [thread:$0]  %s1, 16, %s29, [#allocation6]
    $region9: #{llama_forward.26} parent=1 // pred_fallthru
      _
    // Predicated region
    $region10: #{llama_forward.26} parent=1 // pred_check
      _
    $region11: #{llama_forward.26} parent=1 // pred_check_branch
      %33 = sbr.rel (0) target = $region13
    $region12: #{llama_forward.26} parent=1 // pred_region
      %34 = dma.done [#allocation3], 256
    $region13: #{llama_forward.26} parent=1 // pred_fallthru
      _
    // Predicated region
    $region14: #{llama_forward.26} parent=1 // pred_check
      _
    $region15: #{llama_forward.26} parent=1 // pred_check_branch
      %36 = sbr.rel (0) target = $region17
    $region16: #{llama_forward.26} parent=1 // pred_region
      %37 = dma.done [#allocation6], 16
    $region17: #{llama_forward.26} parent=1 // pred_fallthru
      _
    %v38 = vld [vmem:[#allocation2] sm:$0xff]
    %v39 = vld [vmem:[#allocation2 + $0x8] sm:$0xff]
    %v40 = vmul.f32 %v38, %v38
    %v41 = vmul.f32 %v39, %v39
    %42 = vadd.xlane.f32.xlu0 %v40
    %v43 = vpop.xlane.xlu0 %42
    %44 = vadd.xlane.f32.xlu0 %v41
    %v45 = vpop.xlane.xlu0 %44
    %v46 = vrcp.pop 128.0
    %v47 = vmul.f32 %v43, %v46
    %v48 = vmul.f32 %v45, %v46
    %v49 = vadd.f32 %v47, 1e-05
    %v50 = vadd.f32 %v48, 1e-05
    %v51 = vrsqrt.pop %v49
    %v52 = vrsqrt.pop %v50
    %v53 = vmul.f32 %v38, %v51
    %v54 = vmul.f32 %v39, %v52
    %v55 = vld [vmem:[#allocation5] sm:$0x1]
    %v57 = vlaneseq
    %v58 = vshrl.u32 %v57, 7
    %v59 = vsub.s32 0, %v58
    %v60 = vrot.slane %v55, %v59
    %v62 = vmul.f32 %v53, %v60
    %v63 = vmul.f32 %v54, %v60
    %v64 = vpack.c.bf16 %v63, %v62
    %v66 = vunpack.c.l.b16 %v64
    %v67 = vunpack.c.h.b16 %v64
    %v68 = vpack.c.b16 %v66, %v66
    %v69 = vpack.c.b16 %v67, %v67
    %72 = vst [vmem:[#allocation7] sm:$0xf] %v68
    %73 = vst [vmem:[#allocation7 + $0x4] sm:$0xf] %v69
    // Predicated region
    $region18: #{llama_forward.26} parent=1 // pred_check
      _
    $region19: #{llama_forward.26} parent=1 // pred_check_branch
      %75 = sbr.rel (0) target = $region21
    $region20: #{llama_forward.26} parent=1 // pred_region
      %s77 = ssub.s32 128, 128
      %78 = vsyncadd [#allocation4], %s77
      %s79 = sshll.u32 [#allocation7], 4
      %s80 = int_to_ptr.vmem [resolvable:$true] %s79
      %85 = dma.vmem_to_hbm [thread:$0]  %s80, 128, %s2, [#allocation4], 64, 64, 4
    $region21: #{llama_forward.26} parent=1 // pred_fallthru
      _
    // Predicated region
    $region22: #{llama_forward.26} parent=1 // pred_check
      _
    $region23: #{llama_forward.26} parent=1 // pred_check_branch
      %87 = sbr.rel (0) target = $region25
    $region24: #{llama_forward.26} parent=1 // pred_region
      %88 = dma.done [#allocation4], 128
    $region25: #{llama_forward.26} parent=1 // pred_fallthru
      _
    %89 = vsyncpa [#allocation3], 1
    %90 = vsyncpa [#allocation6], 1
    %91 = vsyncpa [#allocation4], 1

// kernel: llama_forward.28
$region0: #{llama_forward.28}
  #allocation0 [shape = 'u32[]', space=smem, size = 0x4, offset = 0x4, fixed_abs, tag = 'smem constant byte address 0x4 - core index']
  #allocation1 [shape = 'u32[144,128]{1,0:T(1,128)}', space=vmem, size = 0x12000, scoped, tag = 'internal scratch']
  #allocation2 [shape = 'f32[16,128]{1,0:T(8,128)}', space=vmem, size = 0x2000, scoped, tag = 'scratch operand']
  %s0 = inlined_call_operand.hbm [shape: bf16[16,384], index: 0, kind: input, shape index: {}]
  %s1 = inlined_call_operand.hbm [shape: bf16[384,128], index: 1, kind: input, shape index: {}]
  %s2 = inlined_call_operand.hbm [shape: f32[16,128], index: 2, kind: input, shape index: {}]
  %s3 = inlined_call_operand.hbm [shape: f32[16,128], index: 3, kind: output, shape index: {}]
  %s4 = sld [smem:[#allocation0]]
  $region42: #{llama_forward.28} parent=0
    _
  %s6 = ssub.s32 1, %s4
  %s7 = scalar_select 0, %s6, %s4
  $region1: #{llama_forward.28} parent=0
    #allocation3 [shape = 'u8[12288]{0}', space=vmem, size = 0x3000, scoped, tag = 'input window, operand 0, single buffered']
    #allocation4 [shape = 's32[1]{0}', space=sflag, size = 0x4, scoped, tag = 'scoped memory for llama_forward.28']
    #allocation5 [shape = 's32[1]{0}', space=sflag, size = 0x4, scoped, tag = 'scoped memory for llama_forward.28']
    #allocation6 [shape = 'u8[98304]{0}', space=vmem, size = 0x18000, scoped, tag = 'input window, operand 1, single buffered']
    #allocation7 [shape = 's32[1]{0}', space=sflag, size = 0x4, scoped, tag = 'scoped memory for llama_forward.28']
    #allocation8 [shape = 'u8[8192]{0}', space=vmem, size = 0x2000, scoped, tag = 'input window, operand 2, single buffered']
    #allocation9 [shape = 'u8[8192]{0}', space=vmem, size = 0x2000, scoped, tag = 'output window, operand 0, single buffered']
    %8 = vsyncpa [#allocation4], 0
    %9 = vsyncpa [#allocation7], 0
    %10 = vsyncpa [#allocation5], 0
    // Predicated region
    $region2: #{llama_forward.28} parent=1 // pred_check
      _
    $region3: #{llama_forward.28} parent=1 // pred_check_branch
      %12 = sbr.rel (0) target = $region5
    $region4: #{llama_forward.28} parent=1 // pred_region
      %s14 = ssub.s32 384, 384
      %15 = vsyncadd [#allocation4], %s14
      %s16 = sshll.u32 [#allocation3], 4
      %s17 = int_to_ptr.vmem [resolvable:$true] %s16
      %22 = dma.hbm_to_vmem [thread:$0]  %s0, 384, %s17, [#allocation4], 192, 192, 12
    $region5: #{llama_forward.28} parent=1 // pred_fallthru
      _
    // Predicated region
    $region6: #{llama_forward.28} parent=1 // pred_check
      _
    $region7: #{llama_forward.28} parent=1 // pred_check_branch
      %24 = sbr.rel (0) target = $region9
    $region8: #{llama_forward.28} parent=1 // pred_region
      %s26 = ssub.s32 3072, 3072
      %27 = vsyncadd [#allocation7], %s26
      %s28 = sshll.u32 [#allocation6], 4
      %s29 = int_to_ptr.vmem [resolvable:$true] %s28
      %34 = dma.hbm_to_vmem [thread:$0]  %s1, 3072, %s29, [#allocation7], 64, 64, 4
    $region9: #{llama_forward.28} parent=1 // pred_fallthru
      _
    // Predicated region
    $region10: #{llama_forward.28} parent=1 // pred_check
      _
    $region11: #{llama_forward.28} parent=1 // pred_check_branch
      %36 = sbr.rel (0) target = $region13
    $region12: #{llama_forward.28} parent=1 // pred_region
      %s38 = ssub.s32 256, 256
      %39 = vsyncadd [#allocation7], %s38
      %s40 = sshll.u32 [#allocation8], 4
      %s41 = int_to_ptr.vmem [resolvable:$true] %s40
      %46 = dma.hbm_to_vmem [thread:$0]  %s2, 256, %s41, [#allocation7], 128, 128, 8
    $region13: #{llama_forward.28} parent=1 // pred_fallthru
      _
    // Predicated region
    $region14: #{llama_forward.28} parent=1 // pred_check
      _
    $region15: #{llama_forward.28} parent=1 // pred_check_branch
      %48 = sbr.rel (0) target = $region17
    $region16: #{llama_forward.28} parent=1 // pred_region
      %49 = dma.done [#allocation4], 384
    $region17: #{llama_forward.28} parent=1 // pred_fallthru
      _
    // Predicated region
    $region18: #{llama_forward.28} parent=1 // pred_check
      _
    $region19: #{llama_forward.28} parent=1 // pred_check_branch
      %51 = sbr.rel (0) target = $region21
    $region20: #{llama_forward.28} parent=1 // pred_region
      %52 = dma.done [#allocation7], 3072
    $region21: #{llama_forward.28} parent=1 // pred_fallthru
      _
    // Predicated region
    $region22: #{llama_forward.28} parent=1 // pred_check
      _
    $region23: #{llama_forward.28} parent=1 // pred_check_branch
      %54 = sbr.rel (0) target = $region25
    $region24: #{llama_forward.28} parent=1 // pred_region
      %55 = dma.done [#allocation7], 256
    $region25: #{llama_forward.28} parent=1 // pred_fallthru
      _
    %p57 = scmp.eq.s32.totalorder 0, 0
    // Predicated region
    $region26: #{llama_forward.28} parent=1 // pred_check
      %p58 = pneg %p57
    $region27: #{llama_forward.28} parent=1 // pred_check_branch
      %60 = sbr.rel (%p58) target = $region29
    $region28: #{llama_forward.28} parent=1 // pred_region
      %61 = vst [vmem:[#allocation2] sm:$0xff] 0.0
      %62 = vst [vmem:[#allocation2 + $0x8] sm:$0xff] 0.0
    $region29: #{llama_forward.28} parent=1 // pred_fallthru
      _
    %v63 = vld [vmem:[#allocation2] sm:$0xff]
    %v64 = vld [vmem:[#allocation2 + $0x8] sm:$0xff]
    %v65 = vld [vmem:[#allocation3] sm:$0xff]
    %v66 = vld [vmem:[#allocation3 + $0x8] sm:$0xf]
    %v67 = vld [vmem:[#allocation3 + $0xc] sm:$0xff]
    %v68 = vld [vmem:[#allocation3 + $0x14] sm:$0xf]
    %v69 = vld [vmem:[#allocation6] sm:$0xf]
    %v70 = vld [vmem:[#allocation6 + $0x4] sm:$0xf]
    %v71 = vld [vmem:[#allocation6 + $0x8] sm:$0xf]
    %v72 = vld [vmem:[#allocation6 + $0xc] sm:$0xf]
    %v73 = vld [vmem:[#allocation6 + $0x10] sm:$0xf]
    %v74 = vld [vmem:[#allocation6 + $0x14] sm:$0xf]
    %v75 = vld [vmem:[#allocation6 + $0x18] sm:$0xf]
    %v76 = vld [vmem:[#allocation6 + $0x1c] sm:$0xf]
    %v77 = vld [vmem:[#allocation6 + $0x20] sm:$0xf]
    %v78 = vld [vmem:[#allocation6 + $0x24] sm:$0xf]
    %v79 = vld [vmem:[#allocation6 + $0x28] sm:$0xf]
    %v80 = vld [vmem:[#allocation6 + $0x2c] sm:$0xf]
    %v81 = vld [vmem:[#allocation6 + $0x30] sm:$0xf]
    %v82 = vld [vmem:[#allocation6 + $0x34] sm:$0xf]
    %v83 = vld [vmem:[#allocation6 + $0x38] sm:$0xf]
    %v84 = vld [vmem:[#allocation6 + $0x3c] sm:$0xf]
    %v85 = vld [vmem:[#allocation6 + $0x40] sm:$0xf]
    %v86 = vld [vmem:[#allocation6 + $0x44] sm:$0xf]
    %v87 = vld [vmem:[#allocation6 + $0x48] sm:$0xf]
    %v88 = vld [vmem:[#allocation6 + $0x4c] sm:$0xf]
    %v89 = vld [vmem:[#allocation6 + $0x50] sm:$0xf]
    %v90 = vld [vmem:[#allocation6 + $0x54] sm:$0xf]
    %v91 = vld [vmem:[#allocation6 + $0x58] sm:$0xf]
    %v92 = vld [vmem:[#allocation6 + $0x5c] sm:$0xf]
    %v93 = vld [vmem:[#allocation6 + $0x60] sm:$0xf]
    %v94 = vld [vmem:[#allocation6 + $0x64] sm:$0xf]
    %v95 = vld [vmem:[#allocation6 + $0x68] sm:$0xf]
    %v96 = vld [vmem:[#allocation6 + $0x6c] sm:$0xf]
    %v97 = vld [vmem:[#allocation6 + $0x70] sm:$0xf]
    %v98 = vld [vmem:[#allocation6 + $0x74] sm:$0xf]
    %v99 = vld [vmem:[#allocation6 + $0x78] sm:$0xf]
    %v100 = vld [vmem:[#allocation6 + $0x7c] sm:$0xf]
    %v101 = vld [vmem:[#allocation6 + $0x80] sm:$0xf]
    %v102 = vld [vmem:[#allocation6 + $0x84] sm:$0xf]
    %v103 = vld [vmem:[#allocation6 + $0x88] sm:$0xf]
    %v104 = vld [vmem:[#allocation6 + $0x8c] sm:$0xf]
    %v105 = vld [vmem:[#allocation6 + $0x90] sm:$0xf]
    %v106 = vld [vmem:[#allocation6 + $0x94] sm:$0xf]
    %v107 = vld [vmem:[#allocation6 + $0x98] sm:$0xf]
    %v108 = vld [vmem:[#allocation6 + $0x9c] sm:$0xf]
    %v109 = vld [vmem:[#allocation6 + $0xa0] sm:$0xf]
    %v110 = vld [vmem:[#allocation6 + $0xa4] sm:$0xf]
    %v111 = vld [vmem:[#allocation6 + $0xa8] sm:$0xf]
    %v112 = vld [vmem:[#allocation6 + $0xac] sm:$0xf]
    %v113 = vld [vmem:[#allocation6 + $0xb0] sm:$0xf]
    %v114 = vld [vmem:[#allocation6 + $0xb4] sm:$0xf]
    %v115 = vld [vmem:[#allocation6 + $0xb8] sm:$0xf]
    %v116 = vld [vmem:[#allocation6 + $0xbc] sm:$0xf]
    %v121 = vunpack.c.l.b16 %v65
    %v122 = vunpack.c.h.b16 %v65
    %v123 = vunpack.c.l.b16 %v66
    %v124 = vunpack.c.l.b16 %v67
    %v125 = vunpack.c.h.b16 %v67
    %v126 = vunpack.c.l.b16 %v68
    %v127 = vpack.c.b16 %v124, %v121
    %v128 = vpack.c.b16 %v125, %v122
    %v129 = vpack.c.b16 %v126, %v123
    %v181 = vunpack.c.l.b16 %v69
    %v182 = vunpack.c.l.b16 %v70
    %v183 = vunpack.c.l.b16 %v71
    %v184 = vunpack.c.l.b16 %v72
    %v185 = vunpack.c.l.b16 %v73
    %v186 = vunpack.c.l.b16 %v74
    %v187 = vunpack.c.l.b16 %v75
    %v188 = vunpack.c.l.b16 %v76
    %v189 = vunpack.c.l.b16 %v77
    %v190 = vunpack.c.l.b16 %v78
    %v191 = vunpack.c.l.b16 %v79
    %v192 = vunpack.c.l.b16 %v80
    %v193 = vunpack.c.l.b16 %v81
    %v194 = vunpack.c.l.b16 %v82
    %v195 = vunpack.c.l.b16 %v83
    %v196 = vunpack.c.l.b16 %v84
    %v197 = vunpack.c.l.b16 %v85
    %v198 = vunpack.c.l.b16 %v86
    %v199 = vunpack.c.l.b16 %v87
    %v200 = vunpack.c.l.b16 %v88
    %v201 = vunpack.c.l.b16 %v89
    %v202 = vunpack.c.l.b16 %v90
    %v203 = vunpack.c.l.b16 %v91
    %v204 = vunpack.c.l.b16 %v92
    %v205 = vunpack.c.l.b16 %v93
    %v206 = vunpack.c.l.b16 %v94
    %v207 = vunpack.c.l.b16 %v95
    %v208 = vunpack.c.l.b16 %v96
    %v209 = vunpack.c.l.b16 %v97
    %v210 = vunpack.c.l.b16 %v98
    %v211 = vunpack.c.l.b16 %v99
    %v212 = vunpack.c.l.b16 %v100
    %v213 = vunpack.c.l.b16 %v101
    %v214 = vunpack.c.l.b16 %v102
    %v215 = vunpack.c.l.b16 %v103
    %v216 = vunpack.c.l.b16 %v104
    %v217 = vunpack.c.l.b16 %v105
    %v218 = vunpack.c.l.b16 %v106
    %v219 = vunpack.c.l.b16 %v107
    %v220 = vunpack.c.l.b16 %v108
    %v221 = vunpack.c.l.b16 %v109
    %v222 = vunpack.c.l.b16 %v110
    %v223 = vunpack.c.l.b16 %v111
    %v224 = vunpack.c.l.b16 %v112
    %v225 = vunpack.c.l.b16 %v113
    %v226 = vunpack.c.l.b16 %v114
    %v227 = vunpack.c.l.b16 %v115
    %v228 = vunpack.c.l.b16 %v116
    %v229 = vpack.c.b16 %v182, %v181
    %v230 = vpack.c.b16 %v184, %v183
    %v231 = vpack.c.b16 %v186, %v185
    %v232 = vpack.c.b16 %v188, %v187
    %v233 = vpack.c.b16 %v190, %v189
    %v234 = vpack.c.b16 %v192, %v191
    %v235 = vpack.c.b16 %v194, %v193
    %v236 = vpack.c.b16 %v196, %v195
    %v237 = vpack.c.b16 %v198, %v197
    %v238 = vpack.c.b16 %v200, %v199
    %v239 = vpack.c.b16 %v202, %v201
    %v240 = vpack.c.b16 %v204, %v203
    %v241 = vpack.c.b16 %v206, %v205
    %v242 = vpack.c.b16 %v208, %v207
    %v243 = vpack.c.b16 %v210, %v209
    %v244 = vpack.c.b16 %v212, %v211
    %v245 = vpack.c.b16 %v214, %v213
    %v246 = vpack.c.b16 %v216, %v215
    %v247 = vpack.c.b16 %v218, %v217
    %v248 = vpack.c.b16 %v220, %v219
    %v249 = vpack.c.b16 %v222, %v221
    %v250 = vpack.c.b16 %v224, %v223
    %v251 = vpack.c.b16 %v226, %v225
    %v252 = vpack.c.b16 %v228, %v227
    %277 = vmatprep.subr.bf16.mxu0 0
    %278 = vmatpush1.bf16.msra.mxu0 %v229
    %279 = vmatprep.subr.bf16.mxu0 0
    %280 = vmatpush1.bf16.msra.mxu0 %v230
    %281 = vmatprep.subr.bf16.mxu0 0
    %282 = vmatpush1.bf16.msra.mxu0 %v231
    %283 = vmatprep.subr.bf16.mxu0 0
    %284 = vmatpush1.bf16.msra.mxu0 %v232
    %285 = vmatprep.subr.bf16.mxu0 0
    %286 = vmatpush1.bf16.msra.mxu0 %v233
    %287 = vmatprep.subr.bf16.mxu0 0
    %288 = vmatpush1.bf16.msra.mxu0 %v234
    %289 = vmatprep.subr.bf16.mxu0 0
    %290 = vmatpush1.bf16.msra.mxu0 %v235
    %291 = vmatprep.subr.bf16.mxu0 0
    %292 = vmatpush1.bf16.msra.mxu0 %v236
    %293 = vmatprep.subr.bf16.mxu0 0
    %294 = vmatpush1.bf16.msra.mxu0 %v237
    %295 = vmatprep.subr.bf16.mxu0 0
    %296 = vmatpush1.bf16.msra.mxu0 %v238
    %297 = vmatprep.subr.bf16.mxu0 0
    %298 = vmatpush1.bf16.msra.mxu0 %v239
    %299 = vmatprep.subr.bf16.mxu0 0
    %300 = vmatpush1.bf16.msra.mxu0 %v240
    %301 = vmatprep.subr.bf16.mxu0 0
    %302 = vmatpush1.bf16.msra.mxu0 %v241
    %303 = vmatprep.subr.bf16.mxu0 0
    %304 = vmatpush1.bf16.msra.mxu0 %v242
    %305 = vmatprep.subr.bf16.mxu0 0
    %306 = vmatpush1.bf16.msra.mxu0 %v243
    %307 = vmatprep.subr.bf16.mxu0 0
    %308 = vmatpush1.bf16.msra.mxu0 %v244
    %309 = vmatprep.mubr.bf16.mxu0 %v128
    %310 = vmatmul.mubr.bf16.gmra.mrb[0].mxu0 %v127
    %v311 = vpop.f32.mrb[0].mxu0
    %v312 = vadd.f32 0.0, %v311
    %v313 = vpop.f32.mrb[0].mxu0
    %v314 = vpop.f32.mrb[0].mxu0
    %v315 = vadd.f32 0.0, %v314
    %v316 = vpop.f32.mrb[0].mxu0
    %317 = vdwg.mxu0
    %318 = vmatprep.subr.bf16.mxu0 0
    %319 = vmatpush1.bf16.msra.mxu0 %v245
    %320 = vmatprep.subr.bf16.mxu0 0
    %321 = vmatpush1.bf16.msra.mxu0 %v246
    %322 = vmatprep.subr.bf16.mxu0 0
    %323 = vmatpush1.bf16.msra.mxu0 %v247
    %324 = vmatprep.subr.bf16.mxu0 0
    %325 = vmatpush1.bf16.msra.mxu0 %v248
    %326 = vmatprep.subr.bf16.mxu0 0
    %327 = vmatpush1.bf16.msra.mxu0 %v249
    %328 = vmatprep.subr.bf16.mxu0 0
    %329 = vmatpush1.bf16.msra.mxu0 %v250
    %330 = vmatprep.subr.bf16.mxu0 0
    %331 = vmatpush1.bf16.msra.mxu0 %v251
    %332 = vmatprep.subr.bf16.mxu0 0
    %333 = vmatpush1.bf16.msra.mxu0 %v252
    %334 = vmatprep.subr.bf16.mxu0 0
    %335 = vmatpush1.bf16.msra.mxu0 0
    %336 = vmatprep.subr.bf16.mxu0 0
    %337 = vmatpush1.bf16.msra.mxu0 0
    %338 = vmatprep.subr.bf16.mxu0 0
    %339 = vmatpush1.bf16.msra.mxu0 0
    %340 = vmatprep.subr.bf16.mxu0 0
    %341 = vmatpush1.bf16.msra.mxu0 0
    %342 = vmatprep.subr.bf16.mxu0 0
    %343 = vmatpush1.bf16.msra.mxu0 0
    %344 = vmatprep.subr.bf16.mxu0 0
    %345 = vmatpush1.bf16.msra.mxu0 0
    %346 = vmatprep.subr.bf16.mxu0 0
    %347 = vmatpush1.bf16.msra.mxu0 0
    %348 = vmatprep.subr.bf16.mxu0 0
    %349 = vmatpush1.bf16.msra.mxu0 0
    %350 = vmatprep.mubr.bf16.mxu0 0
    %351 = vmatmul.mubr.bf16.gmra.mrb[0].mxu0 %v129
    %v352 = vpop.f32.mrb[0].mxu0
    %v353 = vadd.f32 %v312, %v352
    %v354 = vpop.f32.mrb[0].mxu0
    %v355 = vpop.f32.mrb[0].mxu0
    %v356 = vadd.f32 %v315, %v355
    %v357 = vpop.f32.mrb[0].mxu0
    %358 = vdwg.mxu0
    %v359 = vadd.f32 %v63, %v353
    %v360 = vadd.f32 %v64, %v356
    %361 = vst [vmem:[#allocation2] sm:$0xff] %v359
    %362 = vst [vmem:[#allocation2 + $0x8] sm:$0xff] %v360
    // Predicated region
    $region30: #{llama_forward.28} parent=1 // pred_check
      %p363 = pneg %p57
    $region31: #{llama_forward.28} parent=1 // pred_check_branch
      %365 = sbr.rel (%p363) target = $region33
    $region32: #{llama_forward.28} parent=1 // pred_region
      %v366 = vld [vmem:[#allocation2] sm:$0xff]
      %v367 = vld [vmem:[#allocation2 + $0x8] sm:$0xff]
      %v368 = vld [vmem:[#allocation8] sm:$0xff]
      %v369 = vld [vmem:[#allocation8 + $0x8] sm:$0xff]
      %v370 = vadd.f32 %v366, %v368
      %v371 = vadd.f32 %v367, %v369
      %372 = vst [vmem:[#allocation9] sm:$0xff] %v370
      %373 = vst [vmem:[#allocation9 + $0x8] sm:$0xff] %v371
    $region33: #{llama_forward.28} parent=1 // pred_fallthru
      _
    // Predicated region
    $region34: #{llama_forward.28} parent=1 // pred_check
      _
    $region35: #{llama_forward.28} parent=1 // pred_check_branch
      %375 = sbr.rel (0) target = $region37
    $region36: #{llama_forward.28} parent=1 // pred_region
      %s377 = ssub.s32 256, 256
      %378 = vsyncadd [#allocation5], %s377
      %s379 = sshll.u32 [#allocation9], 4
      %s380 = int_to_ptr.vmem [resolvable:$true] %s379
      %385 = dma.vmem_to_hbm [thread:$0]  %s380, 256, %s3, [#allocation5], 128, 128, 8
    $region37: #{llama_forward.28} parent=1 // pred_fallthru
      _
    // Predicated region
    $region38: #{llama_forward.28} parent=1 // pred_check
      _
    $region39: #{llama_forward.28} parent=1 // pred_check_branch
      %387 = sbr.rel (0) target = $region41
    $region40: #{llama_forward.28} parent=1 // pred_region
      %388 = dma.done [#allocation5], 256
    $region41: #{llama_forward.28} parent=1 // pred_fallthru
      _
    %389 = vsyncpa [#allocation4], 1
    %390 = vsyncpa [#allocation7], 1
    %391 = vsyncpa [#allocation5], 1

// kernel: llama_forward.24
$region0: #{llama_forward.24}
  #allocation0 [shape = 'u32[]', space=smem, size = 0x4, offset = 0x4, fixed_abs, tag = 'smem constant byte address 0x4 - core index']
  #allocation1 [shape = 'u32[144,128]{1,0:T(1,128)}', space=vmem, size = 0x12000, scoped, tag = 'internal scratch']
  #allocation2 [shape = 'f32[4,8,1]{2,1,0:T(8,128)}', space=vmem, size = 0x4000, scoped, tag = 'scratch operand']
  #allocation3 [shape = 'f32[4,8,1]{2,1,0:T(8,128)}', space=vmem, size = 0x4000, scoped, tag = 'scratch operand']
  #allocation4 [shape = 'f32[4,8,32]{2,1,0:T(8,128)}', space=vmem, size = 0x4000, scoped, tag = 'scratch operand']
  %s0 = inlined_call_operand.hbm [shape: bf16[2,8,128], index: 0, kind: input, shape index: {}]
  %s1 = inlined_call_operand.hbm [shape: bf16[2,16,64], index: 1, kind: input, shape index: {}]
  %s2 = inlined_call_operand.hbm [shape: bf16[2,16,64], index: 2, kind: input, shape index: {}]
  %s3 = inlined_call_operand.hbm [shape: bf16[2,8,128], index: 3, kind: output, shape index: {}]
  %s4 = sld [smem:[#allocation0]]
  $region69: #{llama_forward.24} parent=0
    _
  %s6 = ssub.s32 1, %s4
  %s7 = scalar_select 0, %s6, %s4
  $region1: #{llama_forward.24} parent=0
    #allocation5 [shape = 'u8[4096]{0}', space=vmem, size = 0x1000, scoped, tag = 'input window, operand 0']
    #allocation6 [shape = 's32[2]{0}', space=sflag, size = 0x8, scoped, tag = 'scoped memory for llama_forward.24']
    #allocation7 [shape = 's32[2]{0}', space=sflag, size = 0x8, scoped, tag = 'scoped memory for llama_forward.24']
    #allocation8 [shape = 'u8[8192]{0}', space=vmem, size = 0x2000, scoped, tag = 'input window, operand 1']
    #allocation9 [shape = 's32[2]{0}', space=sflag, size = 0x8, scoped, tag = 'scoped memory for llama_forward.24']
    #allocation10 [shape = 'u8[8192]{0}', space=vmem, size = 0x2000, scoped, tag = 'input window, operand 2']
    #allocation11 [shape = 'u8[4096]{0}', space=vmem, size = 0x1000, scoped, tag = 'output window, operand 0']
    %8 = vsyncpa [#allocation6], 0
    %s9 = scalar_lea.sflag [#allocation6], 1
    %10 = vsyncpa %s9, 0
    %11 = vsyncpa [#allocation9], 0
    %s12 = scalar_lea.sflag [#allocation9], 1
    %13 = vsyncpa %s12, 0
    %14 = vsyncpa [#allocation7], 0
    %s15 = scalar_lea.sflag [#allocation7], 1
    %16 = vsyncpa %s15, 0
    loop: start=0, step=1, limit=4
    $region2: #{llama_forward.24} parent=1 // loop_pre_header
      _
    $region3: #{llama_forward.24} parent=1 // loop_header
      %s18 = sphi 0, %s22
      %p19 = scmp.ge.s32.totalorder %s18, 4
      %s25 = sphi 0, %s44
      %s26 = sphi 0, %s40
      %s27 = sphi 0, %s36
      %s28 = sphi 0, %s25
      %s29 = sphi 0, %s26
      %s30 = sphi 0, %s27
      %s31 = sphi 0, %s28
      %s32 = sphi 0, %s29
      %s33 = sphi 0, %s30
      %s49 = sphi 0, %s51
      %s52 = sphi 0, %s49
      %s53 = sphi 0, %s52
      %s69 = sphi 0, %s53
      %s77 = sphi 0, %s79
      %s80 = sphi 0, %s77
      %s81 = sphi 0, %s80
      %s97 = sphi 0, %s81
      %s105 = sphi 0, %s107
      %s108 = sphi 0, %s105
      %s109 = sphi 0, %s108
      %s125 = sphi 0, %s109
      %s133 = sphi 0, %s135
      %s136 = sphi 0, %s133
      %s137 = sphi 0, %s136
      %s153 = sphi 0, %s137
    $region4: #{llama_forward.24} parent=1 // loop_header_branch
      %21 = sbr.rel (%p19) target = $region8
    $region5: #{llama_forward.24} parent=1 // loop_body
      %s23 = ssub.s32 %s18, 1
      %s24 = ssub.s32 %s18, 2
      %s34 = sadd.s32 1, %s27
      %p35 = scmp.ge.s32.totalorder %s34, 1
      %s36 = scalar_select %p35, 0, %s34
      %s37 = sadd.s32 1, %s26
      %s38 = scalar_select %p35, %s37, %s26
      %p39 = scmp.ge.s32.totalorder %s38, 1
      %s40 = scalar_select %p39, 0, %s38
      %s41 = sadd.s32 1, %s25
      %s42 = scalar_select %p39, %s41, %s25
      %p43 = scmp.ge.s32.totalorder %s42, 2
      %s44 = scalar_select %p43, 0, %s42
      %s45 = ssub.s32 %s25, %s44
      %s46 = ssub.s32 %s26, %s40
      %s47 = sor.u32 %s45, %s46
      %p48 = scmp.eq.s32.totalorder %s47, 0
      %s50 = sadd.s32 %s49, 1
      %s51 = scalar_select %p48, %s49, %s50
      %p54 = pneg %p48
      %p55 = scmp.eq.s32.totalorder %s18, 1
      %p56 = por %p54, %p55
      %p57 = scmp.ne.s32.totalorder %s49, %s52
      %p58 = scmp.eq.s32.totalorder %s18, 0
      %p59 = por %p57, %p58
      %p60 = scmp.ne.s32.totalorder %s49, %s52
      %p61 = scmp.eq.s32.totalorder %s23, 1
      %p62 = por %p60, %p61
      %p63 = scmp.ne.s32.totalorder %s52, %s53
      %p64 = scmp.eq.s32.totalorder %s23, 0
      %p65 = por %p63, %p64
      %p66 = scmp.ne.s32.totalorder %s52, %s53
      %p67 = scmp.eq.s32.totalorder %s24, 1
      %p68 = por %p66, %p67
      %p70 = scmp.ne.s32.totalorder %s53, %s69
      %p71 = scmp.eq.s32.totalorder %s24, 0
      %p72 = por %p70, %p71
      %s73 = ssub.s32 %s25, %s44
      %s74 = ssub.s32 %s27, %s36
      %s75 = sor.u32 %s73, %s74
      %p76 = scmp.eq.s32.totalorder %s75, 0
      %s78 = sadd.s32 %s77, 1
      %s79 = scalar_select %p76, %s77, %s78
      %p82 = pneg %p76
      %p83 = scmp.eq.s32.totalorder %s18, 1
      %p84 = por %p82, %p83
      %p85 = scmp.ne.s32.totalorder %s77, %s80
      %p86 = scmp.eq.s32.totalorder %s18, 0
      %p87 = por %p85, %p86
      %p88 = scmp.ne.s32.totalorder %s77, %s80
      %p89 = scmp.eq.s32.totalorder %s23, 1
      %p90 = por %p88, %p89
      %p91 = scmp.ne.s32.totalorder %s80, %s81
      %p92 = scmp.eq.s32.totalorder %s23, 0
      %p93 = por %p91, %p92
      %p94 = scmp.ne.s32.totalorder %s80, %s81
      %p95 = scmp.eq.s32.totalorder %s24, 1
      %p96 = por %p94, %p95
      %p98 = scmp.ne.s32.totalorder %s81, %s97
      %p99 = scmp.eq.s32.totalorder %s24, 0
      %p100 = por %p98, %p99
      %s101 = ssub.s32 %s25, %s44
      %s102 = ssub.s32 %s27, %s36
      %s103 = sor.u32 %s101, %s102
      %p104 = scmp.eq.s32.totalorder %s103, 0
      %s106 = sadd.s32 %s105, 1
      %s107 = scalar_select %p104, %s105, %s106
      %p110 = pneg %p104
      %p111 = scmp.eq.s32.totalorder %s18, 1
      %p112 = por %p110, %p111
      %p113 = scmp.ne.s32.totalorder %s105, %s108
      %p114 = scmp.eq.s32.totalorder %s18, 0
      %p115 = por %p113, %p114
      %p116 = scmp.ne.s32.totalorder %s105, %s108
      %p117 = scmp.eq.s32.totalorder %s23, 1
      %p118 = por %p116, %p117
      %p119 = scmp.ne.s32.totalorder %s108, %s109
      %p120 = scmp.eq.s32.totalorder %s23, 0
      %p121 = por %p119, %p120
      %p122 = scmp.ne.s32.totalorder %s108, %s109
      %p123 = scmp.eq.s32.totalorder %s24, 1
      %p124 = por %p122, %p123
      %p126 = scmp.ne.s32.totalorder %s109, %s125
      %p127 = scmp.eq.s32.totalorder %s24, 0
      %p128 = por %p126, %p127
      %s129 = ssub.s32 %s25, %s44
      %s130 = ssub.s32 %s26, %s40
      %s131 = sor.u32 %s129, %s130
      %p132 = scmp.eq.s32.totalorder %s131, 0
      %s134 = sadd.s32 %s133, 1
      %s135 = scalar_select %p132, %s133, %s134
      %p138 = pneg %p132
      %p139 = scmp.eq.s32.totalorder %s18, 1
      %p140 = por %p138, %p139
      %p141 = scmp.ne.s32.totalorder %s133, %s136
      %p142 = scmp.eq.s32.totalorder %s18, 0
      %p143 = por %p141, %p142
      %p144 = scmp.ne.s32.totalorder %s133, %s136
      %p145 = scmp.eq.s32.totalorder %s23, 1
      %p146 = por %p144, %p145
      %p147 = scmp.ne.s32.totalorder %s136, %s137
      %p148 = scmp.eq.s32.totalorder %s23, 0
      %p149 = por %p147, %p148
      %p150 = scmp.ne.s32.totalorder %s136, %s137
      %p151 = scmp.eq.s32.totalorder %s24, 1
      %p152 = por %p150, %p151
      %p154 = scmp.ne.s32.totalorder %s137, %s153
      %p155 = scmp.eq.s32.totalorder %s24, 0
      %p156 = por %p154, %p155
      %p157 = scmp.le.s32.totalorder 1, %s18
      %p158 = scmp.lt.s32.totalorder %s18, 3
      %p159 = pnand %p157, %p158
      %p160 = pneg %p159
      // Predicated region
      $region9: #{llama_forward.24} parent=5 // pred_check
        _
      $region10: #{llama_forward.24} parent=5 // pred_check_branch
        %162 = sbr.rel (%p159) target = $region12
      $region11: #{llama_forward.24} parent=5 // pred_region
        %s163 = ssub.s32 %s18, 1
      $region12: #{llama_forward.24} parent=5 // pred_fallthru
        _
      %p164 = scmp.lt.s32.totalorder %s18, 2
      // Predicated region
      $region13: #{llama_forward.24} parent=5 // pred_check
        %p165 = pneg %p164
      $region14: #{llama_forward.24} parent=5 // pred_check_branch
        %167 = sbr.rel (%p165) target = $region16
      $region15: #{llama_forward.24} parent=5 // pred_region
        // Predicated region
        $region17: #{llama_forward.24} parent=15 // pred_check
          %p168 = pneg %p59
        $region18: #{llama_forward.24} parent=15 // pred_check_branch
          %170 = sbr.rel (%p168) target = $region20
        $region19: #{llama_forward.24} parent=15 // pred_region
          %s171 = sand.u32 %s49, 1
          %s172 = scalar_lea.sflag [#allocation6], %s171
          %s173 = sand.u32 %s49, 1
          %s174 = smul.addr %s173, 4
          %s175 = scalar_lea.vmem [#allocation5], %s174
          %s177 = ssub.s32 64, 64
          %178 = vsyncadd %s172, %s177
          %s179 = sadd.s32 %s26, %s25
          %s180 = smul.addr %s179, 64
          %s181 = scalar_lea.hbm %s0, %s180
          %s183 = sshll.u32 %s175, 4
          %s184 = int_to_ptr.vmem [resolvable:$true] %s183
          %186 = dma.hbm_to_vmem [thread:$0]  %s181, 64, %s184, %s172
        $region20: #{llama_forward.24} parent=15 // pred_fallthru
          _
        // Predicated region
        $region21: #{llama_forward.24} parent=15 // pred_check
          %p187 = pneg %p87
        $region22: #{llama_forward.24} parent=15 // pred_check_branch
          %189 = sbr.rel (%p187) target = $region24
        $region23: #{llama_forward.24} parent=15 // pred_region
          %s190 = sand.u32 %s18, 1
          %s191 = scalar_lea.sflag [#allocation9], %s190
          %s192 = sand.u32 %s77, 1
          %s193 = smul.addr %s192, 8
          %s194 = scalar_lea.vmem [#allocation8], %s193
          %s195 = smul.u32 2, %s27
          %s197 = ssub.s32 128, 128
          %198 = vsyncadd %s191, %s197
          %s199 = smul.addr %s25, 2
          %s200 = sadd.s32 %s195, %s199
          %s201 = smul.addr %s200, 64
          %s202 = scalar_lea.hbm %s1, %s201
          %s203 = sshll.u32 %s194, 4
          %s204 = int_to_ptr.vmem [resolvable:$true] %s203
          %209 = dma.hbm_to_vmem [thread:$0]  %s202, 128, %s204, %s191, 64, 64, 4
        $region24: #{llama_forward.24} parent=15 // pred_fallthru
          _
        // Predicated region
        $region25: #{llama_forward.24} parent=15 // pred_check
          %p210 = pneg %p115
        $region26: #{llama_forward.24} parent=15 // pred_check_branch
          %212 = sbr.rel (%p210) target = $region28
        $region27: #{llama_forward.24} parent=15 // pred_region
          %s213 = sand.u32 %s18, 1
          %s214 = scalar_lea.sflag [#allocation9], %s213
          %s215 = sand.u32 %s105, 1
          %s216 = smul.addr %s215, 8
          %s217 = scalar_lea.vmem [#allocation10], %s216
          %s218 = smul.u32 2, %s27
          %s220 = ssub.s32 128, 128
          %221 = vsyncadd %s214, %s220
          %s222 = smul.addr %s25, 2
          %s223 = sadd.s32 %s218, %s222
          %s224 = smul.addr %s223, 64
          %s225 = scalar_lea.hbm %s2, %s224
          %s226 = sshll.u32 %s217, 4
          %s227 = int_to_ptr.vmem [resolvable:$true] %s226
          %232 = dma.hbm_to_vmem [thread:$0]  %s225, 128, %s227, %s214, 64, 64, 4
        $region28: #{llama_forward.24} parent=15 // pred_fallthru
          _
      $region16: #{llama_forward.24} parent=5 // pred_fallthru
        _
      %p233 = scmp.le.s32.totalorder 1, %s18
      %p234 = scmp.lt.s32.totalorder %s18, 3
      %p235 = pnand %p233, %p234
      %p236 = pneg %p235
      // Predicated region
      $region29: #{llama_forward.24} parent=5 // pred_check
        _
      $region30: #{llama_forward.24} parent=5 // pred_check_branch
        %238 = sbr.rel (%p235) target = $region32
      $region31: #{llama_forward.24} parent=5 // pred_region
        %s239 = ssub.s32 %s18, 1
        %s240 = sand.u32 %s52, 1
        %s241 = scalar_lea.sflag [#allocation6], %s240
        %s242 = sand.u32 %s52, 1
        %s243 = smul.addr %s242, 4
        %s244 = scalar_lea.vmem [#allocation5], %s243
        // Predicated region
        $region33: #{llama_forward.24} parent=31 // pred_check
          %p245 = pneg %p65
        $region34: #{llama_forward.24} parent=31 // pred_check_branch
          %247 = sbr.rel (%p245) target = $region36
        $region35: #{llama_forward.24} parent=31 // pred_region
          %248 = dma.done %s241, 64
        $region36: #{llama_forward.24} parent=31 // pred_fallthru
          _
        %s249 = sand.u32 %s23, 1
        %s250 = scalar_lea.sflag [#allocation9], %s249
        %s251 = sand.u32 %s80, 1
        %s252 = smul.addr %s251, 8
        %s253 = scalar_lea.vmem [#allocation8], %s252
        // Predicated region
        $region37: #{llama_forward.24} parent=31 // pred_check
          %p254 = pneg %p93
        $region38: #{llama_forward.24} parent=31 // pred_check_branch
          %256 = sbr.rel (%p254) target = $region40
        $region39: #{llama_forward.24} parent=31 // pred_region
          %257 = dma.done %s250, 128
        $region40: #{llama_forward.24} parent=31 // pred_fallthru
          _
        %s258 = sand.u32 %s23, 1
        %s259 = scalar_lea.sflag [#allocation9], %s258
        %s260 = sand.u32 %s108, 1
        %s261 = smul.addr %s260, 8
        %s262 = scalar_lea.vmem [#allocation10], %s261
        // Predicated region
        $region41: #{llama_forward.24} parent=31 // pred_check
          %p263 = pneg %p121
        $region42: #{llama_forward.24} parent=31 // pred_check_branch
          %265 = sbr.rel (%p263) target = $region44
        $region43: #{llama_forward.24} parent=31 // pred_region
          %266 = dma.done %s259, 128
        $region44: #{llama_forward.24} parent=31 // pred_fallthru
          _
        %s267 = sand.u32 %s52, 1
        %s268 = scalar_lea.sflag [#allocation6], %s267
        %s269 = sand.u32 %s52, 1
        %s270 = smul.addr %s269, 4
        %s271 = scalar_lea.vmem [#allocation5], %s270
        %p272 = pneg %p65
        %p273 = pneg %p62
        %s274 = sand.u32 %s23, 1
        %s275 = scalar_lea.sflag [#allocation9], %s274
        %s276 = sand.u32 %s80, 1
        %s277 = smul.addr %s276, 8
        %s278 = scalar_lea.vmem [#allocation8], %s277
        %p279 = pneg %p93
        %p280 = pneg %p90
        %s281 = sand.u32 %s23, 1
        %s282 = scalar_lea.sflag [#allocation9], %s281
        %s283 = sand.u32 %s108, 1
        %s284 = smul.addr %s283, 8
        %s285 = scalar_lea.vmem [#allocation10], %s284
        %p286 = pneg %p121
        %p287 = pneg %p118
        %p288 = pneg %p149
        %p289 = pneg %p146
        %s290 = sand.u32 %s136, 1
        %s291 = scalar_lea.sflag [#allocation7], %s290
        %s292 = sand.u32 %s136, 1
        %s293 = smul.addr %s292, 4
        %s294 = scalar_lea.vmem [#allocation11], %s293
        %s295 = smul.u32 2, %s30
        %s296 = smul.u32 2, %s30
        %p298 = scmp.eq.s32.totalorder %s30, 0
        // Predicated region
        $region45: #{llama_forward.24} parent=31 // pred_check
          %p299 = pneg %p298
        $region46: #{llama_forward.24} parent=31 // pred_check_branch
          %301 = sbr.rel (%p299) target = $region48
        $region47: #{llama_forward.24} parent=31 // pred_region
          %vm302 = vcmask 7168
          %303 = vst.msk [vmem:[#allocation2] sm:$0xff] %vm302, -1e+30
          %304 = vst.msk [vmem:[#allocation2 + $0x8] sm:$0xff] %vm302, -1e+30
          %305 = vst.msk [vmem:[#allocation2 + $0x10] sm:$0xff] %vm302, -1e+30
          %306 = vst.msk [vmem:[#allocation2 + $0x18] sm:$0xff] %vm302, -1e+30
          %307 = vst.msk [vmem:[#allocation3] sm:$0xff] %vm302, 0.0
          %308 = vst.msk [vmem:[#allocation3 + $0x8] sm:$0xff] %vm302, 0.0
          %309 = vst.msk [vmem:[#allocation3 + $0x10] sm:$0xff] %vm302, 0.0
          %310 = vst.msk [vmem:[#allocation3 + $0x18] sm:$0xff] %vm302, 0.0
          %vm311 = vcmask 261120
          %312 = vst.msk [vmem:[#allocation4] sm:$0xff] %vm311, 0.0
          %313 = vst.msk [vmem:[#allocation4 + $0x8] sm:$0xff] %vm311, 0.0
          %314 = vst.msk [vmem:[#allocation4 + $0x10] sm:$0xff] %vm311, 0.0
          %315 = vst.msk [vmem:[#allocation4 + $0x18] sm:$0xff] %vm311, 0.0
        $region48: #{llama_forward.24} parent=31 // pred_fallthru
          _
        %s316 = smul.u32 %s29, 8
        %s317 = smul.u32 %s30, 16
        %s318 = sadd.s32 %s316, 7
        %p319 = scmp.le.s32.totalorder %s317, %s318
        // Predicated region
        $region49: #{llama_forward.24} parent=31 // pred_check
          %p320 = pneg %p319
        $region50: #{llama_forward.24} parent=31 // pred_check_branch
          %322 = sbr.rel (%p320) target = $region52
        $region51: #{llama_forward.24} parent=31 // pred_region
          %v323 = vlaneseq
          %v324 = vshrl.u32 %v323, 7
          %v325 = vstv %s316
          %v326 = vadd.s32 %v325, %v324
          %v327 = vlaneseq
          %v328 = vand.u32 %v327, 127
          %v329 = vstv %s317
          %v330 = vadd.s32 %v329, %v328
          %vm331 = vcmp.le.s32.totalorder %v330, %v326
          %v332 = vld [vmem:[%s253] sm:$0xf]
          %v333 = vld [vmem:[%s253 + $0x4] sm:$0xf]
          %v334 = vld [vmem:[%s262] sm:$0xf]
          %v335 = vld [vmem:[%s262 + $0x4] sm:$0xf]
          %v336 = vld [vmem:[%s244] sm:$0xf]
          %v339 = vunpack.c.l.b16 %v332
          %v340 = vunpack.c.l.b16 %v333
          %v341 = vpack.c.b16 %v340, %v339
          %vm342 = vcmask 261120
          %v344 = vsel %vm342, %v336, 0
          %v347 = vsel %vm342, %v341, 0
          %349 = vmatprep.subr.bf16.mxu0 0
          %350 = vmatpush1.bf16.xpose.msra.mxu0 %v347
          %351 = vmatprep.subr.bf16.mxu0 0
          %352 = vmatpush1.bf16.xpose.msra.mxu0 0
          %353 = vmatprep.subr.bf16.mxu0 0
          %354 = vmatpush1.bf16.xpose.msra.mxu0 0
          %355 = vmatprep.subr.bf16.mxu0 0
          %356 = vmatpush1.bf16.xpose.msra.mxu0 0
          %357 = vmatprep.subr.bf16.mxu0 0
          %358 = vmatpush1.bf16.xpose.msra.mxu0 0
          %359 = vmatprep.subr.bf16.mxu0 0
          %360 = vmatpush1.bf16.xpose.msra.mxu0 0
          %361 = vmatprep.subr.bf16.mxu0 0
          %362 = vmatpush1.bf16.xpose.msra.mxu0 0
          %363 = vmatprep.subr.bf16.mxu0 0
          %364 = vmatpush1.bf16.xpose.msra.mxu0 0
          %365 = vmatprep.subr.bf16.mxu0 0
          %366 = vmatpush1.bf16.xpose.msra.mxu0 0
          %367 = vmatprep.subr.bf16.mxu0 0
          %368 = vmatpush1.bf16.xpose.msra.mxu0 0
          %369 = vmatprep.subr.bf16.mxu0 0
          %370 = vmatpush1.bf16.xpose.msra.mxu0 0
          %371 = vmatprep.subr.bf16.mxu0 0
          %372 = vmatpush1.bf16.xpose.msra.mxu0 0
          %373 = vmatprep.subr.bf16.mxu0 0
          %374 = vmatpush1.bf16.xpose.msra.mxu0 0
          %375 = vmatprep.subr.bf16.mxu0 0
          %376 = vmatpush1.bf16.xpose.msra.mxu0 0
          %377 = vmatprep.subr.bf16.mxu0 0
          %378 = vmatpush1.bf16.xpose.msra.mxu0 0
          %379 = vmatprep.subr.bf16.mxu0 0
          %380 = vmatpush1.bf16.xpose.msra.mxu0 0
          %381 = vmatprep.mubr.bf16.mxu0 0
          %382 = vmatmul.mubr.bf16.gmra.mrb[0].mxu0 %v344
          %v383 = vpop.f32.mrb[0].mxu0
          %v384 = vadd.f32 0.0, %v383
          %v385 = vpop.f32.mrb[0].mxu0
          %v386 = vpop.f32.mrb[0].mxu0
          %v387 = vpop.f32.mrb[0].mxu0
          %388 = vdwg.mxu0
          %v389 = vsel %vm331, %v384, -1e+30
          %v390 = vld [vmem:[#allocation2] sm:$0xff]
          %vm391 = vcmask 130048
          %v392 = vsel %vm391, %v389, -inf
          %393 = vmax.xlane.f32.xlu0 %v392
          %v394 = vpop.xlane.xlu0 %393
          %v395 = vmax.f32 %v390, %v394
          %v396 = vsub.f32 %v390, %v395
          %v397 = vmul.f32 %v396, 1.442695
          %v398 = vpow.pop %v397
          %400 = vset.pattern.permute.xlu0 0
          %401 = vperm.xlu0 %400, %v395
          %v402 = vpop.permute.xlu0 %401
          %v404 = vsub.f32 %v389, %v402
          %v405 = vmul.f32 %v404, 1.442695
          %v406 = vpow.pop %v405
          %v407 = vld [vmem:[#allocation3] sm:$0xff]
          %v408 = vmul.f32 %v398, %v407
          %v409 = vsel %vm391, %v406, 0.0
          %410 = vadd.xlane.f32.xlu0 %v409
          %v411 = vpop.xlane.xlu0 %410
          %v412 = vadd.f32 %v408, %v411
          %vm413 = vcmask 7168
          %414 = vst.msk [vmem:[#allocation3] sm:$0xff] %vm413, %v412
          %v415 = vld [vmem:[#allocation4] sm:$0xff]
          %417 = vset.pattern.permute.xlu0 0
          %418 = vperm.xlu0 %417, %v398
          %v419 = vpop.permute.xlu0 %418
          %v421 = vmul.f32 %v419, %v415
          %v422 = vpack.c.bf16 %v406, %v406
          %v425 = vunpack.c.l.b16 %v334
          %v426 = vunpack.c.l.b16 %v335
          %v427 = vpack.c.b16 %v426, %v425
          %v430 = vsel %vm391, %v422, 0
          %432 = vmatprep.subr.bf16.mxu0 0
          %433 = vmatpush1.bf16.msra.mxu0 %v427
          %434 = vmatprep.subr.bf16.mxu0 0
          %435 = vmatpush1.bf16.msra.mxu0 0
          %436 = vmatprep.subr.bf16.mxu0 0
          %437 = vmatpush1.bf16.msra.mxu0 0
          %438 = vmatprep.subr.bf16.mxu0 0
          %439 = vmatpush1.bf16.msra.mxu0 0
          %440 = vmatprep.subr.bf16.mxu0 0
          %441 = vmatpush1.bf16.msra.mxu0 0
          %442 = vmatprep.subr.bf16.mxu0 0
          %443 = vmatpush1.bf16.msra.mxu0 0
          %444 = vmatprep.subr.bf16.mxu0 0
          %445 = vmatpush1.bf16.msra.mxu0 0
          %446 = vmatprep.subr.bf16.mxu0 0
          %447 = vmatpush1.bf16.msra.mxu0 0
          %448 = vmatprep.subr.bf16.mxu0 0
          %449 = vmatpush1.bf16.msra.mxu0 0
          %450 = vmatprep.subr.bf16.mxu0 0
          %451 = vmatpush1.bf16.msra.mxu0 0
          %452 = vmatprep.subr.bf16.mxu0 0
          %453 = vmatpush1.bf16.msra.mxu0 0
          %454 = vmatprep.subr.bf16.mxu0 0
          %455 = vmatpush1.bf16.msra.mxu0 0
          %456 = vmatprep.subr.bf16.mxu0 0
          %457 = vmatpush1.bf16.msra.mxu0 0
          %458 = vmatprep.subr.bf16.mxu0 0
          %459 = vmatpush1.bf16.msra.mxu0 0
          %460 = vmatprep.subr.bf16.mxu0 0
          %461 = vmatpush1.bf16.msra.mxu0 0
          %462 = vmatprep.subr.bf16.mxu0 0
          %463 = vmatpush1.bf16.msra.mxu0 0
          %464 = vmatprep.mubr.bf16.mxu0 0
          %465 = vmatmul.mubr.bf16.gmra.mrb[0].mxu0 %v430
          %v466 = vpop.f32.mrb[0].mxu0
          %v467 = vadd.f32 0.0, %v466
          %v468 = vpop.f32.mrb[0].mxu0
          %v469 = vpop.f32.mrb[0].mxu0
          %v470 = vpop.f32.mrb[0].mxu0
          %471 = vdwg.mxu0
          %v472 = vadd.f32 %v421, %v467
          %473 = vst.msk [vmem:[#allocation4] sm:$0xff] %vm342, %v472
          %474 = vst.msk [vmem:[#allocation2] sm:$0xff] %vm413, %v395
          %v475 = vld [vmem:[%s244] sm:$0xf]
          %v477 = vunpack.c.l.b16 %v475
          %v478 = vpack.c.b16 %v477, %v477
          %479 = vrot.lane.b32.xlu0 %v478, 96
          %v480 = vpop.permute.xlu0 %479
          %v482 = vsel %vm342, %v480, 0
          %484 = vmatprep.subr.bf16.mxu0 0
          %485 = vmatpush1.bf16.xpose.msra.mxu0 %v347
          %486 = vmatprep.subr.bf16.mxu0 0
          %487 = vmatpush1.bf16.xpose.msra.mxu0 0
          %488 = vmatprep.subr.bf16.mxu0 0
          %489 = vmatpush1.bf16.xpose.msra.mxu0 0
          %490 = vmatprep.subr.bf16.mxu0 0
          %491 = vmatpush1.bf16.xpose.msra.mxu0 0
          %492 = vmatprep.subr.bf16.mxu0 0
          %493 = vmatpush1.bf16.xpose.msra.mxu0 0
          %494 = vmatprep.subr.bf16.mxu0 0
          %495 = vmatpush1.bf16.xpose.msra.mxu0 0
          %496 = vmatprep.subr.bf16.mxu0 0
          %497 = vmatpush1.bf16.xpose.msra.mxu0 0
          %498 = vmatprep.subr.bf16.mxu0 0
          %499 = vmatpush1.bf16.xpose.msra.mxu0 0
          %500 = vmatprep.subr.bf16.mxu0 0
          %501 = vmatpush1.bf16.xpose.msra.mxu0 0
          %502 = vmatprep.subr.bf16.mxu0 0
          %503 = vmatpush1.bf16.xpose.msra.mxu0 0
          %504 = vmatprep.subr.bf16.mxu0 0
          %505 = vmatpush1.bf16.xpose.msra.mxu0 0
          %506 = vmatprep.subr.bf16.mxu0 0
          %507 = vmatpush1.bf16.xpose.msra.mxu0 0
          %508 = vmatprep.subr.bf16.mxu0 0
          %509 = vmatpush1.bf16.xpose.msra.mxu0 0
          %510 = vmatprep.subr.bf16.mxu0 0
          %511 = vmatpush1.bf16.xpose.msra.mxu0 0
          %512 = vmatprep.subr.bf16.mxu0 0
          %513 = vmatpush1.bf16.xpose.msra.mxu0 0
          %514 = vmatprep.subr.bf16.mxu0 0
          %515 = vmatpush1.bf16.xpose.msra.mxu0 0
          %516 = vmatprep.mubr.bf16.mxu0 0
          %517 = vmatmul.mubr.bf16.gmra.mrb[0].mxu0 %v482
          %v518 = vpop.f32.mrb[0].mxu0
          %v519 = vadd.f32 0.0, %v518
          %v520 = vpop.f32.mrb[0].mxu0
          %v521 = vpop.f32.mrb[0].mxu0
          %v522 = vpop.f32.mrb[0].mxu0
          %523 = vdwg.mxu0
          %v524 = vsel %vm331, %v519, -1e+30
          %s525 = scalar_lea.vmem [#allocation2], 8
          %v526 = vld [vmem:[%s525] sm:$0xff]
          %v527 = vsel %vm391, %v524, -inf
          %528 = vmax.xlane.f32.xlu0 %v527
          %v529 = vpop.xlane.xlu0 %528
          %v530 = vmax.f32 %v526, %v529
          %v531 = vsub.f32 %v526, %v530
          %v532 = vmul.f32 %v531, 1.442695
          %v533 = vpow.pop %v532
          %535 = vset.pattern.permute.xlu0 0
          %536 = vperm.xlu0 %535, %v530
          %v537 = vpop.permute.xlu0 %536
          %v539 = vsub.f32 %v524, %v537
          %v540 = vmul.f32 %v539, 1.442695
          %v541 = vpow.pop %v540
          %s542 = scalar_lea.vmem [#allocation3], 8
          %v543 = vld [vmem:[%s542] sm:$0xff]
          %v544 = vmul.f32 %v533, %v543
          %v545 = vsel %vm391, %v541, 0.0
          %546 = vadd.xlane.f32.xlu0 %v545
          %v547 = vpop.xlane.xlu0 %546
          %v548 = vadd.f32 %v544, %v547
          %549 = vst.msk [vmem:[%s542] sm:$0xff] %vm413, %v548
          %s550 = scalar_lea.vmem [#allocation4], 8
          %v551 = vld [vmem:[%s550] sm:$0xff]
          %553 = vset.pattern.permute.xlu0 0
          %554 = vperm.xlu0 %553, %v533
          %v555 = vpop.permute.xlu0 %554
          %v557 = vmul.f32 %v555, %v551
          %v558 = vpack.c.bf16 %v541, %v541
          %v560 = vsel %vm391, %v558, 0
          %562 = vmatprep.subr.bf16.mxu0 0
          %563 = vmatpush1.bf16.msra.mxu0 %v427
          %564 = vmatprep.subr.bf16.mxu0 0
          %565 = vmatpush1.bf16.msra.mxu0 0
          %566 = vmatprep.subr.bf16.mxu0 0
          %567 = vmatpush1.bf16.msra.mxu0 0
          %568 = vmatprep.subr.bf16.mxu0 0
          %569 = vmatpush1.bf16.msra.mxu0 0
          %570 = vmatprep.subr.bf16.mxu0 0
          %571 = vmatpush1.bf16.msra.mxu0 0
          %572 = vmatprep.subr.bf16.mxu0 0
          %573 = vmatpush1.bf16.msra.mxu0 0
          %574 = vmatprep.subr.bf16.mxu0 0
          %575 = vmatpush1.bf16.msra.mxu0 0
          %576 = vmatprep.subr.bf16.mxu0 0
          %577 = vmatpush1.bf16.msra.mxu0 0
          %578 = vmatprep.subr.bf16.mxu0 0
          %579 = vmatpush1.bf16.msra.mxu0 0
          %580 = vmatprep.subr.bf16.mxu0 0
          %581 = vmatpush1.bf16.msra.mxu0 0
          %582 = vmatprep.subr.bf16.mxu0 0
          %583 = vmatpush1.bf16.msra.mxu0 0
          %584 = vmatprep.subr.bf16.mxu0 0
          %585 = vmatpush1.bf16.msra.mxu0 0
          %586 = vmatprep.subr.bf16.mxu0 0
          %587 = vmatpush1.bf16.msra.mxu0 0
          %588 = vmatprep.subr.bf16.mxu0 0
          %589 = vmatpush1.bf16.msra.mxu0 0
          %590 = vmatprep.subr.bf16.mxu0 0
          %591 = vmatpush1.bf16.msra.mxu0 0
          %592 = vmatprep.subr.bf16.mxu0 0
          %593 = vmatpush1.bf16.msra.mxu0 0
          %594 = vmatprep.mubr.bf16.mxu0 0
          %595 = vmatmul.mubr.bf16.gmra.mrb[0].mxu0 %v560
          %v596 = vpop.f32.mrb[0].mxu0
          %v597 = vadd.f32 0.0, %v596
          %v598 = vpop.f32.mrb[0].mxu0
          %v599 = vpop.f32.mrb[0].mxu0
          %v600 = vpop.f32.mrb[0].mxu0
          %601 = vdwg.mxu0
          %v602 = vadd.f32 %v557, %v597
          %603 = vst.msk [vmem:[%s550] sm:$0xff] %vm342, %v602
          %604 = vst.msk [vmem:[%s525] sm:$0xff] %vm413, %v530
          %v605 = vld [vmem:[%s253] sm:$0xf]
          %v606 = vld [vmem:[%s253 + $0x4] sm:$0xf]
          %v607 = vld [vmem:[%s262] sm:$0xf]
          %v608 = vld [vmem:[%s262 + $0x4] sm:$0xf]
          %v609 = vld [vmem:[%s244] sm:$0xf]
          %v611 = vunpack.c.l.b16 %v609
          %v612 = vpack.c.b16 %v611, %v611
          %613 = vrot.lane.b32.xlu0 %v612, 64
          %v614 = vpop.permute.xlu0 %613
          %v617 = vunpack.c.l.b16 %v605
          %v618 = vunpack.c.l.b16 %v606
          %v619 = vpack.c.b16 %v618, %v617
          %620 = vrot.lane.b32.xlu0 %v619, 96
          %v621 = vpop.permute.xlu0 %620
          %v623 = vsel %vm342, %v614, 0
          %v626 = vsel %vm342, %v621, 0
          %628 = vmatprep.subr.bf16.mxu0 0
          %629 = vmatpush1.bf16.xpose.msra.mxu0 %v626
          %630 = vmatprep.subr.bf16.mxu0 0
          %631 = vmatpush1.bf16.xpose.msra.mxu0 0
          %632 = vmatprep.subr.bf16.mxu0 0
          %633 = vmatpush1.bf16.xpose.msra.mxu0 0
          %634 = vmatprep.subr.bf16.mxu0 0
          %635 = vmatpush1.bf16.xpose.msra.mxu0 0
          %636 = vmatprep.subr.bf16.mxu0 0
          %637 = vmatpush1.bf16.xpose.msra.mxu0 0
          %638 = vmatprep.subr.bf16.mxu0 0
          %639 = vmatpush1.bf16.xpose.msra.mxu0 0
          %640 = vmatprep.subr.bf16.mxu0 0
          %641 = vmatpush1.bf16.xpose.msra.mxu0 0
          %642 = vmatprep.subr.bf16.mxu0 0
          %643 = vmatpush1.bf16.xpose.msra.mxu0 0
          %644 = vmatprep.subr.bf16.mxu0 0
          %645 = vmatpush1.bf16.xpose.msra.mxu0 0
          %646 = vmatprep.subr.bf16.mxu0 0
          %647 = vmatpush1.bf16.xpose.msra.mxu0 0
          %648 = vmatprep.subr.bf16.mxu0 0
          %649 = vmatpush1.bf16.xpose.msra.mxu0 0
          %650 = vmatprep.subr.bf16.mxu0 0
          %651 = vmatpush1.bf16.xpose.msra.mxu0 0
          %652 = vmatprep.subr.bf16.mxu0 0
          %653 = vmatpush1.bf16.xpose.msra.mxu0 0
          %654 = vmatprep.subr.bf16.mxu0 0
          %655 = vmatpush1.bf16.xpose.msra.mxu0 0
          %656 = vmatprep.subr.bf16.mxu0 0
          %657 = vmatpush1.bf16.xpose.msra.mxu0 0
          %658 = vmatprep.subr.bf16.mxu0 0
          %659 = vmatpush1.bf16.xpose.msra.mxu0 0
          %660 = vmatprep.mubr.bf16.mxu0 0
          %661 = vmatmul.mubr.bf16.gmra.mrb[0].mxu0 %v623
          %v662 = vpop.f32.mrb[0].mxu0
          %v663 = vadd.f32 0.0, %v662
          %v664 = vpop.f32.mrb[0].mxu0
          %v665 = vpop.f32.mrb[0].mxu0
          %v666 = vpop.f32.mrb[0].mxu0
          %667 = vdwg.mxu0
          %v668 = vsel %vm331, %v663, -1e+30
          %s669 = scalar_lea.vmem [#allocation2], 16
          %v670 = vld [vmem:[%s669] sm:$0xff]
          %v671 = vsel %vm391, %v668, -inf
          %672 = vmax.xlane.f32.xlu0 %v671
          %v673 = vpop.xlane.xlu0 %672
          %v674 = vmax.f32 %v670, %v673
          %v675 = vsub.f32 %v670, %v674
          %v676 = vmul.f32 %v675, 1.442695
          %v677 = vpow.pop %v676
          %679 = vset.pattern.permute.xlu0 0
          %680 = vperm.xlu0 %679, %v674
          %v681 = vpop.permute.xlu0 %680
          %v683 = vsub.f32 %v668, %v681
          %v684 = vmul.f32 %v683, 1.442695
          %v685 = vpow.pop %v684
          %s686 = scalar_lea.vmem [#allocation3], 16
          %v687 = vld [vmem:[%s686] sm:$0xff]
          %v688 = vmul.f32 %v677, %v687
          %v689 = vsel %vm391, %v685, 0.0
          %690 = vadd.xlane.f32.xlu0 %v689
          %v691 = vpop.xlane.xlu0 %690
          %v692 = vadd.f32 %v688, %v691
          %693 = vst.msk [vmem:[%s686] sm:$0xff] %vm413, %v692
          %s694 = scalar_lea.vmem [#allocation4], 16
          %v695 = vld [vmem:[%s694] sm:$0xff]
          %697 = vset.pattern.permute.xlu0 0
          %698 = vperm.xlu0 %697, %v677
          %v699 = vpop.permute.xlu0 %698
          %v701 = vmul.f32 %v699, %v695
          %v702 = vpack.c.bf16 %v685, %v685
          %v705 = vunpack.c.l.b16 %v607
          %v706 = vunpack.c.l.b16 %v608
          %v707 = vpack.c.b16 %v706, %v705
          %708 = vrot.lane.b32.xlu0 %v707, 96
          %v709 = vpop.permute.xlu0 %708
          %v712 = vsel %vm391, %v702, 0
          %714 = vmatprep.subr.bf16.mxu0 0
          %715 = vmatpush1.bf16.msra.mxu0 %v709
          %716 = vmatprep.subr.bf16.mxu0 0
          %717 = vmatpush1.bf16.msra.mxu0 0
          %718 = vmatprep.subr.bf16.mxu0 0
          %719 = vmatpush1.bf16.msra.mxu0 0
          %720 = vmatprep.subr.bf16.mxu0 0
          %721 = vmatpush1.bf16.msra.mxu0 0
          %722 = vmatprep.subr.bf16.mxu0 0
          %723 = vmatpush1.bf16.msra.mxu0 0
          %724 = vmatprep.subr.bf16.mxu0 0
          %725 = vmatpush1.bf16.msra.mxu0 0
          %726 = vmatprep.subr.bf16.mxu0 0
          %727 = vmatpush1.bf16.msra.mxu0 0
          %728 = vmatprep.subr.bf16.mxu0 0
          %729 = vmatpush1.bf16.msra.mxu0 0
          %730 = vmatprep.subr.bf16.mxu0 0
          %731 = vmatpush1.bf16.msra.mxu0 0
          %732 = vmatprep.subr.bf16.mxu0 0
          %733 = vmatpush1.bf16.msra.mxu0 0
          %734 = vmatprep.subr.bf16.mxu0 0
          %735 = vmatpush1.bf16.msra.mxu0 0
          %736 = vmatprep.subr.bf16.mxu0 0
          %737 = vmatpush1.bf16.msra.mxu0 0
          %738 = vmatprep.subr.bf16.mxu0 0
          %739 = vmatpush1.bf16.msra.mxu0 0
          %740 = vmatprep.subr.bf16.mxu0 0
          %741 = vmatpush1.bf16.msra.mxu0 0
          %742 = vmatprep.subr.bf16.mxu0 0
          %743 = vmatpush1.bf16.msra.mxu0 0
          %744 = vmatprep.subr.bf16.mxu0 0
          %745 = vmatpush1.bf16.msra.mxu0 0
          %746 = vmatprep.mubr.bf16.mxu0 0
          %747 = vmatmul.mubr.bf16.gmra.mrb[0].mxu0 %v712
          %v748 = vpop.f32.mrb[0].mxu0
          %v749 = vadd.f32 0.0, %v748
          %v750 = vpop.f32.mrb[0].mxu0
          %v751 = vpop.f32.mrb[0].mxu0
          %v752 = vpop.f32.mrb[0].mxu0
          %753 = vdwg.mxu0
          %v754 = vadd.f32 %v701, %v749
          %755 = vst.msk [vmem:[%s694] sm:$0xff] %vm342, %v754
          %756 = vst.msk [vmem:[%s669] sm:$0xff] %vm413, %v674
          %v757 = vld [vmem:[%s244] sm:$0xf]
          %v759 = vunpack.c.l.b16 %v757
          %v760 = vpack.c.b16 %v759, %v759
          %761 = vrot.lane.b32.xlu0 %v760, 32
          %v762 = vpop.permute.xlu0 %761
          %v764 = vsel %vm342, %v762, 0
          %766 = vmatprep.subr.bf16.mxu0 0
          %767 = vmatpush1.bf16.xpose.msra.mxu0 %v626
          %768 = vmatprep.subr.bf16.mxu0 0
          %769 = vmatpush1.bf16.xpose.msra.mxu0 0
          %770 = vmatprep.subr.bf16.mxu0 0
          %771 = vmatpush1.bf16.xpose.msra.mxu0 0
          %772 = vmatprep.subr.bf16.mxu0 0
          %773 = vmatpush1.bf16.xpose.msra.mxu0 0
          %774 = vmatprep.subr.bf16.mxu0 0
          %775 = vmatpush1.bf16.xpose.msra.mxu0 0
          %776 = vmatprep.subr.bf16.mxu0 0
          %777 = vmatpush1.bf16.xpose.msra.mxu0 0
          %778 = vmatprep.subr.bf16.mxu0 0
          %779 = vmatpush1.bf16.xpose.msra.mxu0 0
          %780 = vmatprep.subr.bf16.mxu0 0
          %781 = vmatpush1.bf16.xpose.msra.mxu0 0
          %782 = vmatprep.subr.bf16.mxu0 0
          %783 = vmatpush1.bf16.xpose.msra.mxu0 0
          %784 = vmatprep.subr.bf16.mxu0 0
          %785 = vmatpush1.bf16.xpose.msra.mxu0 0
          %786 = vmatprep.subr.bf16.mxu0 0
          %787 = vmatpush1.bf16.xpose.msra.mxu0 0
          %788 = vmatprep.subr.bf16.mxu0 0
          %789 = vmatpush1.bf16.xpose.msra.mxu0 0
          %790 = vmatprep.subr.bf16.mxu0 0
          %791 = vmatpush1.bf16.xpose.msra.mxu0 0
          %792 = vmatprep.subr.bf16.mxu0 0
          %793 = vmatpush1.bf16.xpose.msra.mxu0 0
          %794 = vmatprep.subr.bf16.mxu0 0
          %795 = vmatpush1.bf16.xpose.msra.mxu0 0
          %796 = vmatprep.subr.bf16.mxu0 0
          %797 = vmatpush1.bf16.xpose.msra.mxu0 0
          %798 = vmatprep.mubr.bf16.mxu0 0
          %799 = vmatmul.mubr.bf16.gmra.mrb[0].mxu0 %v764
          %v800 = vpop.f32.mrb[0].mxu0
          %v801 = vadd.f32 0.0, %v800
          %v802 = vpop.f32.mrb[0].mxu0
          %v803 = vpop.f32.mrb[0].mxu0
          %v804 = vpop.f32.mrb[0].mxu0
          %805 = vdwg.mxu0
          %v806 = vsel %vm331, %v801, -1e+30
          %s807 = scalar_lea.vmem [#allocation2], 24
          %v808 = vld [vmem:[%s807] sm:$0xff]
          %v809 = vsel %vm391, %v806, -inf
          %810 = vmax.xlane.f32.xlu0 %v809
          %v811 = vpop.xlane.xlu0 %810
          %v812 = vmax.f32 %v808, %v811
          %v813 = vsub.f32 %v808, %v812
          %v814 = vmul.f32 %v813, 1.442695
          %v815 = vpow.pop %v814
          %817 = vset.pattern.permute.xlu0 0
          %818 = vperm.xlu0 %817, %v812
          %v819 = vpop.permute.xlu0 %818
          %v821 = vsub.f32 %v806, %v819
          %v822 = vmul.f32 %v821, 1.442695
          %v823 = vpow.pop %v822
          %s824 = scalar_lea.vmem [#allocation3], 24
          %v825 = vld [vmem:[%s824] sm:$0xff]
          %v826 = vmul.f32 %v815, %v825
          %v827 = vsel %vm391, %v823, 0.0
          %828 = vadd.xlane.f32.xlu0 %v827
          %v829 = vpop.xlane.xlu0 %828
          %v830 = vadd.f32 %v826, %v829
          %831 = vst.msk [vmem:[%s824] sm:$0xff] %vm413, %v830
          %s832 = scalar_lea.vmem [#allocation4], 24
          %v833 = vld [vmem:[%s832] sm:$0xff]
          %835 = vset.pattern.permute.xlu0 0
          %836 = vperm.xlu0 %835, %v815
          %v837 = vpop.permute.xlu0 %836
          %v839 = vmul.f32 %v837, %v833
          %v840 = vpack.c.bf16 %v823, %v823
          %v842 = vsel %vm391, %v840, 0
          %844 = vmatprep.subr.bf16.mxu0 0
          %845 = vmatpush1.bf16.msra.mxu0 %v709
          %846 = vmatprep.subr.bf16.mxu0 0
          %847 = vmatpush1.bf16.msra.mxu0 0
          %848 = vmatprep.subr.bf16.mxu0 0
          %849 = vmatpush1.bf16.msra.mxu0 0
          %850 = vmatprep.subr.bf16.mxu0 0
          %851 = vmatpush1.bf16.msra.mxu0 0
          %852 = vmatprep.subr.bf16.mxu0 0
          %853 = vmatpush1.bf16.msra.mxu0 0
          %854 = vmatprep.subr.bf16.mxu0 0
          %855 = vmatpush1.bf16.msra.mxu0 0
          %856 = vmatprep.subr.bf16.mxu0 0
          %857 = vmatpush1.bf16.msra.mxu0 0
          %858 = vmatprep.subr.bf16.mxu0 0
          %859 = vmatpush1.bf16.msra.mxu0 0
          %860 = vmatprep.subr.bf16.mxu0 0
          %861 = vmatpush1.bf16.msra.mxu0 0
          %862 = vmatprep.subr.bf16.mxu0 0
          %863 = vmatpush1.bf16.msra.mxu0 0
          %864 = vmatprep.subr.bf16.mxu0 0
          %865 = vmatpush1.bf16.msra.mxu0 0
          %866 = vmatprep.subr.bf16.mxu0 0
          %867 = vmatpush1.bf16.msra.mxu0 0
          %868 = vmatprep.subr.bf16.mxu0 0
          %869 = vmatpush1.bf16.msra.mxu0 0
          %870 = vmatprep.subr.bf16.mxu0 0
          %871 = vmatpush1.bf16.msra.mxu0 0
          %872 = vmatprep.subr.bf16.mxu0 0
          %873 = vmatpush1.bf16.msra.mxu0 0
          %874 = vmatprep.subr.bf16.mxu0 0
          %875 = vmatpush1.bf16.msra.mxu0 0
          %876 = vmatprep.mubr.bf16.mxu0 0
          %877 = vmatmul.mubr.bf16.gmra.mrb[0].mxu0 %v842
          %v878 = vpop.f32.mrb[0].mxu0
          %v879 = vadd.f32 0.0, %v878
          %v880 = vpop.f32.mrb[0].mxu0
          %v881 = vpop.f32.mrb[0].mxu0
          %v882 = vpop.f32.mrb[0].mxu0
          %883 = vdwg.mxu0
          %v884 = vadd.f32 %v839, %v879
          %885 = vst.msk [vmem:[%s832] sm:$0xff] %vm342, %v884
          %886 = vst.msk [vmem:[%s807] sm:$0xff] %vm413, %v812
        $region52: #{llama_forward.24} parent=31 // pred_fallthru
          _
        // Predicated region
        $region53: #{llama_forward.24} parent=31 // pred_check
          %p887 = pneg %p298
        $region54: #{llama_forward.24} parent=31 // pred_check_branch
          %889 = sbr.rel (%p887) target = $region56
        $region55: #{llama_forward.24} parent=31 // pred_region
          %v890 = vld [vmem:[#allocation3] sm:$0xff]
          %v891 = vrcp.pop %v890
          %v892 = vld [vmem:[#allocation4] sm:$0xff]
          %894 = vset.pattern.permute.xlu0 0
          %895 = vperm.xlu0 %894, %v891
          %v896 = vpop.permute.xlu0 %895
          %v898 = vmul.f32 %v892, %v896
          %v899 = vpack.c.bf16 %v898, %v898
          %vm900 = vcmask 257024
          %901 = vst.msk [vmem:[%s294] sm:$0xf] %vm900, %v899
          %s902 = scalar_lea.vmem [#allocation3], 8
          %v903 = vld [vmem:[%s902] sm:$0xff]
          %v904 = vrcp.pop %v903
          %s905 = scalar_lea.vmem [#allocation4], 8
          %v906 = vld [vmem:[%s905] sm:$0xff]
          %908 = vset.pattern.permute.xlu0 0
          %909 = vperm.xlu0 %908, %v904
          %v910 = vpop.permute.xlu0 %909
          %v912 = vmul.f32 %v906, %v910
          %v913 = vpack.c.bf16 %v912, %v912
          %v915 = vunpack.c.l.b16 %v913
          %v916 = vpack.c.b16 %v915, %v915
          %917 = vrot.lane.b32.xlu0 %v916, 32
          %v918 = vpop.permute.xlu0 %917
          %vm920 = vcmask 519424
          %921 = vst.msk [vmem:[%s294] sm:$0xf] %vm920, %v918
          %s922 = scalar_lea.vmem [#allocation3], 16
          %v923 = vld [vmem:[%s922] sm:$0xff]
          %v924 = vrcp.pop %v923
          %s925 = scalar_lea.vmem [#allocation4], 16
          %v926 = vld [vmem:[%s925] sm:$0xff]
          %928 = vset.pattern.permute.xlu0 0
          %929 = vperm.xlu0 %928, %v924
          %v930 = vpop.permute.xlu0 %929
          %v932 = vmul.f32 %v926, %v930
          %v933 = vpack.c.bf16 %v932, %v932
          %v935 = vunpack.c.l.b16 %v933
          %v936 = vpack.c.b16 %v935, %v935
          %937 = vrot.lane.b32.xlu0 %v936, 64
          %v938 = vpop.permute.xlu0 %937
          %vm940 = vcmask 781824
          %941 = vst.msk [vmem:[%s294] sm:$0xf] %vm940, %v938
          %s942 = scalar_lea.vmem [#allocation3], 24
          %v943 = vld [vmem:[%s942] sm:$0xff]
          %v944 = vrcp.pop %v943
          %s945 = scalar_lea.vmem [#allocation4], 24
          %v946 = vld [vmem:[%s945] sm:$0xff]
          %948 = vset.pattern.permute.xlu0 0
          %949 = vperm.xlu0 %948, %v944
          %v950 = vpop.permute.xlu0 %949
          %v952 = vmul.f32 %v946, %v950
          %v953 = vpack.c.bf16 %v952, %v952
          %v955 = vunpack.c.l.b16 %v953
          %v956 = vpack.c.b16 %v955, %v955
          %957 = vrot.lane.b32.xlu0 %v956, 96
          %v958 = vpop.permute.xlu0 %957
          %vm960 = vcmask 1044224
          %961 = vst.msk [vmem:[%s294] sm:$0xf] %vm960, %v958
        $region56: #{llama_forward.24} parent=31 // pred_fallthru
          _
        %s962 = sand.u32 %s136, 1
        %s963 = scalar_lea.sflag [#allocation7], %s962
        %s964 = sand.u32 %s136, 1
        %s965 = smul.addr %s964, 4
        %s966 = scalar_lea.vmem [#allocation11], %s965
        // Predicated region
        $region57: #{llama_forward.24} parent=31 // pred_check
          %p967 = pneg %p146
        $region58: #{llama_forward.24} parent=31 // pred_check_branch
          %969 = sbr.rel (%p967) target = $region60
        $region59: #{llama_forward.24} parent=31 // pred_region
          %s971 = ssub.s32 64, 64
          %972 = vsyncadd %s963, %s971
          %s973 = sadd.s32 %s29, %s28
          %s974 = smul.addr %s973, 64
          %s975 = scalar_lea.hbm %s3, %s974
          %s977 = sshll.u32 %s966, 4
          %s978 = int_to_ptr.vmem [resolvable:$true] %s977
          %980 = dma.vmem_to_hbm [thread:$0]  %s978, 64, %s975, %s963
        $region60: #{llama_forward.24} parent=31 // pred_fallthru
          _
      $region32: #{llama_forward.24} parent=5 // pred_fallthru
        _
      %p981 = scmp.le.s32.totalorder 2, %s18
      // Predicated region
      $region61: #{llama_forward.24} parent=5 // pred_check
        %p982 = pneg %p981
      $region62: #{llama_forward.24} parent=5 // pred_check_branch
        %984 = sbr.rel (%p982) target = $region64
      $region63: #{llama_forward.24} parent=5 // pred_region
        %s985 = ssub.s32 %s18, 2
        // Predicated region
        $region65: #{llama_forward.24} parent=63 // pred_check
          %p986 = pneg %p152
        $region66: #{llama_forward.24} parent=63 // pred_check_branch
          %988 = sbr.rel (%p986) target = $region68
        $region67: #{llama_forward.24} parent=63 // pred_region
          %s989 = sand.u32 %s137, 1
          %s990 = scalar_lea.sflag [#allocation7], %s989
          %s991 = sand.u32 %s137, 1
          %s992 = smul.addr %s991, 4
          %s993 = scalar_lea.vmem [#allocation11], %s992
          %994 = dma.done %s990, 64
        $region68: #{llama_forward.24} parent=63 // pred_fallthru
          _
      $region64: #{llama_forward.24} parent=5 // pred_fallthru
        _
    $region6: #{llama_forward.24} parent=1 // loop_footer
      %s22 = sadd.s32 1, %s18
    $region7: #{llama_forward.24} parent=1 // loop_footer_branch
      %17 = sbr.rel target = $region3
    $region8: #{llama_forward.24} parent=1 // loop_exit
      _
    %995 = vsyncpa [#allocation6], 1
    %s996 = scalar_lea.sflag [#allocation6], 1
    %997 = vsyncpa %s996, 1
    %998 = vsyncpa [#allocation9], 1
    %s999 = scalar_lea.sflag [#allocation9], 1
    %1000 = vsyncpa %s999, 1
    %1001 = vsyncpa [#allocation7], 1
    %s1002 = scalar_lea.sflag [#allocation7], 1
    %1003 = vsyncpa %s1002, 1

// kernel: llama_forward.27
$region0: #{llama_forward.27}
  #allocation0 [shape = 'u32[]', space=smem, size = 0x4, offset = 0x4, fixed_abs, tag = 'smem constant byte address 0x4 - core index']
  #allocation1 [shape = 'u32[144,128]{1,0:T(1,128)}', space=vmem, size = 0x12000, scoped, tag = 'internal scratch']
  #allocation2 [shape = 'f32[16,384]{1,0:T(8,128)}', space=vmem, size = 0x6000, scoped, tag = 'scratch operand']
  #allocation3 [shape = 'f32[16,384]{1,0:T(8,128)}', space=vmem, size = 0x6000, scoped, tag = 'scratch operand']
  %s0 = inlined_call_operand.hbm [shape: bf16[16,128], index: 0, kind: input, shape index: {}]
  %s1 = inlined_call_operand.hbm [shape: bf16[128,384], index: 1, kind: input, shape index: {}]
  %s2 = inlined_call_operand.hbm [shape: bf16[128,384], index: 2, kind: input, shape index: {}]
  %s3 = inlined_call_operand.hbm [shape: bf16[16,384], index: 3, kind: output, shape index: {}]
  %s4 = sld [smem:[#allocation0]]
  $region42: #{llama_forward.27} parent=0
    _
  %s6 = ssub.s32 1, %s4
  %s7 = scalar_select 0, %s6, %s4
  $region1: #{llama_forward.27} parent=0
    #allocation4 [shape = 'u8[4096]{0}', space=vmem, size = 0x1000, scoped, tag = 'input window, operand 0, single buffered']
    #allocation5 [shape = 's32[1]{0}', space=sflag, size = 0x4, scoped, tag = 'scoped memory for llama_forward.27']
    #allocation6 [shape = 's32[1]{0}', space=sflag, size = 0x4, scoped, tag = 'scoped memory for llama_forward.27']
    #allocation7 [shape = 'u8[98304]{0}', space=vmem, size = 0x18000, scoped, tag = 'input window, operand 1, single buffered']
    #allocation8 [shape = 's32[1]{0}', space=sflag, size = 0x4, scoped, tag = 'scoped memory for llama_forward.27']
    #allocation9 [shape = 'u8[98304]{0}', space=vmem, size = 0x18000, scoped, tag = 'input window, operand 2, single buffered']
    #allocation10 [shape = 'u8[12288]{0}', space=vmem, size = 0x3000, scoped, tag = 'output window, operand 0, single buffered']
    %8 = vsyncpa [#allocation5], 0
    %9 = vsyncpa [#allocation8], 0
    %10 = vsyncpa [#allocation6], 0
    // Predicated region
    $region2: #{llama_forward.27} parent=1 // pred_check
      _
    $region3: #{llama_forward.27} parent=1 // pred_check_branch
      %12 = sbr.rel (0) target = $region5
    $region4: #{llama_forward.27} parent=1 // pred_region
      %s14 = ssub.s32 128, 128
      %15 = vsyncadd [#allocation5], %s14
      %s16 = sshll.u32 [#allocation4], 4
      %s17 = int_to_ptr.vmem [resolvable:$true] %s16
      %22 = dma.hbm_to_vmem [thread:$0]  %s0, 128, %s17, [#allocation5], 64, 64, 4
    $region5: #{llama_forward.27} parent=1 // pred_fallthru
      _
    // Predicated region
    $region6: #{llama_forward.27} parent=1 // pred_check
      _
    $region7: #{llama_forward.27} parent=1 // pred_check_branch
      %24 = sbr.rel (0) target = $region9
    $region8: #{llama_forward.27} parent=1 // pred_region
      %s26 = ssub.s32 3072, 3072
      %27 = vsyncadd [#allocation8], %s26
      %s28 = sshll.u32 [#allocation7], 4
      %s29 = int_to_ptr.vmem [resolvable:$true] %s28
      %34 = dma.hbm_to_vmem [thread:$0]  %s1, 3072, %s29, [#allocation8], 192, 192, 12
    $region9: #{llama_forward.27} parent=1 // pred_fallthru
      _
    // Predicated region
    $region10: #{llama_forward.27} parent=1 // pred_check
      _
    $region11: #{llama_forward.27} parent=1 // pred_check_branch
      %36 = sbr.rel (0) target = $region13
    $region12: #{llama_forward.27} parent=1 // pred_region
      %s38 = ssub.s32 3072, 3072
      %39 = vsyncadd [#allocation8], %s38
      %s40 = sshll.u32 [#allocation9], 4
      %s41 = int_to_ptr.vmem [resolvable:$true] %s40
      %46 = dma.hbm_to_vmem [thread:$0]  %s2, 3072, %s41, [#allocation8], 192, 192, 12
    $region13: #{llama_forward.27} parent=1 // pred_fallthru
      _
    // Predicated region
    $region14: #{llama_forward.27} parent=1 // pred_check
      _
    $region15: #{llama_forward.27} parent=1 // pred_check_branch
      %48 = sbr.rel (0) target = $region17
    $region16: #{llama_forward.27} parent=1 // pred_region
      %49 = dma.done [#allocation5], 128
    $region17: #{llama_forward.27} parent=1 // pred_fallthru
      _
    // Predicated region
    $region18: #{llama_forward.27} parent=1 // pred_check
      _
    $region19: #{llama_forward.27} parent=1 // pred_check_branch
      %51 = sbr.rel (0) target = $region21
    $region20: #{llama_forward.27} parent=1 // pred_region
      %52 = dma.done [#allocation8], 3072
    $region21: #{llama_forward.27} parent=1 // pred_fallthru
      _
    // Predicated region
    $region22: #{llama_forward.27} parent=1 // pred_check
      _
    $region23: #{llama_forward.27} parent=1 // pred_check_branch
      %54 = sbr.rel (0) target = $region25
    $region24: #{llama_forward.27} parent=1 // pred_region
      %55 = dma.done [#allocation8], 3072
    $region25: #{llama_forward.27} parent=1 // pred_fallthru
      _
    %p57 = scmp.eq.s32.totalorder 0, 0
    // Predicated region
    $region26: #{llama_forward.27} parent=1 // pred_check
      %p58 = pneg %p57
    $region27: #{llama_forward.27} parent=1 // pred_check_branch
      %60 = sbr.rel (%p58) target = $region29
    $region28: #{llama_forward.27} parent=1 // pred_region
      %61 = vst [vmem:[#allocation2] sm:$0xff] 0.0
      %62 = vst [vmem:[#allocation2 + $0x8] sm:$0xff] 0.0
      %63 = vst [vmem:[#allocation2 + $0x10] sm:$0xff] 0.0
      %64 = vst [vmem:[#allocation2 + $0x18] sm:$0xff] 0.0
      %65 = vst [vmem:[#allocation2 + $0x20] sm:$0xff] 0.0
      %66 = vst [vmem:[#allocation2 + $0x28] sm:$0xff] 0.0
      %67 = vst [vmem:[#allocation3] sm:$0xff] 0.0
      %68 = vst [vmem:[#allocation3 + $0x8] sm:$0xff] 0.0
      %69 = vst [vmem:[#allocation3 + $0x10] sm:$0xff] 0.0
      %70 = vst [vmem:[#allocation3 + $0x18] sm:$0xff] 0.0
      %71 = vst [vmem:[#allocation3 + $0x20] sm:$0xff] 0.0
      %72 = vst [vmem:[#allocation3 + $0x28] sm:$0xff] 0.0
    $region29: #{llama_forward.27} parent=1 // pred_fallthru
      _
    %v73 = vld [vmem:[#allocation4] sm:$0xf]
    %v74 = vld [vmem:[#allocation4 + $0x4] sm:$0xf]
    %v75 = vld [vmem:[#allocation2] sm:$0xff]
    %v76 = vld [vmem:[#allocation2 + $0x8] sm:$0xff]
    %v77 = vld [vmem:[#allocation2 + $0x10] sm:$0xff]
    %v78 = vld [vmem:[#allocation2 + $0x18] sm:$0xff]
    %v79 = vld [vmem:[#allocation2 + $0x20] sm:$0xff]
    %v80 = vld [vmem:[#allocation2 + $0x28] sm:$0xff]
    %v81 = vld [vmem:[#allocation7] sm:$0xff]
    %v82 = vld [vmem:[#allocation7 + $0x8] sm:$0xf]
    %v83 = vld [vmem:[#allocation7 + $0xc] sm:$0xff]
    %v84 = vld [vmem:[#allocation7 + $0x14] sm:$0xf]
    %v85 = vld [vmem:[#allocation7 + $0x18] sm:$0xff]
    %v86 = vld [vmem:[#allocation7 + $0x20] sm:$0xf]
    %v87 = vld [vmem:[#allocation7 + $0x24] sm:$0xff]
    %v88 = vld [vmem:[#allocation7 + $0x2c] sm:$0xf]
    %v89 = vld [vmem:[#allocation7 + $0x30] sm:$0xff]
    %v90 = vld [vmem:[#allocation7 + $0x38] sm:$0xf]
    %v91 = vld [vmem:[#allocation7 + $0x3c] sm:$0xff]
    %v92 = vld [vmem:[#allocation7 + $0x44] sm:$0xf]
    %v93 = vld [vmem:[#allocation7 + $0x48] sm:$0xff]
    %v94 = vld [vmem:[#allocation7 + $0x50] sm:$0xf]
    %v95 = vld [vmem:[#allocation7 + $0x54] sm:$0xff]
    %v96 = vld [vmem:[#allocation7 + $0x5c] sm:$0xf]
    %v97 = vld [vmem:[#allocation7 + $0x60] sm:$0xff]
    %v98 = vld [vmem:[#allocation7 + $0x68] sm:$0xf]
    %v99 = vld [vmem:[#allocation7 + $0x6c] sm:$0xff]
    %v100 = vld [vmem:[#allocation7 + $0x74] sm:$0xf]
    %v101 = vld [vmem:[#allocation7 + $0x78] sm:$0xff]
    %v102 = vld [vmem:[#allocation7 + $0x80] sm:$0xf]
    %v103 = vld [vmem:[#allocation7 + $0x84] sm:$0xff]
    %v104 = vld [vmem:[#allocation7 + $0x8c] sm:$0xf]
    %v105 = vld [vmem:[#allocation7 + $0x90] sm:$0xff]
    %v106 = vld [vmem:[#allocation7 + $0x98] sm:$0xf]
    %v107 = vld [vmem:[#allocation7 + $0x9c] sm:$0xff]
    %v108 = vld [vmem:[#allocation7 + $0xa4] sm:$0xf]
    %v109 = vld [vmem:[#allocation7 + $0xa8] sm:$0xff]
    %v110 = vld [vmem:[#allocation7 + $0xb0] sm:$0xf]
    %v111 = vld [vmem:[#allocation7 + $0xb4] sm:$0xff]
    %v112 = vld [vmem:[#allocation7 + $0xbc] sm:$0xf]
    %v115 = vunpack.c.l.b16 %v73
    %v116 = vunpack.c.l.b16 %v74
    %v117 = vpack.c.b16 %v116, %v115
    %v151 = vunpack.c.l.b16 %v81
    %v152 = vunpack.c.h.b16 %v81
    %v153 = vunpack.c.l.b16 %v82
    %v154 = vunpack.c.l.b16 %v83
    %v155 = vunpack.c.h.b16 %v83
    %v156 = vunpack.c.l.b16 %v84
    %v157 = vunpack.c.l.b16 %v85
    %v158 = vunpack.c.h.b16 %v85
    %v159 = vunpack.c.l.b16 %v86
    %v160 = vunpack.c.l.b16 %v87
    %v161 = vunpack.c.h.b16 %v87
    %v162 = vunpack.c.l.b16 %v88
    %v163 = vunpack.c.l.b16 %v89
    %v164 = vunpack.c.h.b16 %v89
    %v165 = vunpack.c.l.b16 %v90
    %v166 = vunpack.c.l.b16 %v91
    %v167 = vunpack.c.h.b16 %v91
    %v168 = vunpack.c.l.b16 %v92
    %v169 = vunpack.c.l.b16 %v93
    %v170 = vunpack.c.h.b16 %v93
    %v171 = vunpack.c.l.b16 %v94
    %v172 = vunpack.c.l.b16 %v95
    %v173 = vunpack.c.h.b16 %v95
    %v174 = vunpack.c.l.b16 %v96
    %v175 = vunpack.c.l.b16 %v97
    %v176 = vunpack.c.h.b16 %v97
    %v177 = vunpack.c.l.b16 %v98
    %v178 = vunpack.c.l.b16 %v99
    %v179 = vunpack.c.h.b16 %v99
    %v180 = vunpack.c.l.b16 %v100
    %v181 = vunpack.c.l.b16 %v101
    %v182 = vunpack.c.h.b16 %v101
    %v183 = vunpack.c.l.b16 %v102
    %v184 = vunpack.c.l.b16 %v103
    %v185 = vunpack.c.h.b16 %v103
    %v186 = vunpack.c.l.b16 %v104
    %v187 = vunpack.c.l.b16 %v105
    %v188 = vunpack.c.h.b16 %v105
    %v189 = vunpack.c.l.b16 %v106
    %v190 = vunpack.c.l.b16 %v107
    %v191 = vunpack.c.h.b16 %v107
    %v192 = vunpack.c.l.b16 %v108
    %v193 = vunpack.c.l.b16 %v109
    %v194 = vunpack.c.h.b16 %v109
    %v195 = vunpack.c.l.b16 %v110
    %v196 = vunpack.c.l.b16 %v111
    %v197 = vunpack.c.h.b16 %v111
    %v198 = vunpack.c.l.b16 %v112
    %v199 = vpack.c.b16 %v154, %v151
    %v200 = vpack.c.b16 %v155, %v152
    %v201 = vpack.c.b16 %v156, %v153
    %v202 = vpack.c.b16 %v160, %v157
    %v203 = vpack.c.b16 %v161, %v158
    %v204 = vpack.c.b16 %v162, %v159
    %v205 = vpack.c.b16 %v166, %v163
    %v206 = vpack.c.b16 %v167, %v164
    %v207 = vpack.c.b16 %v168, %v165
    %v208 = vpack.c.b16 %v172, %v169
    %v209 = vpack.c.b16 %v173, %v170
    %v210 = vpack.c.b16 %v174, %v171
    %v211 = vpack.c.b16 %v178, %v175
    %v212 = vpack.c.b16 %v179, %v176
    %v213 = vpack.c.b16 %v180, %v177
    %v214 = vpack.c.b16 %v184, %v181
    %v215 = vpack.c.b16 %v185, %v182
    %v216 = vpack.c.b16 %v186, %v183
    %v217 = vpack.c.b16 %v190, %v187
    %v218 = vpack.c.b16 %v191, %v188
    %v219 = vpack.c.b16 %v192, %v189
    %v220 = vpack.c.b16 %v196, %v193
    %v221 = vpack.c.b16 %v197, %v194
    %v222 = vpack.c.b16 %v198, %v195
    %247 = vmatprep.subr.bf16.mxu0 %v200
    %248 = vmatpush1.bf16.msra.mxu0 %v199
    %249 = vmatprep.subr.bf16.mxu0 %v203
    %250 = vmatpush1.bf16.msra.mxu0 %v202
    %251 = vmatprep.subr.bf16.mxu0 %v206
    %252 = vmatpush1.bf16.msra.mxu0 %v205
    %253 = vmatprep.subr.bf16.mxu0 %v209
    %254 = vmatpush1.bf16.msra.mxu0 %v208
    %255 = vmatprep.subr.bf16.mxu0 %v212
    %256 = vmatpush1.bf16.msra.mxu0 %v211
    %257 = vmatprep.subr.bf16.mxu0 %v215
    %258 = vmatpush1.bf16.msra.mxu0 %v214
    %259 = vmatprep.subr.bf16.mxu0 %v218
    %260 = vmatpush1.bf16.msra.mxu0 %v217
    %261 = vmatprep.subr.bf16.mxu0 %v221
    %262 = vmatpush1.bf16.msra.mxu0 %v220
    %263 = vmatprep.subr.bf16.mxu0 0
    %264 = vmatpush1.bf16.msra.mxu0 0
    %265 = vmatprep.subr.bf16.mxu0 0
    %266 = vmatpush1.bf16.msra.mxu0 0
    %267 = vmatprep.subr.bf16.mxu0 0
    %268 = vmatpush1.bf16.msra.mxu0 0
    %269 = vmatprep.subr.bf16.mxu0 0
    %270 = vmatpush1.bf16.msra.mxu0 0
    %271 = vmatprep.subr.bf16.mxu0 0
    %272 = vmatpush1.bf16.msra.mxu0 0
    %273 = vmatprep.subr.bf16.mxu0 0
    %274 = vmatpush1.bf16.msra.mxu0 0
    %275 = vmatprep.subr.bf16.mxu0 0
    %276 = vmatpush1.bf16.msra.mxu0 0
    %277 = vmatprep.subr.bf16.mxu0 0
    %278 = vmatpush1.bf16.msra.mxu0 0
    %279 = vmatprep.mubr.bf16.mxu0 0
    %280 = vmatmul.mubr.bf16.gmra.mrb[0].mxu0 %v117
    %v281 = vpop.f32.mrb[0].mxu0
    %v282 = vadd.f32 0.0, %v281
    %v283 = vpop.f32.mrb[0].mxu0
    %v284 = vadd.f32 0.0, %v283
    %v285 = vpop.f32.mrb[0].mxu0
    %v286 = vadd.f32 0.0, %v285
    %v287 = vpop.f32.mrb[0].mxu0
    %v288 = vadd.f32 0.0, %v287
    %289 = vdwg.mxu0
    %290 = vmatprep.subr.bf16.mxu0 0
    %291 = vmatpush1.bf16.msra.mxu0 %v201
    %292 = vmatprep.subr.bf16.mxu0 0
    %293 = vmatpush1.bf16.msra.mxu0 %v204
    %294 = vmatprep.subr.bf16.mxu0 0
    %295 = vmatpush1.bf16.msra.mxu0 %v207
    %296 = vmatprep.subr.bf16.mxu0 0
    %297 = vmatpush1.bf16.msra.mxu0 %v210
    %298 = vmatprep.subr.bf16.mxu0 0
    %299 = vmatpush1.bf16.msra.mxu0 %v213
    %300 = vmatprep.subr.bf16.mxu0 0
    %301 = vmatpush1.bf16.msra.mxu0 %v216
    %302 = vmatprep.subr.bf16.mxu0 0
    %303 = vmatpush1.bf16.msra.mxu0 %v219
    %304 = vmatprep.subr.bf16.mxu0 0
    %305 = vmatpush1.bf16.msra.mxu0 %v222
    %306 = vmatprep.subr.bf16.mxu0 0
    %307 = vmatpush1.bf16.msra.mxu0 0
    %308 = vmatprep.subr.bf16.mxu0 0
    %309 = vmatpush1.bf16.msra.mxu0 0
    %310 = vmatprep.subr.bf16.mxu0 0
    %311 = vmatpush1.bf16.msra.mxu0 0
    %312 = vmatprep.subr.bf16.mxu0 0
    %313 = vmatpush1.bf16.msra.mxu0 0
    %314 = vmatprep.subr.bf16.mxu0 0
    %315 = vmatpush1.bf16.msra.mxu0 0
    %316 = vmatprep.subr.bf16.mxu0 0
    %317 = vmatpush1.bf16.msra.mxu0 0
    %318 = vmatprep.subr.bf16.mxu0 0
    %319 = vmatpush1.bf16.msra.mxu0 0
    %320 = vmatprep.subr.bf16.mxu0 0
    %321 = vmatpush1.bf16.msra.mxu0 0
    %322 = vmatprep.mubr.bf16.mxu0 0
    %323 = vmatmul.mubr.bf16.gmra.mrb[0].mxu0 %v117
    %v324 = vpop.f32.mrb[0].mxu0
    %v325 = vadd.f32 0.0, %v324
    %v326 = vpop.f32.mrb[0].mxu0
    %v327 = vpop.f32.mrb[0].mxu0
    %v328 = vadd.f32 0.0, %v327
    %v329 = vpop.f32.mrb[0].mxu0
    %330 = vdwg.mxu0
    %v331 = vadd.f32 %v75, %v282
    %v332 = vadd.f32 %v76, %v284
    %v333 = vadd.f32 %v77, %v325
    %v334 = vadd.f32 %v78, %v286
    %v335 = vadd.f32 %v79, %v288
    %v336 = vadd.f32 %v80, %v328
    %337 = vst [vmem:[#allocation2] sm:$0xff] %v331
    %338 = vst [vmem:[#allocation2 + $0x8] sm:$0xff] %v332
    %339 = vst [vmem:[#allocation2 + $0x10] sm:$0xff] %v333
    %340 = vst [vmem:[#allocation2 + $0x18] sm:$0xff] %v334
    %341 = vst [vmem:[#allocation2 + $0x20] sm:$0xff] %v335
    %342 = vst [vmem:[#allocation2 + $0x28] sm:$0xff] %v336
    %v343 = vld [vmem:[#allocation3] sm:$0xff]
    %v344 = vld [vmem:[#allocation3 + $0x8] sm:$0xff]
    %v345 = vld [vmem:[#allocation3 + $0x10] sm:$0xff]
    %v346 = vld [vmem:[#allocation3 + $0x18] sm:$0xff]
    %v347 = vld [vmem:[#allocation3 + $0x20] sm:$0xff]
    %v348 = vld [vmem:[#allocation3 + $0x28] sm:$0xff]
    %v349 = vld [vmem:[#allocation9] sm:$0xff]
    %v350 = vld [vmem:[#allocation9 + $0x8] sm:$0xf]
    %v351 = vld [vmem:[#allocation9 + $0xc] sm:$0xff]
    %v352 = vld [vmem:[#allocation9 + $0x14] sm:$0xf]
    %v353 = vld [vmem:[#allocation9 + $0x18] sm:$0xff]
    %v354 = vld [vmem:[#allocation9 + $0x20] sm:$0xf]
    %v355 = vld [vmem:[#allocation9 + $0x24] sm:$0xff]
    %v356 = vld [vmem:[#allocation9 + $0x2c] sm:$0xf]
    %v357 = vld [vmem:[#allocation9 + $0x30] sm:$0xff]
    %v358 = vld [vmem:[#allocation9 + $0x38] sm:$0xf]
    %v359 = vld [vmem:[#allocation9 + $0x3c] sm:$0xff]
    %v360 = vld [vmem:[#allocation9 + $0x44] sm:$0xf]
    %v361 = vld [vmem:[#allocation9 + $0x48] sm:$0xff]
    %v362 = vld [vmem:[#allocation9 + $0x50] sm:$0xf]
    %v363 = vld [vmem:[#allocation9 + $0x54] sm:$0xff]
    %v364 = vld [vmem:[#allocation9 + $0x5c] sm:$0xf]
    %v365 = vld [vmem:[#allocation9 + $0x60] sm:$0xff]
    %v366 = vld [vmem:[#allocation9 + $0x68] sm:$0xf]
    %v367 = vld [vmem:[#allocation9 + $0x6c] sm:$0xff]
    %v368 = vld [vmem:[#allocation9 + $0x74] sm:$0xf]
    %v369 = vld [vmem:[#allocation9 + $0x78] sm:$0xff]
    %v370 = vld [vmem:[#allocation9 + $0x80] sm:$0xf]
    %v371 = vld [vmem:[#allocation9 + $0x84] sm:$0xff]
    %v372 = vld [vmem:[#allocation9 + $0x8c] sm:$0xf]
    %v373 = vld [vmem:[#allocation9 + $0x90] sm:$0xff]
    %v374 = vld [vmem:[#allocation9 + $0x98] sm:$0xf]
    %v375 = vld [vmem:[#allocation9 + $0x9c] sm:$0xff]
    %v376 = vld [vmem:[#allocation9 + $0xa4] sm:$0xf]
    %v377 = vld [vmem:[#allocation9 + $0xa8] sm:$0xff]
    %v378 = vld [vmem:[#allocation9 + $0xb0] sm:$0xf]
    %v379 = vld [vmem:[#allocation9 + $0xb4] sm:$0xff]
    %v380 = vld [vmem:[#allocation9 + $0xbc] sm:$0xf]
    %v413 = vunpack.c.l.b16 %v349
    %v414 = vunpack.c.h.b16 %v349
    %v415 = vunpack.c.l.b16 %v350
    %v416 = vunpack.c.l.b16 %v351
    %v417 = vunpack.c.h.b16 %v351
    %v418 = vunpack.c.l.b16 %v352
    %v419 = vunpack.c.l.b16 %v353
    %v420 = vunpack.c.h.b16 %v353
    %v421 = vunpack.c.l.b16 %v354
    %v422 = vunpack.c.l.b16 %v355
    %v423 = vunpack.c.h.b16 %v355
    %v424 = vunpack.c.l.b16 %v356
    %v425 = vunpack.c.l.b16 %v357
    %v426 = vunpack.c.h.b16 %v357
    %v427 = vunpack.c.l.b16 %v358
    %v428 = vunpack.c.l.b16 %v359
    %v429 = vunpack.c.h.b16 %v359
    %v430 = vunpack.c.l.b16 %v360
    %v431 = vunpack.c.l.b16 %v361
    %v432 = vunpack.c.h.b16 %v361
    %v433 = vunpack.c.l.b16 %v362
    %v434 = vunpack.c.l.b16 %v363
    %v435 = vunpack.c.h.b16 %v363
    %v436 = vunpack.c.l.b16 %v364
    %v437 = vunpack.c.l.b16 %v365
    %v438 = vunpack.c.h.b16 %v365
    %v439 = vunpack.c.l.b16 %v366
    %v440 = vunpack.c.l.b16 %v367
    %v441 = vunpack.c.h.b16 %v367
    %v442 = vunpack.c.l.b16 %v368
    %v443 = vunpack.c.l.b16 %v369
    %v444 = vunpack.c.h.b16 %v369
    %v445 = vunpack.c.l.b16 %v370
    %v446 = vunpack.c.l.b16 %v371
    %v447 = vunpack.c.h.b16 %v371
    %v448 = vunpack.c.l.b16 %v372
    %v449 = vunpack.c.l.b16 %v373
    %v450 = vunpack.c.h.b16 %v373
    %v451 = vunpack.c.l.b16 %v374
    %v452 = vunpack.c.l.b16 %v375
    %v453 = vunpack.c.h.b16 %v375
    %v454 = vunpack.c.l.b16 %v376
    %v455 = vunpack.c.l.b16 %v377
    %v456 = vunpack.c.h.b16 %v377
    %v457 = vunpack.c.l.b16 %v378
    %v458 = vunpack.c.l.b16 %v379
    %v459 = vunpack.c.h.b16 %v379
    %v460 = vunpack.c.l.b16 %v380
    %v461 = vpack.c.b16 %v416, %v413
    %v462 = vpack.c.b16 %v417, %v414
    %v463 = vpack.c.b16 %v418, %v415
    %v464 = vpack.c.b16 %v422, %v419
    %v465 = vpack.c.b16 %v423, %v420
    %v466 = vpack.c.b16 %v424, %v421
    %v467 = vpack.c.b16 %v428, %v425
    %v468 = vpack.c.b16 %v429, %v426
    %v469 = vpack.c.b16 %v430, %v427
    %v470 = vpack.c.b16 %v434, %v431
    %v471 = vpack.c.b16 %v435, %v432
    %v472 = vpack.c.b16 %v436, %v433
    %v473 = vpack.c.b16 %v440, %v437
    %v474 = vpack.c.b16 %v441, %v438
    %v475 = vpack.c.b16 %v442, %v439
    %v476 = vpack.c.b16 %v446, %v443
    %v477 = vpack.c.b16 %v447, %v444
    %v478 = vpack.c.b16 %v448, %v445
    %v479 = vpack.c.b16 %v452, %v449
    %v480 = vpack.c.b16 %v453, %v450
    %v481 = vpack.c.b16 %v454, %v451
    %v482 = vpack.c.b16 %v458, %v455
    %v483 = vpack.c.b16 %v459, %v456
    %v484 = vpack.c.b16 %v460, %v457
    %509 = vmatprep.subr.bf16.mxu0 %v462
    %510 = vmatpush1.bf16.msra.mxu0 %v461
    %511 = vmatprep.subr.bf16.mxu0 %v465
    %512 = vmatpush1.bf16.msra.mxu0 %v464
    %513 = vmatprep.subr.bf16.mxu0 %v468
    %514 = vmatpush1.bf16.msra.mxu0 %v467
    %515 = vmatprep.subr.bf16.mxu0 %v471
    %516 = vmatpush1.bf16.msra.mxu0 %v470
    %517 = vmatprep.subr.bf16.mxu0 %v474
    %518 = vmatpush1.bf16.msra.mxu0 %v473
    %519 = vmatprep.subr.bf16.mxu0 %v477
    %520 = vmatpush1.bf16.msra.mxu0 %v476
    %521 = vmatprep.subr.bf16.mxu0 %v480
    %522 = vmatpush1.bf16.msra.mxu0 %v479
    %523 = vmatprep.subr.bf16.mxu0 %v483
    %524 = vmatpush1.bf16.msra.mxu0 %v482
    %525 = vmatprep.subr.bf16.mxu0 0
    %526 = vmatpush1.bf16.msra.mxu0 0
    %527 = vmatprep.subr.bf16.mxu0 0
    %528 = vmatpush1.bf16.msra.mxu0 0
    %529 = vmatprep.subr.bf16.mxu0 0
    %530 = vmatpush1.bf16.msra.mxu0 0
    %531 = vmatprep.subr.bf16.mxu0 0
    %532 = vmatpush1.bf16.msra.mxu0 0
    %533 = vmatprep.subr.bf16.mxu0 0
    %534 = vmatpush1.bf16.msra.mxu0 0
    %535 = vmatprep.subr.bf16.mxu0 0
    %536 = vmatpush1.bf16.msra.mxu0 0
    %537 = vmatprep.subr.bf16.mxu0 0
    %538 = vmatpush1.bf16.msra.mxu0 0
    %539 = vmatprep.subr.bf16.mxu0 0
    %540 = vmatpush1.bf16.msra.mxu0 0
    %541 = vmatprep.mubr.bf16.mxu0 0
    %542 = vmatmul.mubr.bf16.gmra.mrb[0].mxu0 %v117
    %v543 = vpop.f32.mrb[0].mxu0
    %v544 = vadd.f32 0.0, %v543
    %v545 = vpop.f32.mrb[0].mxu0
    %v546 = vadd.f32 0.0, %v545
    %v547 = vpop.f32.mrb[0].mxu0
    %v548 = vadd.f32 0.0, %v547
    %v549 = vpop.f32.mrb[0].mxu0
    %v550 = vadd.f32 0.0, %v549
    %551 = vdwg.mxu0
    %552 = vmatprep.subr.bf16.mxu0 0
    %553 = vmatpush1.bf16.msra.mxu0 %v463
    %554 = vmatprep.subr.bf16.mxu0 0
    %555 = vmatpush1.bf16.msra.mxu0 %v466
    %556 = vmatprep.subr.bf16.mxu0 0
    %557 = vmatpush1.bf16.msra.mxu0 %v469
    %558 = vmatprep.subr.bf16.mxu0 0
    %559 = vmatpush1.bf16.msra.mxu0 %v472
    %560 = vmatprep.subr.bf16.mxu0 0
    %561 = vmatpush1.bf16.msra.mxu0 %v475
    %562 = vmatprep.subr.bf16.mxu0 0
    %563 = vmatpush1.bf16.msra.mxu0 %v478
    %564 = vmatprep.subr.bf16.mxu0 0
    %565 = vmatpush1.bf16.msra.mxu0 %v481
    %566 = vmatprep.subr.bf16.mxu0 0
    %567 = vmatpush1.bf16.msra.mxu0 %v484
    %568 = vmatprep.subr.bf16.mxu0 0
    %569 = vmatpush1.bf16.msra.mxu0 0
    %570 = vmatprep.subr.bf16.mxu0 0
    %571 = vmatpush1.bf16.msra.mxu0 0
    %572 = vmatprep.subr.bf16.mxu0 0
    %573 = vmatpush1.bf16.msra.mxu0 0
    %574 = vmatprep.subr.bf16.mxu0 0
    %575 = vmatpush1.bf16.msra.mxu0 0
    %576 = vmatprep.subr.bf16.mxu0 0
    %577 = vmatpush1.bf16.msra.mxu0 0
    %578 = vmatprep.subr.bf16.mxu0 0
    %579 = vmatpush1.bf16.msra.mxu0 0
    %580 = vmatprep.subr.bf16.mxu0 0
    %581 = vmatpush1.bf16.msra.mxu0 0
    %582 = vmatprep.subr.bf16.mxu0 0
    %583 = vmatpush1.bf16.msra.mxu0 0
    %584 = vmatprep.mubr.bf16.mxu0 0
    %585 = vmatmul.mubr.bf16.gmra.mrb[0].mxu0 %v117
    %v586 = vpop.f32.mrb[0].mxu0
    %v587 = vadd.f32 0.0, %v586
    %v588 = vpop.f32.mrb[0].mxu0
    %v589 = vpop.f32.mrb[0].mxu0
    %v590 = vadd.f32 0.0, %v589
    %v591 = vpop.f32.mrb[0].mxu0
    %592 = vdwg.mxu0
    %v593 = vadd.f32 %v343, %v544
    %v594 = vadd.f32 %v344, %v546
    %v595 = vadd.f32 %v345, %v587
    %v596 = vadd.f32 %v346, %v548
    %v597 = vadd.f32 %v347, %v550
    %v598 = vadd.f32 %v348, %v590
    %599 = vst [vmem:[#allocation3] sm:$0xff] %v593
    %600 = vst [vmem:[#allocation3 + $0x8] sm:$0xff] %v594
    %601 = vst [vmem:[#allocation3 + $0x10] sm:$0xff] %v595
    %602 = vst [vmem:[#allocation3 + $0x18] sm:$0xff] %v596
    %603 = vst [vmem:[#allocation3 + $0x20] sm:$0xff] %v597
    %604 = vst [vmem:[#allocation3 + $0x28] sm:$0xff] %v598
    // Predicated region
    $region30: #{llama_forward.27} parent=1 // pred_check
      %p605 = pneg %p57
    $region31: #{llama_forward.27} parent=1 // pred_check_branch
      %607 = sbr.rel (%p605) target = $region33
    $region32: #{llama_forward.27} parent=1 // pred_region
      %v608 = vld [vmem:[#allocation2] sm:$0xff]
      %v609 = vld [vmem:[#allocation2 + $0x8] sm:$0xff]
      %v610 = vld [vmem:[#allocation2 + $0x10] sm:$0xff]
      %v611 = vld [vmem:[#allocation2 + $0x18] sm:$0xff]
      %v612 = vld [vmem:[#allocation2 + $0x20] sm:$0xff]
      %v613 = vld [vmem:[#allocation2 + $0x28] sm:$0xff]
      %v614 = vxor.u32 %v608, 2147483648
      %v615 = vxor.u32 %v609, 2147483648
      %v616 = vxor.u32 %v610, 2147483648
      %v617 = vxor.u32 %v611, 2147483648
      %v618 = vxor.u32 %v612, 2147483648
      %v619 = vxor.u32 %v613, 2147483648
      %v620 = vmul.f32 %v614, 1.442695
      %v621 = vpow.pop %v620
      %v622 = vmul.f32 %v615, 1.442695
      %v623 = vpow.pop %v622
      %v624 = vmul.f32 %v616, 1.442695
      %v625 = vpow.pop %v624
      %v626 = vmul.f32 %v617, 1.442695
      %v627 = vpow.pop %v626
      %v628 = vmul.f32 %v618, 1.442695
      %v629 = vpow.pop %v628
      %v630 = vmul.f32 %v619, 1.442695
      %v631 = vpow.pop %v630
      %v632 = vadd.f32 %v621, 1.0
      %v633 = vadd.f32 %v623, 1.0
      %v634 = vadd.f32 %v625, 1.0
      %v635 = vadd.f32 %v627, 1.0
      %v636 = vadd.f32 %v629, 1.0
      %v637 = vadd.f32 %v631, 1.0
      %v638 = vrcp.pop %v632
      %v639 = vmul.f32 1.0, %v638
      %v640 = vrcp.pop %v633
      %v641 = vmul.f32 1.0, %v640
      %v642 = vrcp.pop %v634
      %v643 = vmul.f32 1.0, %v642
      %v644 = vrcp.pop %v635
      %v645 = vmul.f32 1.0, %v644
      %v646 = vrcp.pop %v636
      %v647 = vmul.f32 1.0, %v646
      %v648 = vrcp.pop %v637
      %v649 = vmul.f32 1.0, %v648
      %v650 = vmul.f32 %v608, %v639
      %v651 = vmul.f32 %v609, %v641
      %v652 = vmul.f32 %v610, %v643
      %v653 = vmul.f32 %v611, %v645
      %v654 = vmul.f32 %v612, %v647
      %v655 = vmul.f32 %v613, %v649
      %v656 = vld [vmem:[#allocation3] sm:$0xff]
      %v657 = vld [vmem:[#allocation3 + $0x8] sm:$0xff]
      %v658 = vld [vmem:[#allocation3 + $0x10] sm:$0xff]
      %v659 = vld [vmem:[#allocation3 + $0x18] sm:$0xff]
      %v660 = vld [vmem:[#allocation3 + $0x20] sm:$0xff]
      %v661 = vld [vmem:[#allocation3 + $0x28] sm:$0xff]
      %v662 = vmul.f32 %v650, %v656
      %v663 = vmul.f32 %v651, %v657
      %v664 = vmul.f32 %v652, %v658
      %v665 = vmul.f32 %v653, %v659
      %v666 = vmul.f32 %v654, %v660
      %v667 = vmul.f32 %v655, %v661
      %v668 = vpack.c.bf16 %v665, %v662
      %v669 = vpack.c.bf16 %v666, %v663
      %v670 = vpack.c.bf16 %v667, %v664
      %v674 = vunpack.c.l.b16 %v668
      %v675 = vunpack.c.l.b16 %v669
      %v676 = vunpack.c.l.b16 %v670
      %v677 = vunpack.c.h.b16 %v668
      %v678 = vunpack.c.h.b16 %v669
      %v679 = vunpack.c.h.b16 %v670
      %v680 = vpack.c.b16 %v675, %v674
      %v681 = vpack.c.b16 %v676, %v676
      %v682 = vpack.c.b16 %v678, %v677
      %v683 = vpack.c.b16 %v679, %v679
      %688 = vst [vmem:[#allocation10] sm:$0xff] %v680
      %689 = vst [vmem:[#allocation10 + $0x8] sm:$0xf] %v681
      %690 = vst [vmem:[#allocation10 + $0xc] sm:$0xff] %v682
      %691 = vst [vmem:[#allocation10 + $0x14] sm:$0xf] %v683
    $region33: #{llama_forward.27} parent=1 // pred_fallthru
      _
    // Predicated region
    $region34: #{llama_forward.27} parent=1 // pred_check
      _
    $region35: #{llama_forward.27} parent=1 // pred_check_branch
      %693 = sbr.rel (0) target = $region37
    $region36: #{llama_forward.27} parent=1 // pred_region
      %s695 = ssub.s32 384, 384
      %696 = vsyncadd [#allocation6], %s695
      %s697 = sshll.u32 [#allocation10], 4
      %s698 = int_to_ptr.vmem [resolvable:$true] %s697
      %703 = dma.vmem_to_hbm [thread:$0]  %s698, 384, %s3, [#allocation6], 192, 192, 12
    $region37: #{llama_forward.27} parent=1 // pred_fallthru
      _
    // Predicated region
    $region38: #{llama_forward.27} parent=1 // pred_check
      _
    $region39: #{llama_forward.27} parent=1 // pred_check_branch
      %705 = sbr.rel (0) target = $region41
    $region40: #{llama_forward.27} parent=1 // pred_region
      %706 = dma.done [#allocation6], 384
    $region41: #{llama_forward.27} parent=1 // pred_fallthru
      _
    %707 = vsyncpa [#allocation5], 1
    %708 = vsyncpa [#allocation8], 1
    %709 = vsyncpa [#allocation6], 1

// kernel: llama_forward.39
$region0: #{llama_forward.39}
  #allocation0 [shape = 'u32[]', space=smem, size = 0x4, offset = 0x4, fixed_abs, tag = 'smem constant byte address 0x4 - core index']
  #allocation1 [shape = 'u32[144,128]{1,0:T(1,128)}', space=vmem, size = 0x12000, scoped, tag = 'internal scratch']
  #allocation2 [shape = 'f32[16,256]{1,0:T(8,128)}', space=vmem, size = 0x4000, scoped, tag = 'scratch operand']
  %s0 = inlined_call_operand.hbm [shape: bf16[16,128], index: 0, kind: input, shape index: {}]
  %s1 = inlined_call_operand.hbm [shape: bf16[128,256], index: 1, kind: input, shape index: {}]
  %s2 = inlined_call_operand.hbm [shape: f32[16,256], index: 2, kind: output, shape index: {}]
  %s3 = sld [smem:[#allocation0]]
  $region34: #{llama_forward.39} parent=0
    _
  %s5 = ssub.s32 1, %s3
  %s6 = scalar_select 0, %s5, %s3
  $region1: #{llama_forward.39} parent=0
    #allocation3 [shape = 'u8[4096]{0}', space=vmem, size = 0x1000, scoped, tag = 'input window, operand 0, single buffered']
    #allocation4 [shape = 's32[1]{0}', space=sflag, size = 0x4, scoped, tag = 'scoped memory for llama_forward.39']
    #allocation5 [shape = 's32[1]{0}', space=sflag, size = 0x4, scoped, tag = 'scoped memory for llama_forward.39']
    #allocation6 [shape = 'u8[65536]{0}', space=vmem, size = 0x10000, scoped, tag = 'input window, operand 1, single buffered']
    #allocation7 [shape = 's32[1]{0}', space=sflag, size = 0x4, scoped, tag = 'scoped memory for llama_forward.39']
    #allocation8 [shape = 'u8[16384]{0}', space=vmem, size = 0x4000, scoped, tag = 'output window, operand 0, single buffered']
    %7 = vsyncpa [#allocation4], 0
    %8 = vsyncpa [#allocation7], 0
    %9 = vsyncpa [#allocation5], 0
    // Predicated region
    $region2: #{llama_forward.39} parent=1 // pred_check
      _
    $region3: #{llama_forward.39} parent=1 // pred_check_branch
      %11 = sbr.rel (0) target = $region5
    $region4: #{llama_forward.39} parent=1 // pred_region
      %s13 = ssub.s32 128, 128
      %14 = vsyncadd [#allocation4], %s13
      %s15 = sshll.u32 [#allocation3], 4
      %s16 = int_to_ptr.vmem [resolvable:$true] %s15
      %21 = dma.hbm_to_vmem [thread:$0]  %s0, 128, %s16, [#allocation4], 64, 64, 4
    $region5: #{llama_forward.39} parent=1 // pred_fallthru
      _
    // Predicated region
    $region6: #{llama_forward.39} parent=1 // pred_check
      _
    $region7: #{llama_forward.39} parent=1 // pred_check_branch
      %23 = sbr.rel (0) target = $region9
    $region8: #{llama_forward.39} parent=1 // pred_region
      %s25 = ssub.s32 2048, 2048
      %26 = vsyncadd [#allocation7], %s25
      %s27 = sshll.u32 [#allocation6], 4
      %s28 = int_to_ptr.vmem [resolvable:$true] %s27
      %33 = dma.hbm_to_vmem [thread:$0]  %s1, 2048, %s28, [#allocation7], 128, 128, 8
    $region9: #{llama_forward.39} parent=1 // pred_fallthru
      _
    // Predicated region
    $region10: #{llama_forward.39} parent=1 // pred_check
      _
    $region11: #{llama_forward.39} parent=1 // pred_check_branch
      %35 = sbr.rel (0) target = $region13
    $region12: #{llama_forward.39} parent=1 // pred_region
      %36 = dma.done [#allocation4], 128
    $region13: #{llama_forward.39} parent=1 // pred_fallthru
      _
    // Predicated region
    $region14: #{llama_forward.39} parent=1 // pred_check
      _
    $region15: #{llama_forward.39} parent=1 // pred_check_branch
      %38 = sbr.rel (0) target = $region17
    $region16: #{llama_forward.39} parent=1 // pred_region
      %39 = dma.done [#allocation7], 2048
    $region17: #{llama_forward.39} parent=1 // pred_fallthru
      _
    %p41 = scmp.eq.s32.totalorder 0, 0
    // Predicated region
    $region18: #{llama_forward.39} parent=1 // pred_check
      %p42 = pneg %p41
    $region19: #{llama_forward.39} parent=1 // pred_check_branch
      %44 = sbr.rel (%p42) target = $region21
    $region20: #{llama_forward.39} parent=1 // pred_region
      %45 = vst [vmem:[#allocation2] sm:$0xff] 0.0
      %46 = vst [vmem:[#allocation2 + $0x8] sm:$0xff] 0.0
      %47 = vst [vmem:[#allocation2 + $0x10] sm:$0xff] 0.0
      %48 = vst [vmem:[#allocation2 + $0x18] sm:$0xff] 0.0
    $region21: #{llama_forward.39} parent=1 // pred_fallthru
      _
    %v49 = vld [vmem:[#allocation2] sm:$0xff]
    %v50 = vld [vmem:[#allocation2 + $0x8] sm:$0xff]
    %v51 = vld [vmem:[#allocation2 + $0x10] sm:$0xff]
    %v52 = vld [vmem:[#allocation2 + $0x18] sm:$0xff]
    %v53 = vld [vmem:[#allocation3] sm:$0xf]
    %v54 = vld [vmem:[#allocation3 + $0x4] sm:$0xf]
    %v55 = vld [vmem:[#allocation6] sm:$0xff]
    %v56 = vld [vmem:[#allocation6 + $0x8] sm:$0xff]
    %v57 = vld [vmem:[#allocation6 + $0x10] sm:$0xff]
    %v58 = vld [vmem:[#allocation6 + $0x18] sm:$0xff]
    %v59 = vld [vmem:[#allocation6 + $0x20] sm:$0xff]
    %v60 = vld [vmem:[#allocation6 + $0x28] sm:$0xff]
    %v61 = vld [vmem:[#allocation6 + $0x30] sm:$0xff]
    %v62 = vld [vmem:[#allocation6 + $0x38] sm:$0xff]
    %v63 = vld [vmem:[#allocation6 + $0x40] sm:$0xff]
    %v64 = vld [vmem:[#allocation6 + $0x48] sm:$0xff]
    %v65 = vld [vmem:[#allocation6 + $0x50] sm:$0xff]
    %v66 = vld [vmem:[#allocation6 + $0x58] sm:$0xff]
    %v67 = vld [vmem:[#allocation6 + $0x60] sm:$0xff]
    %v68 = vld [vmem:[#allocation6 + $0x68] sm:$0xff]
    %v69 = vld [vmem:[#allocation6 + $0x70] sm:$0xff]
    %v70 = vld [vmem:[#allocation6 + $0x78] sm:$0xff]
    %v73 = vunpack.c.l.b16 %v53
    %v74 = vunpack.c.l.b16 %v54
    %v75 = vpack.c.b16 %v74, %v73
    %v93 = vunpack.c.l.b16 %v55
    %v94 = vunpack.c.h.b16 %v55
    %v95 = vunpack.c.l.b16 %v56
    %v96 = vunpack.c.h.b16 %v56
    %v97 = vunpack.c.l.b16 %v57
    %v98 = vunpack.c.h.b16 %v57
    %v99 = vunpack.c.l.b16 %v58
    %v100 = vunpack.c.h.b16 %v58
    %v101 = vunpack.c.l.b16 %v59
    %v102 = vunpack.c.h.b16 %v59
    %v103 = vunpack.c.l.b16 %v60
    %v104 = vunpack.c.h.b16 %v60
    %v105 = vunpack.c.l.b16 %v61
    %v106 = vunpack.c.h.b16 %v61
    %v107 = vunpack.c.l.b16 %v62
    %v108 = vunpack.c.h.b16 %v62
    %v109 = vunpack.c.l.b16 %v63
    %v110 = vunpack.c.h.b16 %v63
    %v111 = vunpack.c.l.b16 %v64
    %v112 = vunpack.c.h.b16 %v64
    %v113 = vunpack.c.l.b16 %v65
    %v114 = vunpack.c.h.b16 %v65
    %v115 = vunpack.c.l.b16 %v66
    %v116 = vunpack.c.h.b16 %v66
    %v117 = vunpack.c.l.b16 %v67
    %v118 = vunpack.c.h.b16 %v67
    %v119 = vunpack.c.l.b16 %v68
    %v120 = vunpack.c.h.b16 %v68
    %v121 = vunpack.c.l.b16 %v69
    %v122 = vunpack.c.h.b16 %v69
    %v123 = vunpack.c.l.b16 %v70
    %v124 = vunpack.c.h.b16 %v70
    %v125 = vpack.c.b16 %v95, %v93
    %v126 = vpack.c.b16 %v96, %v94
    %v127 = vpack.c.b16 %v99, %v97
    %v128 = vpack.c.b16 %v100, %v98
    %v129 = vpack.c.b16 %v103, %v101
    %v130 = vpack.c.b16 %v104, %v102
    %v131 = vpack.c.b16 %v107, %v105
    %v132 = vpack.c.b16 %v108, %v106
    %v133 = vpack.c.b16 %v111, %v109
    %v134 = vpack.c.b16 %v112, %v110
    %v135 = vpack.c.b16 %v115, %v113
    %v136 = vpack.c.b16 %v116, %v114
    %v137 = vpack.c.b16 %v119, %v117
    %v138 = vpack.c.b16 %v120, %v118
    %v139 = vpack.c.b16 %v123, %v121
    %v140 = vpack.c.b16 %v124, %v122
    %157 = vmatprep.subr.bf16.mxu0 %v126
    %158 = vmatpush1.bf16.msra.mxu0 %v125
    %159 = vmatprep.subr.bf16.mxu0 %v128
    %160 = vmatpush1.bf16.msra.mxu0 %v127
    %161 = vmatprep.subr.bf16.mxu0 %v130
    %162 = vmatpush1.bf16.msra.mxu0 %v129
    %163 = vmatprep.subr.bf16.mxu0 %v132
    %164 = vmatpush1.bf16.msra.mxu0 %v131
    %165 = vmatprep.subr.bf16.mxu0 %v134
    %166 = vmatpush1.bf16.msra.mxu0 %v133
    %167 = vmatprep.subr.bf16.mxu0 %v136
    %168 = vmatpush1.bf16.msra.mxu0 %v135
    %169 = vmatprep.subr.bf16.mxu0 %v138
    %170 = vmatpush1.bf16.msra.mxu0 %v137
    %171 = vmatprep.subr.bf16.mxu0 %v140
    %172 = vmatpush1.bf16.msra.mxu0 %v139
    %173 = vmatprep.subr.bf16.mxu0 0
    %174 = vmatpush1.bf16.msra.mxu0 0
    %175 = vmatprep.subr.bf16.mxu0 0
    %176 = vmatpush1.bf16.msra.mxu0 0
    %177 = vmatprep.subr.bf16.mxu0 0
    %178 = vmatpush1.bf16.msra.mxu0 0
    %179 = vmatprep.subr.bf16.mxu0 0
    %180 = vmatpush1.bf16.msra.mxu0 0
    %181 = vmatprep.subr.bf16.mxu0 0
    %182 = vmatpush1.bf16.msra.mxu0 0
    %183 = vmatprep.subr.bf16.mxu0 0
    %184 = vmatpush1.bf16.msra.mxu0 0
    %185 = vmatprep.subr.bf16.mxu0 0
    %186 = vmatpush1.bf16.msra.mxu0 0
    %187 = vmatprep.subr.bf16.mxu0 0
    %188 = vmatpush1.bf16.msra.mxu0 0
    %189 = vmatprep.mubr.bf16.mxu0 0
    %190 = vmatmul.mubr.bf16.gmra.mrb[0].mxu0 %v75
    %v191 = vpop.f32.mrb[0].mxu0
    %v192 = vadd.f32 0.0, %v191
    %v193 = vpop.f32.mrb[0].mxu0
    %v194 = vadd.f32 0.0, %v193
    %v195 = vpop.f32.mrb[0].mxu0
    %v196 = vadd.f32 0.0, %v195
    %v197 = vpop.f32.mrb[0].mxu0
    %v198 = vadd.f32 0.0, %v197
    %199 = vdwg.mxu0
    %v200 = vadd.f32 %v49, %v192
    %v201 = vadd.f32 %v50, %v194
    %v202 = vadd.f32 %v51, %v196
    %v203 = vadd.f32 %v52, %v198
    %204 = vst [vmem:[#allocation2] sm:$0xff] %v200
    %205 = vst [vmem:[#allocation2 + $0x8] sm:$0xff] %v201
    %206 = vst [vmem:[#allocation2 + $0x10] sm:$0xff] %v202
    %207 = vst [vmem:[#allocation2 + $0x18] sm:$0xff] %v203
    // Predicated region
    $region22: #{llama_forward.39} parent=1 // pred_check
      %p208 = pneg %p41
    $region23: #{llama_forward.39} parent=1 // pred_check_branch
      %210 = sbr.rel (%p208) target = $region25
    $region24: #{llama_forward.39} parent=1 // pred_region
      %v211 = vld [vmem:[#allocation2] sm:$0xff]
      %v212 = vld [vmem:[#allocation2 + $0x8] sm:$0xff]
      %v213 = vld [vmem:[#allocation2 + $0x10] sm:$0xff]
      %v214 = vld [vmem:[#allocation2 + $0x18] sm:$0xff]
      %215 = vst [vmem:[#allocation8] sm:$0xff] %v211
      %216 = vst [vmem:[#allocation8 + $0x8] sm:$0xff] %v212
      %217 = vst [vmem:[#allocation8 + $0x10] sm:$0xff] %v213
      %218 = vst [vmem:[#allocation8 + $0x18] sm:$0xff] %v214
    $region25: #{llama_forward.39} parent=1 // pred_fallthru
      _
    // Predicated region
    $region26: #{llama_forward.39} parent=1 // pred_check
      _
    $region27: #{llama_forward.39} parent=1 // pred_check_branch
      %220 = sbr.rel (0) target = $region29
    $region28: #{llama_forward.39} parent=1 // pred_region
      %s222 = ssub.s32 512, 512
      %223 = vsyncadd [#allocation5], %s222
      %s224 = sshll.u32 [#allocation8], 4
      %s225 = int_to_ptr.vmem [resolvable:$true] %s224
      %230 = dma.vmem_to_hbm [thread:$0]  %s225, 512, %s2, [#allocation5], 256, 256, 16
    $region29: #{llama_forward.39} parent=1 // pred_fallthru
      _
    // Predicated region
    $region30: #{llama_forward.39} parent=1 // pred_check
      _
    $region31: #{llama_forward.39} parent=1 // pred_check_branch
      %232 = sbr.rel (0) target = $region33
    $region32: #{llama_forward.39} parent=1 // pred_region
      %233 = dma.done [#allocation5], 512
    $region33: #{llama_forward.39} parent=1 // pred_fallthru
      _
    %234 = vsyncpa [#allocation4], 1
    %235 = vsyncpa [#allocation7], 1
    %236 = vsyncpa [#allocation5], 1

</llo_original>
